<compile_context>
chip_gen: v5e
topology: v5e:2x2
jax: 0.10.0
libtpu: 0.0.40
codegen_flags: <defaults>
</compile_context>

<pallas_src>
import numpy as np
import jax
import jax.numpy as jnp
from jax import lax
from jax.experimental import pallas as pl
from jax.experimental.pallas import tpu as pltpu

EPS = 1e-5

# Tap order matches PyTorch kernel index order (kd, kh, kw) row-major.
_TAP_OFFSETS = [(od, oh, ow)
                for od in (-1, 0, 1)
                for oh in (-1, 0, 1)
                for ow in (-1, 0, 1)]


def _round_up(v, m):
    return ((v + m - 1) // m) * m


def _tap_masks(D, H, W):
    """(27, 1, D*H*W) f32 validity masks for every conv tap (pad=1 halo)."""
    M = D * H * W
    m = np.arange(M)
    d, h, w = m // (H * W), (m // W) % H, m % W
    rows = []
    for od, oh, ow in _TAP_OFFSETS:
        ok = ((d + od >= 0) & (d + od < D) &
              (h + oh >= 0) & (h + oh < H) &
              (w + ow >= 0) & (w + ow < W))
        rows.append(ok.astype(np.float32))
    return jnp.asarray(np.stack(rows)[:, None, :])


def _im2col_weight(w_oidhw, k_pad):
    """PyTorch (O, I, 3, 3, 3) -> (O, k_pad) bf16; rows ordered (kd,kh,kw,Cin)."""
    o, i = w_oidhw.shape[0], w_oidhw.shape[1]
    k = 27 * i
    wt = jnp.transpose(w_oidhw, (0, 2, 3, 4, 1)).reshape(o, k)
    wt = jnp.pad(wt, ((0, 0), (0, k_pad - k)))
    return wt.astype(jnp.bfloat16)


# ----------------------------------------------------------------------------
# conv3d(3x3x3, pad=1) [+ optional fused BN+ReLU of the *input*] + BN stats
# ----------------------------------------------------------------------------
def _make_conv_kernel(D, H, W, Cin, Cout, K_pad, fuse_bn_relu):
    M = D * H * W
    HW = H * W
    K = 27 * Cin

    def compute(x, masks, w_ref, y_ref, stats_ref):
        # x: (Cin, M) f32 (post BN+ReLU when fused); masks: (27, 1, M) f32.
        taps = []
        for t, (od, oh, ow) in enumerate(_TAP_OFFSETS):
            off = od * HW + oh * W + ow
            if (od, oh, ow) == (0, 0, 0):
                tap = x                               # center tap: all valid
            else:
                shifted = pltpu.roll(x, (-off) % M, 1) if off % M != 0 else x
                tap = shifted * masks[t]              # zero the pad halo
            taps.append(tap.astype(jnp.bfloat16))
        if K_pad > K:                                 # 128-align contraction dim
            taps.append(jnp.zeros((K_pad - K, M), jnp.bfloat16))
        patch = jnp.concatenate(taps, axis=0)         # (K_pad, M) bf16

        # One MXU matmul: (Cout, K_pad) @ (K_pad, M) -> (Cout, M) f32.
        y = jnp.dot(w_ref[...], patch, preferred_element_type=jnp.float32)

        # Per-channel BN partial statistics from the f32 accumulator
        # (cheap lane reductions in this layout); reduced over N outside.
        s = jnp.sum(y, axis=1, keepdims=True)         # (Cout, 1)
        sq = jnp.sum(y * y, axis=1, keepdims=True)    # (Cout, 1)
        stats_ref[...] = jnp.concatenate([s, sq], axis=1).reshape(1, Cout, 2)

        # Lane-dense bf16 store in the (N, Cout, M) layout (no relayout).
        y_ref[...] = y.astype(jnp.bfloat16).reshape(1, Cout, M)

    if fuse_bn_relu:
        def kernel(x_ref, mask_ref, scale_ref, shift_ref, w_ref, y_ref, stats_ref):
            x = x_ref[...].reshape(Cin, M).astype(jnp.float32)
            # Previous layer's BatchNorm + ReLU fused into this conv's load
            # (per-channel scale/shift broadcast along lanes), f32 math.
            x = jnp.maximum(x * scale_ref[...] + shift_ref[...], 0.0)
            compute(x, mask_ref[...], w_ref, y_ref, stats_ref)
    else:
        def kernel(x_ref, mask_ref, w_ref, y_ref, stats_ref):
            compute(x_ref[...].reshape(Cin, M).astype(jnp.float32),
                    mask_ref[...], w_ref, y_ref, stats_ref)

    return kernel


def _conv3d_bn_stats(x, masks, w, scale, shift, *,
                     N, Cin, Cout, D, H, W, fuse):
    M = D * H * W
    K_pad = w.shape[1]
    kernel = _make_conv_kernel(D, H, W, Cin, Cout, K_pad, fuse)

    in_specs = [pl.BlockSpec((1, Cin, M), lambda n: (n, 0, 0)),   # activations
                pl.BlockSpec((27, 1, M), lambda n: (0, 0, 0))]    # tap masks
    args = [x, masks]
    if fuse:
        in_specs += [pl.BlockSpec((Cin, 1), lambda n: (0, 0)),    # BN1 scale
                     pl.BlockSpec((Cin, 1), lambda n: (0, 0))]    # BN1 shift
        args += [scale, shift]
    in_specs.append(pl.BlockSpec((Cout, K_pad), lambda n: (0, 0)))  # im2col W^T
    args.append(w)

    return pl.pallas_call(
        kernel,
        out_shape=(jax.ShapeDtypeStruct((N, Cout, M), jnp.bfloat16),  # raw conv
                   jax.ShapeDtypeStruct((N, Cout, 2), jnp.float32)),  # partial stats
        grid=(N,),
        in_specs=in_specs,
        out_specs=(pl.BlockSpec((1, Cout, M), lambda n: (n, 0, 0)),
                   pl.BlockSpec((1, Cout, 2), lambda n: (n, 0, 0))),
        compiler_params=pltpu.CompilerParams(
            # Per-step disjoint outputs, no resident state -> fully parallel
            # (both TensorCores on v7x; harmless on v5e/v6e).
            dimension_semantics=("parallel",)),
    )(*args)


# ----------------------------------------------------------------------------
# BN finalize (tiny, outside the kernels) and standalone BN + ReLU
# ----------------------------------------------------------------------------
def _bn_scale_shift(stats, gamma, beta, count):
    tot = jnp.sum(stats.astype(jnp.float32), axis=0)          # (C, 2)
    mean = tot[:, 0] / count
    var = jnp.maximum(tot[:, 1] / count - mean * mean, 0.0)   # biased variance
    scale = gamma * lax.rsqrt(var + EPS)
    shift = beta - mean * scale
    return scale[:, None], shift[:, None]                      # (C, 1) f32


def _bn_relu_apply(y, scale, shift, *, N, C, M):
    def kernel(y_ref, scale_ref, shift_ref, o_ref):
        yv = y_ref[...].reshape(C, M).astype(jnp.float32)
        o_ref[...] = jnp.maximum(yv * scale_ref[...] + shift_ref[...],
                                 0.0).reshape(1, C, M)

    return pl.pallas_call(
        kernel,
        out_shape=jax.ShapeDtypeStruct((N, C, M), jnp.float32),
        grid=(N,),
        in_specs=[pl.BlockSpec((1, C, M), lambda n: (n, 0, 0)),
                  pl.BlockSpec((C, 1), lambda n: (0, 0)),
                  pl.BlockSpec((C, 1), lambda n: (0, 0))],
        out_specs=pl.BlockSpec((1, C, M), lambda n: (n, 0, 0)),
        compiler_params=pltpu.CompilerParams(
            dimension_semantics=("parallel",)),
    )(y, scale, shift)


# ----------------------------------------------------------------------------
# full downDouble3dConv forward (NCDHW in -> NCDHW out, like PyTorch)
# ----------------------------------------------------------------------------
def down_double_3d_conv(x_ncdhw, params):
    N, Cin, D, H, W = x_ncdhw.shape
    Cout = params["w2"].shape[0]
    M = D * H * W
    count = float(N * M)

    k_pad = _round_up(27 * Cin, 128)
    w1 = _im2col_weight(params["w1"], k_pad)        # (Cin,  k_pad) bf16
    w2 = _im2col_weight(params["w2"], k_pad)        # (Cout, k_pad) bf16
    masks = _tap_masks(D, H, W)                     # (27, 1, M) f32
    x_flat = x_ncdhw.reshape(N, Cin, M)             # native NCDHW, lane-dense

    # conv1 + BN1 batch statistics (conv biases cancel under training-mode BN)
    y1, stats1 = _conv3d_bn_stats(x_flat, masks, w1, None, None,
                                  N=N, Cin=Cin, Cout=Cin, D=D, H=H, W=W,
                                  fuse=False)
    scale1, shift1 = _bn_scale_shift(stats1, params["g1"], params["be1"], count)

    # BN1 + ReLU fused into conv2's load; conv2 + BN2 batch statistics
    y2, stats2 = _conv3d_bn_stats(y1, masks, w2, scale1, shift1,
                                  N=N, Cin=Cin, Cout=Cout, D=D, H=H, W=W,
                                  fuse=True)
    scale2, shift2 = _bn_scale_shift(stats2, params["g2"], params["be2"], count)

    # BN2 + ReLU (module output)
    out = _bn_relu_apply(y2, scale2, shift2, N=N, C=Cout, M=M)
    return out.reshape(N, Cout, D, H, W)


# ----------------------------------------------------------------------------
# pure-JAX f32 reference (true module semantics, incl. conv biases)
# ----------------------------------------------------------------------------
def reference(x, params):
    def conv(x, w, b):
        dn = lax.conv_dimension_numbers(x.shape, w.shape,
                                        ("NCDHW", "OIDHW", "NCDHW"))
        y = lax.conv_general_dilated(x, w, (1, 1, 1), "SAME",
                                     dimension_numbers=dn)
        return y + b.reshape(1, -1, 1, 1, 1)

    def bn_relu(y, g, be):
        mean = jnp.mean(y, axis=(0, 2, 3, 4), keepdims=True)
        var = jnp.mean((y - mean) ** 2, axis=(0, 2, 3, 4), keepdims=True)
        yn = (y - mean) * lax.rsqrt(var + EPS)
        return jnp.maximum(yn * g.reshape(1, -1, 1, 1, 1)
                           + be.reshape(1, -1, 1, 1, 1), 0.0)

    y = bn_relu(conv(x, params["w1"], params["b1"]), params["g1"], params["be1"])
    return bn_relu(conv(y, params["w2"], params["b2"]), params["g2"], params["be2"])


def init_params(key, in_ch, out_ch):
    ks = jax.random.split(key, 8)
    s = 1.0 / jnp.sqrt(in_ch * 27.0)
    return {
        # PyTorch OIDHW conv weights
        "w1": jax.random.normal(ks[0], (in_ch, in_ch, 3, 3, 3), jnp.float32) * s,
        "b1": jax.random.normal(ks[1], (in_ch,), jnp.float32) * s,
        "g1": 1.0 + 0.1 * jax.random.normal(ks[2], (in_ch,), jnp.float32),
        "be1": 0.1 * jax.random.normal(ks[3], (in_ch,), jnp.float32),
        "w2": jax.random.normal(ks[4], (out_ch, in_ch, 3, 3, 3), jnp.float32) * s,
        "b2": jax.random.normal(ks[5], (out_ch,), jnp.float32) * s,
        "g2": 1.0 + 0.1 * jax.random.normal(ks[6], (out_ch,), jnp.float32),
        "be2": 0.1 * jax.random.normal(ks[7], (out_ch,), jnp.float32),
    }


if __name__ == "__main__":
    N, Cin, Cout, D, H, W = 2, 4, 8, 8, 8, 8

    key = jax.random.PRNGKey(0)
    kx, kp = jax.random.split(key)
    x = jax.random.normal(kx, (N, Cin, D, H, W), jnp.float32)   # NCDHW
    params = init_params(kp, Cin, Cout)

    fwd = jax.jit(down_double_3d_conv)
    out = jax.block_until_ready(fwd(x, params))
    ref = jax.block_until_ready(reference(x, params))

    assert out.shape == (N, Cout, D, H, W)
    # bf16 MXU operands / bf16 intermediates vs the all-f32 reference.
    max_err = float(jnp.max(jnp.abs(out - ref)))
    assert jnp.allclose(out, ref, atol=5e-2, rtol=5e-2), max_err

    print("KERNEL_OK")
</pallas_src>

<mosaic_0001>
module attributes {stable_mosaic.version = 11 : i64} {
  func.func @kernel(%arg0: i32, %arg1: memref<1x4x512xf32, #tpu.memory_space<vmem>>, %arg2: memref<27x1x512xf32, #tpu.memory_space<vmem>>, %arg3: memref<4x128xbf16, #tpu.memory_space<vmem>>, %arg4: memref<1x4x512xbf16, #tpu.memory_space<vmem>>, %arg5: memref<1x4x2xf32, #tpu.memory_space<vmem>>) attributes {dimension_semantics = [#tpu.dimension_semantics<parallel>], iteration_bounds = array<i64: 2>, scalar_prefetch = 0 : i64, scratch_operands = 0 : i64, tpu.core_type = #tpu.core_type<tc>, window_params = [{transform_indices = @transform_0, window_bounds = array<i64: 1, 4, 512>}, {pipeline_mode = #tpu.pipeline_mode<synchronous>, transform_indices = @transform_1, window_bounds = array<i64: 27, 1, 512>}, {pipeline_mode = #tpu.pipeline_mode<synchronous>, transform_indices = @transform_2, window_bounds = array<i64: 4, 128>}, {transform_indices = @transform_3, window_bounds = array<i64: 1, 4, 512>}, {transform_indices = @transform_4, window_bounds = array<i64: 1, 4, 2>}]} {
    %c0 = arith.constant 0 : index
    %c0_0 = arith.constant 0 : index
    %c0_1 = arith.constant 0 : index
    %0 = vector.load %arg1[%c0, %c0_0, %c0_1] : memref<1x4x512xf32, #tpu.memory_space<vmem>>, vector<1x4x512xf32>
    %1 = vector.shape_cast %0 : vector<1x4x512xf32> to vector<4x512xf32>
    %c0_2 = arith.constant 0 : index
    %c0_3 = arith.constant 0 : index
    %c0_4 = arith.constant 0 : index
    %2 = vector.load %arg2[%c0_2, %c0_3, %c0_4] : memref<27x1x512xf32, #tpu.memory_space<vmem>>, vector<27x1x512xf32>
    %c73_i32 = arith.constant 73 : i32
    %3 = tpu.dynamic_rotate %1 by %c73_i32 dim 1 : vector<4x512xf32>, i32 -> vector<4x512xf32>
    %4 = vector.extract_strided_slice %2 {offsets = [0, 0, 0], sizes = [1, 1, 512], strides = [1, 1, 1]} : vector<27x1x512xf32> to vector<1x1x512xf32>
    %5 = vector.shape_cast %4 : vector<1x1x512xf32> to vector<1x512xf32>
    %6 = vector.broadcast %5 : vector<1x512xf32> to vector<4x512xf32>
    %7 = arith.mulf %3, %6 : vector<4x512xf32>
    %8 = arith.truncf %7 : vector<4x512xf32> to vector<4x512xbf16>
    %c72_i32 = arith.constant 72 : i32
    %9 = tpu.dynamic_rotate %1 by %c72_i32 dim 1 : vector<4x512xf32>, i32 -> vector<4x512xf32>
    %10 = vector.extract_strided_slice %2 {offsets = [1, 0, 0], sizes = [1, 1, 512], strides = [1, 1, 1]} : vector<27x1x512xf32> to vector<1x1x512xf32>
    %11 = vector.shape_cast %10 : vector<1x1x512xf32> to vector<1x512xf32>
    %12 = vector.broadcast %11 : vector<1x512xf32> to vector<4x512xf32>
    %13 = arith.mulf %9, %12 : vector<4x512xf32>
    %14 = arith.truncf %13 : vector<4x512xf32> to vector<4x512xbf16>
    %c71_i32 = arith.constant 71 : i32
    %15 = tpu.dynamic_rotate %1 by %c71_i32 dim 1 : vector<4x512xf32>, i32 -> vector<4x512xf32>
    %16 = vector.extract_strided_slice %2 {offsets = [2, 0, 0], sizes = [1, 1, 512], strides = [1, 1, 1]} : vector<27x1x512xf32> to vector<1x1x512xf32>
    %17 = vector.shape_cast %16 : vector<1x1x512xf32> to vector<1x512xf32>
    %18 = vector.broadcast %17 : vector<1x512xf32> to vector<4x512xf32>
    %19 = arith.mulf %15, %18 : vector<4x512xf32>
    %20 = arith.truncf %19 : vector<4x512xf32> to vector<4x512xbf16>
    %c65_i32 = arith.constant 65 : i32
    %21 = tpu.dynamic_rotate %1 by %c65_i32 dim 1 : vector<4x512xf32>, i32 -> vector<4x512xf32>
    %22 = vector.extract_strided_slice %2 {offsets = [3, 0, 0], sizes = [1, 1, 512], strides = [1, 1, 1]} : vector<27x1x512xf32> to vector<1x1x512xf32>
    %23 = vector.shape_cast %22 : vector<1x1x512xf32> to vector<1x512xf32>
    %24 = vector.broadcast %23 : vector<1x512xf32> to vector<4x512xf32>
    %25 = arith.mulf %21, %24 : vector<4x512xf32>
    %26 = arith.truncf %25 : vector<4x512xf32> to vector<4x512xbf16>
    %c64_i32 = arith.constant 64 : i32
    %27 = tpu.dynamic_rotate %1 by %c64_i32 dim 1 : vector<4x512xf32>, i32 -> vector<4x512xf32>
    %28 = vector.extract_strided_slice %2 {offsets = [4, 0, 0], sizes = [1, 1, 512], strides = [1, 1, 1]} : vector<27x1x512xf32> to vector<1x1x512xf32>
    %29 = vector.shape_cast %28 : vector<1x1x512xf32> to vector<1x512xf32>
    %30 = vector.broadcast %29 : vector<1x512xf32> to vector<4x512xf32>
    %31 = arith.mulf %27, %30 : vector<4x512xf32>
    %32 = arith.truncf %31 : vector<4x512xf32> to vector<4x512xbf16>
    %c63_i32 = arith.constant 63 : i32
    %33 = tpu.dynamic_rotate %1 by %c63_i32 dim 1 : vector<4x512xf32>, i32 -> vector<4x512xf32>
    %34 = vector.extract_strided_slice %2 {offsets = [5, 0, 0], sizes = [1, 1, 512], strides = [1, 1, 1]} : vector<27x1x512xf32> to vector<1x1x512xf32>
    %35 = vector.shape_cast %34 : vector<1x1x512xf32> to vector<1x512xf32>
    %36 = vector.broadcast %35 : vector<1x512xf32> to vector<4x512xf32>
    %37 = arith.mulf %33, %36 : vector<4x512xf32>
    %38 = arith.truncf %37 : vector<4x512xf32> to vector<4x512xbf16>
    %c57_i32 = arith.constant 57 : i32
    %39 = tpu.dynamic_rotate %1 by %c57_i32 dim 1 : vector<4x512xf32>, i32 -> vector<4x512xf32>
    %40 = vector.extract_strided_slice %2 {offsets = [6, 0, 0], sizes = [1, 1, 512], strides = [1, 1, 1]} : vector<27x1x512xf32> to vector<1x1x512xf32>
    %41 = vector.shape_cast %40 : vector<1x1x512xf32> to vector<1x512xf32>
    %42 = vector.broadcast %41 : vector<1x512xf32> to vector<4x512xf32>
    %43 = arith.mulf %39, %42 : vector<4x512xf32>
    %44 = arith.truncf %43 : vector<4x512xf32> to vector<4x512xbf16>
    %c56_i32 = arith.constant 56 : i32
    %45 = tpu.dynamic_rotate %1 by %c56_i32 dim 1 : vector<4x512xf32>, i32 -> vector<4x512xf32>
    %46 = vector.extract_strided_slice %2 {offsets = [7, 0, 0], sizes = [1, 1, 512], strides = [1, 1, 1]} : vector<27x1x512xf32> to vector<1x1x512xf32>
    %47 = vector.shape_cast %46 : vector<1x1x512xf32> to vector<1x512xf32>
    %48 = vector.broadcast %47 : vector<1x512xf32> to vector<4x512xf32>
    %49 = arith.mulf %45, %48 : vector<4x512xf32>
    %50 = arith.truncf %49 : vector<4x512xf32> to vector<4x512xbf16>
    %c55_i32 = arith.constant 55 : i32
    %51 = tpu.dynamic_rotate %1 by %c55_i32 dim 1 : vector<4x512xf32>, i32 -> vector<4x512xf32>
    %52 = vector.extract_strided_slice %2 {offsets = [8, 0, 0], sizes = [1, 1, 512], strides = [1, 1, 1]} : vector<27x1x512xf32> to vector<1x1x512xf32>
    %53 = vector.shape_cast %52 : vector<1x1x512xf32> to vector<1x512xf32>
    %54 = vector.broadcast %53 : vector<1x512xf32> to vector<4x512xf32>
    %55 = arith.mulf %51, %54 : vector<4x512xf32>
    %56 = arith.truncf %55 : vector<4x512xf32> to vector<4x512xbf16>
    %c9_i32 = arith.constant 9 : i32
    %57 = tpu.dynamic_rotate %1 by %c9_i32 dim 1 : vector<4x512xf32>, i32 -> vector<4x512xf32>
    %58 = vector.extract_strided_slice %2 {offsets = [9, 0, 0], sizes = [1, 1, 512], strides = [1, 1, 1]} : vector<27x1x512xf32> to vector<1x1x512xf32>
    %59 = vector.shape_cast %58 : vector<1x1x512xf32> to vector<1x512xf32>
    %60 = vector.broadcast %59 : vector<1x512xf32> to vector<4x512xf32>
    %61 = arith.mulf %57, %60 : vector<4x512xf32>
    %62 = arith.truncf %61 : vector<4x512xf32> to vector<4x512xbf16>
    %c8_i32 = arith.constant 8 : i32
    %63 = tpu.dynamic_rotate %1 by %c8_i32 dim 1 : vector<4x512xf32>, i32 -> vector<4x512xf32>
    %64 = vector.extract_strided_slice %2 {offsets = [10, 0, 0], sizes = [1, 1, 512], strides = [1, 1, 1]} : vector<27x1x512xf32> to vector<1x1x512xf32>
    %65 = vector.shape_cast %64 : vector<1x1x512xf32> to vector<1x512xf32>
    %66 = vector.broadcast %65 : vector<1x512xf32> to vector<4x512xf32>
    %67 = arith.mulf %63, %66 : vector<4x512xf32>
    %68 = arith.truncf %67 : vector<4x512xf32> to vector<4x512xbf16>
    %c7_i32 = arith.constant 7 : i32
    %69 = tpu.dynamic_rotate %1 by %c7_i32 dim 1 : vector<4x512xf32>, i32 -> vector<4x512xf32>
    %70 = vector.extract_strided_slice %2 {offsets = [11, 0, 0], sizes = [1, 1, 512], strides = [1, 1, 1]} : vector<27x1x512xf32> to vector<1x1x512xf32>
    %71 = vector.shape_cast %70 : vector<1x1x512xf32> to vector<1x512xf32>
    %72 = vector.broadcast %71 : vector<1x512xf32> to vector<4x512xf32>
    %73 = arith.mulf %69, %72 : vector<4x512xf32>
    %74 = arith.truncf %73 : vector<4x512xf32> to vector<4x512xbf16>
    %c1_i32 = arith.constant 1 : i32
    %75 = tpu.dynamic_rotate %1 by %c1_i32 dim 1 : vector<4x512xf32>, i32 -> vector<4x512xf32>
    %76 = vector.extract_strided_slice %2 {offsets = [12, 0, 0], sizes = [1, 1, 512], strides = [1, 1, 1]} : vector<27x1x512xf32> to vector<1x1x512xf32>
    %77 = vector.shape_cast %76 : vector<1x1x512xf32> to vector<1x512xf32>
    %78 = vector.broadcast %77 : vector<1x512xf32> to vector<4x512xf32>
    %79 = arith.mulf %75, %78 : vector<4x512xf32>
    %80 = arith.truncf %79 : vector<4x512xf32> to vector<4x512xbf16>
    %81 = arith.truncf %1 : vector<4x512xf32> to vector<4x512xbf16>
    %c511_i32 = arith.constant 511 : i32
    %82 = tpu.dynamic_rotate %1 by %c511_i32 dim 1 : vector<4x512xf32>, i32 -> vector<4x512xf32>
    %83 = vector.extract_strided_slice %2 {offsets = [14, 0, 0], sizes = [1, 1, 512], strides = [1, 1, 1]} : vector<27x1x512xf32> to vector<1x1x512xf32>
    %84 = vector.shape_cast %83 : vector<1x1x512xf32> to vector<1x512xf32>
    %85 = vector.broadcast %84 : vector<1x512xf32> to vector<4x512xf32>
    %86 = arith.mulf %82, %85 : vector<4x512xf32>
    %87 = arith.truncf %86 : vector<4x512xf32> to vector<4x512xbf16>
    %c505_i32 = arith.constant 505 : i32
    %88 = tpu.dynamic_rotate %1 by %c505_i32 dim 1 : vector<4x512xf32>, i32 -> vector<4x512xf32>
    %89 = vector.extract_strided_slice %2 {offsets = [15, 0, 0], sizes = [1, 1, 512], strides = [1, 1, 1]} : vector<27x1x512xf32> to vector<1x1x512xf32>
    %90 = vector.shape_cast %89 : vector<1x1x512xf32> to vector<1x512xf32>
    %91 = vector.broadcast %90 : vector<1x512xf32> to vector<4x512xf32>
    %92 = arith.mulf %88, %91 : vector<4x512xf32>
    %93 = arith.truncf %92 : vector<4x512xf32> to vector<4x512xbf16>
    %c504_i32 = arith.constant 504 : i32
    %94 = tpu.dynamic_rotate %1 by %c504_i32 dim 1 : vector<4x512xf32>, i32 -> vector<4x512xf32>
    %95 = vector.extract_strided_slice %2 {offsets = [16, 0, 0], sizes = [1, 1, 512], strides = [1, 1, 1]} : vector<27x1x512xf32> to vector<1x1x512xf32>
    %96 = vector.shape_cast %95 : vector<1x1x512xf32> to vector<1x512xf32>
    %97 = vector.broadcast %96 : vector<1x512xf32> to vector<4x512xf32>
    %98 = arith.mulf %94, %97 : vector<4x512xf32>
    %99 = arith.truncf %98 : vector<4x512xf32> to vector<4x512xbf16>
    %c503_i32 = arith.constant 503 : i32
    %100 = tpu.dynamic_rotate %1 by %c503_i32 dim 1 : vector<4x512xf32>, i32 -> vector<4x512xf32>
    %101 = vector.extract_strided_slice %2 {offsets = [17, 0, 0], sizes = [1, 1, 512], strides = [1, 1, 1]} : vector<27x1x512xf32> to vector<1x1x512xf32>
    %102 = vector.shape_cast %101 : vector<1x1x512xf32> to vector<1x512xf32>
    %103 = vector.broadcast %102 : vector<1x512xf32> to vector<4x512xf32>
    %104 = arith.mulf %100, %103 : vector<4x512xf32>
    %105 = arith.truncf %104 : vector<4x512xf32> to vector<4x512xbf16>
    %c457_i32 = arith.constant 457 : i32
    %106 = tpu.dynamic_rotate %1 by %c457_i32 dim 1 : vector<4x512xf32>, i32 -> vector<4x512xf32>
    %107 = vector.extract_strided_slice %2 {offsets = [18, 0, 0], sizes = [1, 1, 512], strides = [1, 1, 1]} : vector<27x1x512xf32> to vector<1x1x512xf32>
    %108 = vector.shape_cast %107 : vector<1x1x512xf32> to vector<1x512xf32>
    %109 = vector.broadcast %108 : vector<1x512xf32> to vector<4x512xf32>
    %110 = arith.mulf %106, %109 : vector<4x512xf32>
    %111 = arith.truncf %110 : vector<4x512xf32> to vector<4x512xbf16>
    %c456_i32 = arith.constant 456 : i32
    %112 = tpu.dynamic_rotate %1 by %c456_i32 dim 1 : vector<4x512xf32>, i32 -> vector<4x512xf32>
    %113 = vector.extract_strided_slice %2 {offsets = [19, 0, 0], sizes = [1, 1, 512], strides = [1, 1, 1]} : vector<27x1x512xf32> to vector<1x1x512xf32>
    %114 = vector.shape_cast %113 : vector<1x1x512xf32> to vector<1x512xf32>
    %115 = vector.broadcast %114 : vector<1x512xf32> to vector<4x512xf32>
    %116 = arith.mulf %112, %115 : vector<4x512xf32>
    %117 = arith.truncf %116 : vector<4x512xf32> to vector<4x512xbf16>
    %c455_i32 = arith.constant 455 : i32
    %118 = tpu.dynamic_rotate %1 by %c455_i32 dim 1 : vector<4x512xf32>, i32 -> vector<4x512xf32>
    %119 = vector.extract_strided_slice %2 {offsets = [20, 0, 0], sizes = [1, 1, 512], strides = [1, 1, 1]} : vector<27x1x512xf32> to vector<1x1x512xf32>
    %120 = vector.shape_cast %119 : vector<1x1x512xf32> to vector<1x512xf32>
    %121 = vector.broadcast %120 : vector<1x512xf32> to vector<4x512xf32>
    %122 = arith.mulf %118, %121 : vector<4x512xf32>
    %123 = arith.truncf %122 : vector<4x512xf32> to vector<4x512xbf16>
    %c449_i32 = arith.constant 449 : i32
    %124 = tpu.dynamic_rotate %1 by %c449_i32 dim 1 : vector<4x512xf32>, i32 -> vector<4x512xf32>
    %125 = vector.extract_strided_slice %2 {offsets = [21, 0, 0], sizes = [1, 1, 512], strides = [1, 1, 1]} : vector<27x1x512xf32> to vector<1x1x512xf32>
    %126 = vector.shape_cast %125 : vector<1x1x512xf32> to vector<1x512xf32>
    %127 = vector.broadcast %126 : vector<1x512xf32> to vector<4x512xf32>
    %128 = arith.mulf %124, %127 : vector<4x512xf32>
    %129 = arith.truncf %128 : vector<4x512xf32> to vector<4x512xbf16>
    %c448_i32 = arith.constant 448 : i32
    %130 = tpu.dynamic_rotate %1 by %c448_i32 dim 1 : vector<4x512xf32>, i32 -> vector<4x512xf32>
    %131 = vector.extract_strided_slice %2 {offsets = [22, 0, 0], sizes = [1, 1, 512], strides = [1, 1, 1]} : vector<27x1x512xf32> to vector<1x1x512xf32>
    %132 = vector.shape_cast %131 : vector<1x1x512xf32> to vector<1x512xf32>
    %133 = vector.broadcast %132 : vector<1x512xf32> to vector<4x512xf32>
    %134 = arith.mulf %130, %133 : vector<4x512xf32>
    %135 = arith.truncf %134 : vector<4x512xf32> to vector<4x512xbf16>
    %c447_i32 = arith.constant 447 : i32
    %136 = tpu.dynamic_rotate %1 by %c447_i32 dim 1 : vector<4x512xf32>, i32 -> vector<4x512xf32>
    %137 = vector.extract_strided_slice %2 {offsets = [23, 0, 0], sizes = [1, 1, 512], strides = [1, 1, 1]} : vector<27x1x512xf32> to vector<1x1x512xf32>
    %138 = vector.shape_cast %137 : vector<1x1x512xf32> to vector<1x512xf32>
    %139 = vector.broadcast %138 : vector<1x512xf32> to vector<4x512xf32>
    %140 = arith.mulf %136, %139 : vector<4x512xf32>
    %141 = arith.truncf %140 : vector<4x512xf32> to vector<4x512xbf16>
    %c441_i32 = arith.constant 441 : i32
    %142 = tpu.dynamic_rotate %1 by %c441_i32 dim 1 : vector<4x512xf32>, i32 -> vector<4x512xf32>
    %143 = vector.extract_strided_slice %2 {offsets = [24, 0, 0], sizes = [1, 1, 512], strides = [1, 1, 1]} : vector<27x1x512xf32> to vector<1x1x512xf32>
    %144 = vector.shape_cast %143 : vector<1x1x512xf32> to vector<1x512xf32>
    %145 = vector.broadcast %144 : vector<1x512xf32> to vector<4x512xf32>
    %146 = arith.mulf %142, %145 : vector<4x512xf32>
    %147 = arith.truncf %146 : vector<4x512xf32> to vector<4x512xbf16>
    %c440_i32 = arith.constant 440 : i32
    %148 = tpu.dynamic_rotate %1 by %c440_i32 dim 1 : vector<4x512xf32>, i32 -> vector<4x512xf32>
    %149 = vector.extract_strided_slice %2 {offsets = [25, 0, 0], sizes = [1, 1, 512], strides = [1, 1, 1]} : vector<27x1x512xf32> to vector<1x1x512xf32>
    %150 = vector.shape_cast %149 : vector<1x1x512xf32> to vector<1x512xf32>
    %151 = vector.broadcast %150 : vector<1x512xf32> to vector<4x512xf32>
    %152 = arith.mulf %148, %151 : vector<4x512xf32>
    %153 = arith.truncf %152 : vector<4x512xf32> to vector<4x512xbf16>
    %c439_i32 = arith.constant 439 : i32
    %154 = tpu.dynamic_rotate %1 by %c439_i32 dim 1 : vector<4x512xf32>, i32 -> vector<4x512xf32>
    %155 = vector.extract_strided_slice %2 {offsets = [26, 0, 0], sizes = [1, 1, 512], strides = [1, 1, 1]} : vector<27x1x512xf32> to vector<1x1x512xf32>
    %156 = vector.shape_cast %155 : vector<1x1x512xf32> to vector<1x512xf32>
    %157 = vector.broadcast %156 : vector<1x512xf32> to vector<4x512xf32>
    %158 = arith.mulf %154, %157 : vector<4x512xf32>
    %159 = arith.truncf %158 : vector<4x512xf32> to vector<4x512xbf16>
    %cst = arith.constant 0.000000e+00 : bf16
    %160 = vector.broadcast %cst : bf16 to vector<20x512xbf16>
    %161 = tpu.concatenate %8, %14, %20, %26, %32, %38, %44, %50, %56, %62, %68, %74, %80, %81, %87, %93 in 0 : vector<4x512xbf16>, vector<4x512xbf16>, vector<4x512xbf16>, vector<4x512xbf16>, vector<4x512xbf16>, vector<4x512xbf16>, vector<4x512xbf16>, vector<4x512xbf16>, vector<4x512xbf16>, vector<4x512xbf16>, vector<4x512xbf16>, vector<4x512xbf16>, vector<4x512xbf16>, vector<4x512xbf16>, vector<4x512xbf16>, vector<4x512xbf16> -> vector<64x512xbf16>
    %162 = tpu.concatenate %99, %105, %111, %117, %123, %129, %135, %141, %147, %153, %159, %160 in 0 : vector<4x512xbf16>, vector<4x512xbf16>, vector<4x512xbf16>, vector<4x512xbf16>, vector<4x512xbf16>, vector<4x512xbf16>, vector<4x512xbf16>, vector<4x512xbf16>, vector<4x512xbf16>, vector<4x512xbf16>, vector<4x512xbf16>, vector<20x512xbf16> -> vector<64x512xbf16>
    %163 = tpu.concatenate %161, %162 in 0 : vector<64x512xbf16>, vector<64x512xbf16> -> vector<128x512xbf16>
    %c0_5 = arith.constant 0 : index
    %c0_6 = arith.constant 0 : index
    %164 = vector.load %arg3[%c0_5, %c0_6] : memref<4x128xbf16, #tpu.memory_space<vmem>>, vector<4x128xbf16>
    %cst_7 = arith.constant dense<0.000000e+00> : vector<4x512xf32>
    %165 = tpu.matmul %164, %163, %cst_7 {dimension_numbers = #tpu.dot_dimension_numbers<[1], [0], [0], [1], [0, 0, 1, 1], [], []>} : vector<4x128xbf16>, vector<128x512xbf16>, vector<4x512xf32> -> vector<4x512xf32>
    %cst_8 = arith.constant dense<0.000000e+00> : vector<4xf32>
    %166 = vector.multi_reduction <add>, %165, %cst_8 [1] : vector<4x512xf32> to vector<4xf32>
    %167 = vector.shape_cast %166 : vector<4xf32> to vector<4x1xf32>
    %168 = arith.mulf %165, %165 : vector<4x512xf32>
    %cst_9 = arith.constant dense<0.000000e+00> : vector<4xf32>
    %169 = vector.multi_reduction <add>, %168, %cst_9 [1] : vector<4x512xf32> to vector<4xf32>
    %170 = vector.shape_cast %169 : vector<4xf32> to vector<4x1xf32>
    %171 = tpu.concatenate %167, %170 in 1 : vector<4x1xf32>, vector<4x1xf32> -> vector<4x2xf32>
    %172 = vector.shape_cast %171 : vector<4x2xf32> to vector<1x4x2xf32>
    %c0_10 = arith.constant 0 : index
    %c0_11 = arith.constant 0 : index
    %c0_12 = arith.constant 0 : index
    %173 = vector.load %arg5[%c0_10, %c0_11, %c0_12] : memref<1x4x2xf32, #tpu.memory_space<vmem>>, vector<1x4x2xf32>
    tpu.vector_store %arg5[%c0_10, %c0_11, %c0_12], %172 {strides = array<i32>} : memref<1x4x2xf32, #tpu.memory_space<vmem>>, vector<1x4x2xf32>,
    %174 = arith.truncf %165 : vector<4x512xf32> to vector<4x512xbf16>
    %175 = vector.shape_cast %174 : vector<4x512xbf16> to vector<1x4x512xbf16>
    %c0_13 = arith.constant 0 : index
    %c0_14 = arith.constant 0 : index
    %c0_15 = arith.constant 0 : index
    %176 = vector.load %arg4[%c0_13, %c0_14, %c0_15] : memref<1x4x512xbf16, #tpu.memory_space<vmem>>, vector<1x4x512xbf16>
    tpu.vector_store %arg4[%c0_13, %c0_14, %c0_15], %175 {strides = array<i32>} : memref<1x4x512xbf16, #tpu.memory_space<vmem>>, vector<1x4x512xbf16>,
    return
  }
  func.func @transform_0(%arg0: i32) -> (i32, i32, i32) {
    %c0_i32 = arith.constant 0 : i32
    %c0_i32_0 = arith.constant 0 : i32
    %c0_i32_1 = arith.constant 0 : i32
    return %arg0, %c0_i32, %c0_i32_0 : i32, i32, i32
  }
  func.func @transform_1(%arg0: i32) -> (i32, i32, i32) {
    %c0_i32 = arith.constant 0 : i32
    %c0_i32_0 = arith.constant 0 : i32
    %c0_i32_1 = arith.constant 0 : i32
    %c0_i32_2 = arith.constant 0 : i32
    return %c0_i32, %c0_i32_0, %c0_i32_1 : i32, i32, i32
  }
  func.func @transform_2(%arg0: i32) -> (i32, i32) {
    %c0_i32 = arith.constant 0 : i32
    %c0_i32_0 = arith.constant 0 : i32
    %c0_i32_1 = arith.constant 0 : i32
    return %c0_i32, %c0_i32_0 : i32, i32
  }
  func.func @transform_3(%arg0: i32) -> (i32, i32, i32) {
    %c0_i32 = arith.constant 0 : i32
    %c0_i32_0 = arith.constant 0 : i32
    %c0_i32_1 = arith.constant 0 : i32
    return %arg0, %c0_i32, %c0_i32_0 : i32, i32, i32
  }
  func.func @transform_4(%arg0: i32) -> (i32, i32, i32) {
    %c0_i32 = arith.constant 0 : i32
    %c0_i32_0 = arith.constant 0 : i32
    %c0_i32_1 = arith.constant 0 : i32
    return %arg0, %c0_i32, %c0_i32_0 : i32, i32, i32
  }
}

module attributes {stable_mosaic.version = 11 : i64} {
  func.func @kernel(%arg0: i32, %arg1: memref<1x4x512xbf16, #tpu.memory_space<vmem>>, %arg2: memref<27x1x512xf32, #tpu.memory_space<vmem>>, %arg3: memref<4x1xf32, #tpu.memory_space<vmem>>, %arg4: memref<4x1xf32, #tpu.memory_space<vmem>>, %arg5: memref<8x128xbf16, #tpu.memory_space<vmem>>, %arg6: memref<1x8x512xbf16, #tpu.memory_space<vmem>>, %arg7: memref<1x8x2xf32, #tpu.memory_space<vmem>>) attributes {dimension_semantics = [#tpu.dimension_semantics<parallel>], iteration_bounds = array<i64: 2>, scalar_prefetch = 0 : i64, scratch_operands = 0 : i64, tpu.core_type = #tpu.core_type<tc>, window_params = [{transform_indices = @transform_0, window_bounds = array<i64: 1, 4, 512>}, {pipeline_mode = #tpu.pipeline_mode<synchronous>, transform_indices = @transform_1, window_bounds = array<i64: 27, 1, 512>}, {pipeline_mode = #tpu.pipeline_mode<synchronous>, transform_indices = @transform_2, window_bounds = array<i64: 4, 1>}, {pipeline_mode = #tpu.pipeline_mode<synchronous>, transform_indices = @transform_3, window_bounds = array<i64: 4, 1>}, {pipeline_mode = #tpu.pipeline_mode<synchronous>, transform_indices = @transform_4, window_bounds = array<i64: 8, 128>}, {transform_indices = @transform_5, window_bounds = array<i64: 1, 8, 512>}, {transform_indices = @transform_6, window_bounds = array<i64: 1, 8, 2>}]} {
    %c0 = arith.constant 0 : index
    %c0_0 = arith.constant 0 : index
    %c0_1 = arith.constant 0 : index
    %0 = vector.load %arg1[%c0, %c0_0, %c0_1] : memref<1x4x512xbf16, #tpu.memory_space<vmem>>, vector<1x4x512xbf16>
    %1 = vector.shape_cast %0 : vector<1x4x512xbf16> to vector<4x512xbf16>
    %2 = arith.extf %1 : vector<4x512xbf16> to vector<4x512xf32>
    %c0_2 = arith.constant 0 : index
    %c0_3 = arith.constant 0 : index
    %3 = vector.load %arg3[%c0_2, %c0_3] : memref<4x1xf32, #tpu.memory_space<vmem>>, vector<4x1xf32>
    %4 = vector.broadcast %3 : vector<4x1xf32> to vector<4x512xf32>
    %5 = arith.mulf %2, %4 : vector<4x512xf32>
    %c0_4 = arith.constant 0 : index
    %c0_5 = arith.constant 0 : index
    %6 = vector.load %arg4[%c0_4, %c0_5] : memref<4x1xf32, #tpu.memory_space<vmem>>, vector<4x1xf32>
    %7 = vector.broadcast %6 : vector<4x1xf32> to vector<4x512xf32>
    %8 = arith.addf %5, %7 : vector<4x512xf32>
    %cst = arith.constant 0.000000e+00 : f32
    %9 = vector.broadcast %cst : f32 to vector<4x512xf32>
    %10 = arith.maximumf %8, %9 : vector<4x512xf32>
    %c0_6 = arith.constant 0 : index
    %c0_7 = arith.constant 0 : index
    %c0_8 = arith.constant 0 : index
    %11 = vector.load %arg2[%c0_6, %c0_7, %c0_8] : memref<27x1x512xf32, #tpu.memory_space<vmem>>, vector<27x1x512xf32>
    %c73_i32 = arith.constant 73 : i32
    %12 = tpu.dynamic_rotate %10 by %c73_i32 dim 1 : vector<4x512xf32>, i32 -> vector<4x512xf32>
    %13 = vector.extract_strided_slice %11 {offsets = [0, 0, 0], sizes = [1, 1, 512], strides = [1, 1, 1]} : vector<27x1x512xf32> to vector<1x1x512xf32>
    %14 = vector.shape_cast %13 : vector<1x1x512xf32> to vector<1x512xf32>
    %15 = vector.broadcast %14 : vector<1x512xf32> to vector<4x512xf32>
    %16 = arith.mulf %12, %15 : vector<4x512xf32>
    %17 = arith.truncf %16 : vector<4x512xf32> to vector<4x512xbf16>
    %c72_i32 = arith.constant 72 : i32
    %18 = tpu.dynamic_rotate %10 by %c72_i32 dim 1 : vector<4x512xf32>, i32 -> vector<4x512xf32>
    %19 = vector.extract_strided_slice %11 {offsets = [1, 0, 0], sizes = [1, 1, 512], strides = [1, 1, 1]} : vector<27x1x512xf32> to vector<1x1x512xf32>
    %20 = vector.shape_cast %19 : vector<1x1x512xf32> to vector<1x512xf32>
    %21 = vector.broadcast %20 : vector<1x512xf32> to vector<4x512xf32>
    %22 = arith.mulf %18, %21 : vector<4x512xf32>
    %23 = arith.truncf %22 : vector<4x512xf32> to vector<4x512xbf16>
    %c71_i32 = arith.constant 71 : i32
    %24 = tpu.dynamic_rotate %10 by %c71_i32 dim 1 : vector<4x512xf32>, i32 -> vector<4x512xf32>
    %25 = vector.extract_strided_slice %11 {offsets = [2, 0, 0], sizes = [1, 1, 512], strides = [1, 1, 1]} : vector<27x1x512xf32> to vector<1x1x512xf32>
    %26 = vector.shape_cast %25 : vector<1x1x512xf32> to vector<1x512xf32>
    %27 = vector.broadcast %26 : vector<1x512xf32> to vector<4x512xf32>
    %28 = arith.mulf %24, %27 : vector<4x512xf32>
    %29 = arith.truncf %28 : vector<4x512xf32> to vector<4x512xbf16>
    %c65_i32 = arith.constant 65 : i32
    %30 = tpu.dynamic_rotate %10 by %c65_i32 dim 1 : vector<4x512xf32>, i32 -> vector<4x512xf32>
    %31 = vector.extract_strided_slice %11 {offsets = [3, 0, 0], sizes = [1, 1, 512], strides = [1, 1, 1]} : vector<27x1x512xf32> to vector<1x1x512xf32>
    %32 = vector.shape_cast %31 : vector<1x1x512xf32> to vector<1x512xf32>
    %33 = vector.broadcast %32 : vector<1x512xf32> to vector<4x512xf32>
    %34 = arith.mulf %30, %33 : vector<4x512xf32>
    %35 = arith.truncf %34 : vector<4x512xf32> to vector<4x512xbf16>
    %c64_i32 = arith.constant 64 : i32
    %36 = tpu.dynamic_rotate %10 by %c64_i32 dim 1 : vector<4x512xf32>, i32 -> vector<4x512xf32>
    %37 = vector.extract_strided_slice %11 {offsets = [4, 0, 0], sizes = [1, 1, 512], strides = [1, 1, 1]} : vector<27x1x512xf32> to vector<1x1x512xf32>
    %38 = vector.shape_cast %37 : vector<1x1x512xf32> to vector<1x512xf32>
    %39 = vector.broadcast %38 : vector<1x512xf32> to vector<4x512xf32>
    %40 = arith.mulf %36, %39 : vector<4x512xf32>
    %41 = arith.truncf %40 : vector<4x512xf32> to vector<4x512xbf16>
    %c63_i32 = arith.constant 63 : i32
    %42 = tpu.dynamic_rotate %10 by %c63_i32 dim 1 : vector<4x512xf32>, i32 -> vector<4x512xf32>
    %43 = vector.extract_strided_slice %11 {offsets = [5, 0, 0], sizes = [1, 1, 512], strides = [1, 1, 1]} : vector<27x1x512xf32> to vector<1x1x512xf32>
    %44 = vector.shape_cast %43 : vector<1x1x512xf32> to vector<1x512xf32>
    %45 = vector.broadcast %44 : vector<1x512xf32> to vector<4x512xf32>
    %46 = arith.mulf %42, %45 : vector<4x512xf32>
    %47 = arith.truncf %46 : vector<4x512xf32> to vector<4x512xbf16>
    %c57_i32 = arith.constant 57 : i32
    %48 = tpu.dynamic_rotate %10 by %c57_i32 dim 1 : vector<4x512xf32>, i32 -> vector<4x512xf32>
    %49 = vector.extract_strided_slice %11 {offsets = [6, 0, 0], sizes = [1, 1, 512], strides = [1, 1, 1]} : vector<27x1x512xf32> to vector<1x1x512xf32>
    %50 = vector.shape_cast %49 : vector<1x1x512xf32> to vector<1x512xf32>
    %51 = vector.broadcast %50 : vector<1x512xf32> to vector<4x512xf32>
    %52 = arith.mulf %48, %51 : vector<4x512xf32>
    %53 = arith.truncf %52 : vector<4x512xf32> to vector<4x512xbf16>
    %c56_i32 = arith.constant 56 : i32
    %54 = tpu.dynamic_rotate %10 by %c56_i32 dim 1 : vector<4x512xf32>, i32 -> vector<4x512xf32>
    %55 = vector.extract_strided_slice %11 {offsets = [7, 0, 0], sizes = [1, 1, 512], strides = [1, 1, 1]} : vector<27x1x512xf32> to vector<1x1x512xf32>
    %56 = vector.shape_cast %55 : vector<1x1x512xf32> to vector<1x512xf32>
    %57 = vector.broadcast %56 : vector<1x512xf32> to vector<4x512xf32>
    %58 = arith.mulf %54, %57 : vector<4x512xf32>
    %59 = arith.truncf %58 : vector<4x512xf32> to vector<4x512xbf16>
    %c55_i32 = arith.constant 55 : i32
    %60 = tpu.dynamic_rotate %10 by %c55_i32 dim 1 : vector<4x512xf32>, i32 -> vector<4x512xf32>
    %61 = vector.extract_strided_slice %11 {offsets = [8, 0, 0], sizes = [1, 1, 512], strides = [1, 1, 1]} : vector<27x1x512xf32> to vector<1x1x512xf32>
    %62 = vector.shape_cast %61 : vector<1x1x512xf32> to vector<1x512xf32>
    %63 = vector.broadcast %62 : vector<1x512xf32> to vector<4x512xf32>
    %64 = arith.mulf %60, %63 : vector<4x512xf32>
    %65 = arith.truncf %64 : vector<4x512xf32> to vector<4x512xbf16>
    %c9_i32 = arith.constant 9 : i32
    %66 = tpu.dynamic_rotate %10 by %c9_i32 dim 1 : vector<4x512xf32>, i32 -> vector<4x512xf32>
    %67 = vector.extract_strided_slice %11 {offsets = [9, 0, 0], sizes = [1, 1, 512], strides = [1, 1, 1]} : vector<27x1x512xf32> to vector<1x1x512xf32>
    %68 = vector.shape_cast %67 : vector<1x1x512xf32> to vector<1x512xf32>
    %69 = vector.broadcast %68 : vector<1x512xf32> to vector<4x512xf32>
    %70 = arith.mulf %66, %69 : vector<4x512xf32>
    %71 = arith.truncf %70 : vector<4x512xf32> to vector<4x512xbf16>
    %c8_i32 = arith.constant 8 : i32
    %72 = tpu.dynamic_rotate %10 by %c8_i32 dim 1 : vector<4x512xf32>, i32 -> vector<4x512xf32>
    %73 = vector.extract_strided_slice %11 {offsets = [10, 0, 0], sizes = [1, 1, 512], strides = [1, 1, 1]} : vector<27x1x512xf32> to vector<1x1x512xf32>
    %74 = vector.shape_cast %73 : vector<1x1x512xf32> to vector<1x512xf32>
    %75 = vector.broadcast %74 : vector<1x512xf32> to vector<4x512xf32>
    %76 = arith.mulf %72, %75 : vector<4x512xf32>
    %77 = arith.truncf %76 : vector<4x512xf32> to vector<4x512xbf16>
    %c7_i32 = arith.constant 7 : i32
    %78 = tpu.dynamic_rotate %10 by %c7_i32 dim 1 : vector<4x512xf32>, i32 -> vector<4x512xf32>
    %79 = vector.extract_strided_slice %11 {offsets = [11, 0, 0], sizes = [1, 1, 512], strides = [1, 1, 1]} : vector<27x1x512xf32> to vector<1x1x512xf32>
    %80 = vector.shape_cast %79 : vector<1x1x512xf32> to vector<1x512xf32>
    %81 = vector.broadcast %80 : vector<1x512xf32> to vector<4x512xf32>
    %82 = arith.mulf %78, %81 : vector<4x512xf32>
    %83 = arith.truncf %82 : vector<4x512xf32> to vector<4x512xbf16>
    %c1_i32 = arith.constant 1 : i32
    %84 = tpu.dynamic_rotate %10 by %c1_i32 dim 1 : vector<4x512xf32>, i32 -> vector<4x512xf32>
    %85 = vector.extract_strided_slice %11 {offsets = [12, 0, 0], sizes = [1, 1, 512], strides = [1, 1, 1]} : vector<27x1x512xf32> to vector<1x1x512xf32>
    %86 = vector.shape_cast %85 : vector<1x1x512xf32> to vector<1x512xf32>
    %87 = vector.broadcast %86 : vector<1x512xf32> to vector<4x512xf32>
    %88 = arith.mulf %84, %87 : vector<4x512xf32>
    %89 = arith.truncf %88 : vector<4x512xf32> to vector<4x512xbf16>
    %90 = arith.truncf %10 : vector<4x512xf32> to vector<4x512xbf16>
    %c511_i32 = arith.constant 511 : i32
    %91 = tpu.dynamic_rotate %10 by %c511_i32 dim 1 : vector<4x512xf32>, i32 -> vector<4x512xf32>
    %92 = vector.extract_strided_slice %11 {offsets = [14, 0, 0], sizes = [1, 1, 512], strides = [1, 1, 1]} : vector<27x1x512xf32> to vector<1x1x512xf32>
    %93 = vector.shape_cast %92 : vector<1x1x512xf32> to vector<1x512xf32>
    %94 = vector.broadcast %93 : vector<1x512xf32> to vector<4x512xf32>
    %95 = arith.mulf %91, %94 : vector<4x512xf32>
    %96 = arith.truncf %95 : vector<4x512xf32> to vector<4x512xbf16>
    %c505_i32 = arith.constant 505 : i32
    %97 = tpu.dynamic_rotate %10 by %c505_i32 dim 1 : vector<4x512xf32>, i32 -> vector<4x512xf32>
    %98 = vector.extract_strided_slice %11 {offsets = [15, 0, 0], sizes = [1, 1, 512], strides = [1, 1, 1]} : vector<27x1x512xf32> to vector<1x1x512xf32>
    %99 = vector.shape_cast %98 : vector<1x1x512xf32> to vector<1x512xf32>
    %100 = vector.broadcast %99 : vector<1x512xf32> to vector<4x512xf32>
    %101 = arith.mulf %97, %100 : vector<4x512xf32>
    %102 = arith.truncf %101 : vector<4x512xf32> to vector<4x512xbf16>
    %c504_i32 = arith.constant 504 : i32
    %103 = tpu.dynamic_rotate %10 by %c504_i32 dim 1 : vector<4x512xf32>, i32 -> vector<4x512xf32>
    %104 = vector.extract_strided_slice %11 {offsets = [16, 0, 0], sizes = [1, 1, 512], strides = [1, 1, 1]} : vector<27x1x512xf32> to vector<1x1x512xf32>
    %105 = vector.shape_cast %104 : vector<1x1x512xf32> to vector<1x512xf32>
    %106 = vector.broadcast %105 : vector<1x512xf32> to vector<4x512xf32>
    %107 = arith.mulf %103, %106 : vector<4x512xf32>
    %108 = arith.truncf %107 : vector<4x512xf32> to vector<4x512xbf16>
    %c503_i32 = arith.constant 503 : i32
    %109 = tpu.dynamic_rotate %10 by %c503_i32 dim 1 : vector<4x512xf32>, i32 -> vector<4x512xf32>
    %110 = vector.extract_strided_slice %11 {offsets = [17, 0, 0], sizes = [1, 1, 512], strides = [1, 1, 1]} : vector<27x1x512xf32> to vector<1x1x512xf32>
    %111 = vector.shape_cast %110 : vector<1x1x512xf32> to vector<1x512xf32>
    %112 = vector.broadcast %111 : vector<1x512xf32> to vector<4x512xf32>
    %113 = arith.mulf %109, %112 : vector<4x512xf32>
    %114 = arith.truncf %113 : vector<4x512xf32> to vector<4x512xbf16>
    %c457_i32 = arith.constant 457 : i32
    %115 = tpu.dynamic_rotate %10 by %c457_i32 dim 1 : vector<4x512xf32>, i32 -> vector<4x512xf32>
    %116 = vector.extract_strided_slice %11 {offsets = [18, 0, 0], sizes = [1, 1, 512], strides = [1, 1, 1]} : vector<27x1x512xf32> to vector<1x1x512xf32>
    %117 = vector.shape_cast %116 : vector<1x1x512xf32> to vector<1x512xf32>
    %118 = vector.broadcast %117 : vector<1x512xf32> to vector<4x512xf32>
    %119 = arith.mulf %115, %118 : vector<4x512xf32>
    %120 = arith.truncf %119 : vector<4x512xf32> to vector<4x512xbf16>
    %c456_i32 = arith.constant 456 : i32
    %121 = tpu.dynamic_rotate %10 by %c456_i32 dim 1 : vector<4x512xf32>, i32 -> vector<4x512xf32>
    %122 = vector.extract_strided_slice %11 {offsets = [19, 0, 0], sizes = [1, 1, 512], strides = [1, 1, 1]} : vector<27x1x512xf32> to vector<1x1x512xf32>
    %123 = vector.shape_cast %122 : vector<1x1x512xf32> to vector<1x512xf32>
    %124 = vector.broadcast %123 : vector<1x512xf32> to vector<4x512xf32>
    %125 = arith.mulf %121, %124 : vector<4x512xf32>
    %126 = arith.truncf %125 : vector<4x512xf32> to vector<4x512xbf16>
    %c455_i32 = arith.constant 455 : i32
    %127 = tpu.dynamic_rotate %10 by %c455_i32 dim 1 : vector<4x512xf32>, i32 -> vector<4x512xf32>
    %128 = vector.extract_strided_slice %11 {offsets = [20, 0, 0], sizes = [1, 1, 512], strides = [1, 1, 1]} : vector<27x1x512xf32> to vector<1x1x512xf32>
    %129 = vector.shape_cast %128 : vector<1x1x512xf32> to vector<1x512xf32>
    %130 = vector.broadcast %129 : vector<1x512xf32> to vector<4x512xf32>
    %131 = arith.mulf %127, %130 : vector<4x512xf32>
    %132 = arith.truncf %131 : vector<4x512xf32> to vector<4x512xbf16>
    %c449_i32 = arith.constant 449 : i32
    %133 = tpu.dynamic_rotate %10 by %c449_i32 dim 1 : vector<4x512xf32>, i32 -> vector<4x512xf32>
    %134 = vector.extract_strided_slice %11 {offsets = [21, 0, 0], sizes = [1, 1, 512], strides = [1, 1, 1]} : vector<27x1x512xf32> to vector<1x1x512xf32>
    %135 = vector.shape_cast %134 : vector<1x1x512xf32> to vector<1x512xf32>
    %136 = vector.broadcast %135 : vector<1x512xf32> to vector<4x512xf32>
    %137 = arith.mulf %133, %136 : vector<4x512xf32>
    %138 = arith.truncf %137 : vector<4x512xf32> to vector<4x512xbf16>
    %c448_i32 = arith.constant 448 : i32
    %139 = tpu.dynamic_rotate %10 by %c448_i32 dim 1 : vector<4x512xf32>, i32 -> vector<4x512xf32>
    %140 = vector.extract_strided_slice %11 {offsets = [22, 0, 0], sizes = [1, 1, 512], strides = [1, 1, 1]} : vector<27x1x512xf32> to vector<1x1x512xf32>
    %141 = vector.shape_cast %140 : vector<1x1x512xf32> to vector<1x512xf32>
    %142 = vector.broadcast %141 : vector<1x512xf32> to vector<4x512xf32>
    %143 = arith.mulf %139, %142 : vector<4x512xf32>
    %144 = arith.truncf %143 : vector<4x512xf32> to vector<4x512xbf16>
    %c447_i32 = arith.constant 447 : i32
    %145 = tpu.dynamic_rotate %10 by %c447_i32 dim 1 : vector<4x512xf32>, i32 -> vector<4x512xf32>
    %146 = vector.extract_strided_slice %11 {offsets = [23, 0, 0], sizes = [1, 1, 512], strides = [1, 1, 1]} : vector<27x1x512xf32> to vector<1x1x512xf32>
    %147 = vector.shape_cast %146 : vector<1x1x512xf32> to vector<1x512xf32>
    %148 = vector.broadcast %147 : vector<1x512xf32> to vector<4x512xf32>
    %149 = arith.mulf %145, %148 : vector<4x512xf32>
    %150 = arith.truncf %149 : vector<4x512xf32> to vector<4x512xbf16>
    %c441_i32 = arith.constant 441 : i32
    %151 = tpu.dynamic_rotate %10 by %c441_i32 dim 1 : vector<4x512xf32>, i32 -> vector<4x512xf32>
    %152 = vector.extract_strided_slice %11 {offsets = [24, 0, 0], sizes = [1, 1, 512], strides = [1, 1, 1]} : vector<27x1x512xf32> to vector<1x1x512xf32>
    %153 = vector.shape_cast %152 : vector<1x1x512xf32> to vector<1x512xf32>
    %154 = vector.broadcast %153 : vector<1x512xf32> to vector<4x512xf32>
    %155 = arith.mulf %151, %154 : vector<4x512xf32>
    %156 = arith.truncf %155 : vector<4x512xf32> to vector<4x512xbf16>
    %c440_i32 = arith.constant 440 : i32
    %157 = tpu.dynamic_rotate %10 by %c440_i32 dim 1 : vector<4x512xf32>, i32 -> vector<4x512xf32>
    %158 = vector.extract_strided_slice %11 {offsets = [25, 0, 0], sizes = [1, 1, 512], strides = [1, 1, 1]} : vector<27x1x512xf32> to vector<1x1x512xf32>
    %159 = vector.shape_cast %158 : vector<1x1x512xf32> to vector<1x512xf32>
    %160 = vector.broadcast %159 : vector<1x512xf32> to vector<4x512xf32>
    %161 = arith.mulf %157, %160 : vector<4x512xf32>
    %162 = arith.truncf %161 : vector<4x512xf32> to vector<4x512xbf16>
    %c439_i32 = arith.constant 439 : i32
    %163 = tpu.dynamic_rotate %10 by %c439_i32 dim 1 : vector<4x512xf32>, i32 -> vector<4x512xf32>
    %164 = vector.extract_strided_slice %11 {offsets = [26, 0, 0], sizes = [1, 1, 512], strides = [1, 1, 1]} : vector<27x1x512xf32> to vector<1x1x512xf32>
    %165 = vector.shape_cast %164 : vector<1x1x512xf32> to vector<1x512xf32>
    %166 = vector.broadcast %165 : vector<1x512xf32> to vector<4x512xf32>
    %167 = arith.mulf %163, %166 : vector<4x512xf32>
    %168 = arith.truncf %167 : vector<4x512xf32> to vector<4x512xbf16>
    %cst_9 = arith.constant 0.000000e+00 : bf16
    %169 = vector.broadcast %cst_9 : bf16 to vector<20x512xbf16>
    %170 = tpu.concatenate %17, %23, %29, %35, %41, %47, %53, %59, %65, %71, %77, %83, %89, %90, %96, %102 in 0 : vector<4x512xbf16>, vector<4x512xbf16>, vector<4x512xbf16>, vector<4x512xbf16>, vector<4x512xbf16>, vector<4x512xbf16>, vector<4x512xbf16>, vector<4x512xbf16>, vector<4x512xbf16>, vector<4x512xbf16>, vector<4x512xbf16>, vector<4x512xbf16>, vector<4x512xbf16>, vector<4x512xbf16>, vector<4x512xbf16>, vector<4x512xbf16> -> vector<64x512xbf16>
    %171 = tpu.concatenate %108, %114, %120, %126, %132, %138, %144, %150, %156, %162, %168, %169 in 0 : vector<4x512xbf16>, vector<4x512xbf16>, vector<4x512xbf16>, vector<4x512xbf16>, vector<4x512xbf16>, vector<4x512xbf16>, vector<4x512xbf16>, vector<4x512xbf16>, vector<4x512xbf16>, vector<4x512xbf16>, vector<4x512xbf16>, vector<20x512xbf16> -> vector<64x512xbf16>
    %172 = tpu.concatenate %170, %171 in 0 : vector<64x512xbf16>, vector<64x512xbf16> -> vector<128x512xbf16>
    %c0_10 = arith.constant 0 : index
    %c0_11 = arith.constant 0 : index
    %173 = vector.load %arg5[%c0_10, %c0_11] : memref<8x128xbf16, #tpu.memory_space<vmem>>, vector<8x128xbf16>
    %cst_12 = arith.constant dense<0.000000e+00> : vector<8x512xf32>
    %174 = tpu.matmul %173, %172, %cst_12 {dimension_numbers = #tpu.dot_dimension_numbers<[1], [0], [0], [1], [0, 0, 1, 1], [], []>} : vector<8x128xbf16>, vector<128x512xbf16>, vector<8x512xf32> -> vector<8x512xf32>
    %cst_13 = arith.constant dense<0.000000e+00> : vector<8xf32>
    %175 = vector.multi_reduction <add>, %174, %cst_13 [1] : vector<8x512xf32> to vector<8xf32>
    %176 = vector.shape_cast %175 : vector<8xf32> to vector<8x1xf32>
    %177 = arith.mulf %174, %174 : vector<8x512xf32>
    %cst_14 = arith.constant dense<0.000000e+00> : vector<8xf32>
    %178 = vector.multi_reduction <add>, %177, %cst_14 [1] : vector<8x512xf32> to vector<8xf32>
    %179 = vector.shape_cast %178 : vector<8xf32> to vector<8x1xf32>
    %180 = tpu.concatenate %176, %179 in 1 : vector<8x1xf32>, vector<8x1xf32> -> vector<8x2xf32>
    %181 = vector.shape_cast %180 : vector<8x2xf32> to vector<1x8x2xf32>
    %c0_15 = arith.constant 0 : index
    %c0_16 = arith.constant 0 : index
    %c0_17 = arith.constant 0 : index
    %182 = vector.load %arg7[%c0_15, %c0_16, %c0_17] : memref<1x8x2xf32, #tpu.memory_space<vmem>>, vector<1x8x2xf32>
    tpu.vector_store %arg7[%c0_15, %c0_16, %c0_17], %181 {strides = array<i32>} : memref<1x8x2xf32, #tpu.memory_space<vmem>>, vector<1x8x2xf32>,
    %183 = arith.truncf %174 : vector<8x512xf32> to vector<8x512xbf16>
    %184 = vector.shape_cast %183 : vector<8x512xbf16> to vector<1x8x512xbf16>
    %c0_18 = arith.constant 0 : index
    %c0_19 = arith.constant 0 : index
    %c0_20 = arith.constant 0 : index
    %185 = vector.load %arg6[%c0_18, %c0_19, %c0_20] : memref<1x8x512xbf16, #tpu.memory_space<vmem>>, vector<1x8x512xbf16>
    tpu.vector_store %arg6[%c0_18, %c0_19, %c0_20], %184 {strides = array<i32>} : memref<1x8x512xbf16, #tpu.memory_space<vmem>>, vector<1x8x512xbf16>,
    return
  }
  func.func @transform_0(%arg0: i32) -> (i32, i32, i32) {
    %c0_i32 = arith.constant 0 : i32
    %c0_i32_0 = arith.constant 0 : i32
    %c0_i32_1 = arith.constant 0 : i32
    return %arg0, %c0_i32, %c0_i32_0 : i32, i32, i32
  }
  func.func @transform_1(%arg0: i32) -> (i32, i32, i32) {
    %c0_i32 = arith.constant 0 : i32
    %c0_i32_0 = arith.constant 0 : i32
    %c0_i32_1 = arith.constant 0 : i32
    %c0_i32_2 = arith.constant 0 : i32
    return %c0_i32, %c0_i32_0, %c0_i32_1 : i32, i32, i32
  }
  func.func @transform_2(%arg0: i32) -> (i32, i32) {
    %c0_i32 = arith.constant 0 : i32
    %c0_i32_0 = arith.constant 0 : i32
    %c0_i32_1 = arith.constant 0 : i32
    return %c0_i32, %c0_i32_0 : i32, i32
  }
  func.func @transform_3(%arg0: i32) -> (i32, i32) {
    %c0_i32 = arith.constant 0 : i32
    %c0_i32_0 = arith.constant 0 : i32
    %c0_i32_1 = arith.constant 0 : i32
    return %c0_i32, %c0_i32_0 : i32, i32
  }
  func.func @transform_4(%arg0: i32) -> (i32, i32) {
    %c0_i32 = arith.constant 0 : i32
    %c0_i32_0 = arith.constant 0 : i32
    %c0_i32_1 = arith.constant 0 : i32
    return %c0_i32, %c0_i32_0 : i32, i32
  }
  func.func @transform_5(%arg0: i32) -> (i32, i32, i32) {
    %c0_i32 = arith.constant 0 : i32
    %c0_i32_0 = arith.constant 0 : i32
    %c0_i32_1 = arith.constant 0 : i32
    return %arg0, %c0_i32, %c0_i32_0 : i32, i32, i32
  }
  func.func @transform_6(%arg0: i32) -> (i32, i32, i32) {
    %c0_i32 = arith.constant 0 : i32
    %c0_i32_0 = arith.constant 0 : i32
    %c0_i32_1 = arith.constant 0 : i32
    return %arg0, %c0_i32, %c0_i32_0 : i32, i32, i32
  }
}

module attributes {stable_mosaic.version = 11 : i64} {
  func.func @kernel(%arg0: i32, %arg1: memref<1x8x512xbf16, #tpu.memory_space<vmem>>, %arg2: memref<8x1xf32, #tpu.memory_space<vmem>>, %arg3: memref<8x1xf32, #tpu.memory_space<vmem>>, %arg4: memref<1x8x512xf32, #tpu.memory_space<vmem>>) attributes {dimension_semantics = [#tpu.dimension_semantics<parallel>], iteration_bounds = array<i64: 2>, scalar_prefetch = 0 : i64, scratch_operands = 0 : i64, tpu.core_type = #tpu.core_type<tc>, window_params = [{transform_indices = @transform_0, window_bounds = array<i64: 1, 8, 512>}, {pipeline_mode = #tpu.pipeline_mode<synchronous>, transform_indices = @transform_1, window_bounds = array<i64: 8, 1>}, {pipeline_mode = #tpu.pipeline_mode<synchronous>, transform_indices = @transform_2, window_bounds = array<i64: 8, 1>}, {transform_indices = @transform_3, window_bounds = array<i64: 1, 8, 512>}]} {
    %c0 = arith.constant 0 : index
    %c0_0 = arith.constant 0 : index
    %c0_1 = arith.constant 0 : index
    %0 = vector.load %arg1[%c0, %c0_0, %c0_1] : memref<1x8x512xbf16, #tpu.memory_space<vmem>>, vector<1x8x512xbf16>
    %1 = vector.shape_cast %0 : vector<1x8x512xbf16> to vector<8x512xbf16>
    %2 = arith.extf %1 : vector<8x512xbf16> to vector<8x512xf32>
    %c0_2 = arith.constant 0 : index
    %c0_3 = arith.constant 0 : index
    %3 = vector.load %arg2[%c0_2, %c0_3] : memref<8x1xf32, #tpu.memory_space<vmem>>, vector<8x1xf32>
    %4 = vector.broadcast %3 : vector<8x1xf32> to vector<8x512xf32>
    %5 = arith.mulf %2, %4 : vector<8x512xf32>
    %c0_4 = arith.constant 0 : index
    %c0_5 = arith.constant 0 : index
    %6 = vector.load %arg3[%c0_4, %c0_5] : memref<8x1xf32, #tpu.memory_space<vmem>>, vector<8x1xf32>
    %7 = vector.broadcast %6 : vector<8x1xf32> to vector<8x512xf32>
    %8 = arith.addf %5, %7 : vector<8x512xf32>
    %cst = arith.constant 0.000000e+00 : f32
    %9 = vector.broadcast %cst : f32 to vector<8x512xf32>
    %10 = arith.maximumf %8, %9 : vector<8x512xf32>
    %11 = vector.shape_cast %10 : vector<8x512xf32> to vector<1x8x512xf32>
    %c0_6 = arith.constant 0 : index
    %c0_7 = arith.constant 0 : index
    %c0_8 = arith.constant 0 : index
    %12 = vector.load %arg4[%c0_6, %c0_7, %c0_8] : memref<1x8x512xf32, #tpu.memory_space<vmem>>, vector<1x8x512xf32>
    tpu.vector_store %arg4[%c0_6, %c0_7, %c0_8], %11 {strides = array<i32>} : memref<1x8x512xf32, #tpu.memory_space<vmem>>, vector<1x8x512xf32>,
    return
  }
  func.func @transform_0(%arg0: i32) -> (i32, i32, i32) {
    %c0_i32 = arith.constant 0 : i32
    %c0_i32_0 = arith.constant 0 : i32
    %c0_i32_1 = arith.constant 0 : i32
    return %arg0, %c0_i32, %c0_i32_0 : i32, i32, i32
  }
  func.func @transform_1(%arg0: i32) -> (i32, i32) {
    %c0_i32 = arith.constant 0 : i32
    %c0_i32_0 = arith.constant 0 : i32
    %c0_i32_1 = arith.constant 0 : i32
    return %c0_i32, %c0_i32_0 : i32, i32
  }
  func.func @transform_2(%arg0: i32) -> (i32, i32) {
    %c0_i32 = arith.constant 0 : i32
    %c0_i32_0 = arith.constant 0 : i32
    %c0_i32_1 = arith.constant 0 : i32
    return %c0_i32, %c0_i32_0 : i32, i32
  }
  func.func @transform_3(%arg0: i32) -> (i32, i32, i32) {
    %c0_i32 = arith.constant 0 : i32
    %c0_i32_0 = arith.constant 0 : i32
    %c0_i32_1 = arith.constant 0 : i32
    return %arg0, %c0_i32, %c0_i32_0 : i32, i32, i32
  }
}

</mosaic_0001>

<llo_original>
// kernel: down_double_3d_conv.5
$region0: #{down_double_3d_conv.5}
  #allocation0 [shape = 'u32[]', space=smem, size = 0x4, offset = 0x4, fixed_abs, tag = 'smem constant byte address 0x4 - core index']
  #allocation1 [shape = 'u32[72,128]{1,0:T(1,128)}', space=vmem, size = 0x9000, scoped, tag = 'internal scratch']
  %s0 = inlined_call_operand.vmem [shape: bf16[2,8,512], index: 0, kind: input, shape index: {}]
  %s1 = inlined_call_operand.vmem [shape: f32[8,1], index: 1, kind: input, shape index: {}]
  %s2 = inlined_call_operand.vmem [shape: f32[8,1], index: 2, kind: input, shape index: {}]
  %s3 = inlined_call_operand.vmem [shape: f32[2,8,512], index: 3, kind: output, shape index: {}]
  %s4 = sld [smem:[#allocation0]]
  $region45: #{down_double_3d_conv.5} parent=0
    _
  %s6 = ssub.s32 1, %s4
  %s7 = scalar_select 0, %s6, %s4
  loop: start=0, step=1, limit=4
  $region2: #{down_double_3d_conv.5} parent=0 // loop_pre_header
    _
  $region3: #{down_double_3d_conv.5} parent=0 // loop_header
    %s9 = sphi 0, %s13
    %p10 = scmp.ge.s32.totalorder %s9, 4
    %s19 = sphi 0, %s21
    %s22 = sphi 0, %s19
    %s23 = sphi 0, %s22
    %s39 = sphi 0, %s23
    %s43 = sphi 0, %s43
    %s45 = sphi 0, %s43
    %s46 = sphi 0, %s45
    %s60 = sphi 0, %s46
    %s64 = sphi 0, %s64
    %s66 = sphi 0, %s64
    %s67 = sphi 0, %s66
    %s81 = sphi 0, %s67
    %s87 = sphi 0, %s89
    %s90 = sphi 0, %s87
    %s91 = sphi 0, %s90
    %s107 = sphi 0, %s91
  $region4: #{down_double_3d_conv.5} parent=0 // loop_header_branch
    %12 = sbr.rel (%p10) target = $region8
  $region5: #{down_double_3d_conv.5} parent=0 // loop_body
    %s14 = ssub.s32 %s9, 1
    %s15 = ssub.s32 %s9, 2
    %s16 = sadd.s32 %s9, 1
    %s17 = ssub.s32 %s9, %s16
    %p18 = scmp.eq.s32.totalorder %s17, 0
    %s20 = sadd.s32 %s19, 1
    %s21 = scalar_select %p18, %s19, %s20
    %p24 = pneg %p18
    %p25 = scmp.eq.s32.totalorder %s9, 1
    %p26 = por %p24, %p25
    %p27 = scmp.ne.s32.totalorder %s19, %s22
    %p28 = scmp.eq.s32.totalorder %s9, 0
    %p29 = por %p27, %p28
    %p30 = scmp.ne.s32.totalorder %s19, %s22
    %p31 = scmp.eq.s32.totalorder %s14, 1
    %p32 = por %p30, %p31
    %p33 = scmp.ne.s32.totalorder %s22, %s23
    %p34 = scmp.eq.s32.totalorder %s14, 0
    %p35 = por %p33, %p34
    %p36 = scmp.ne.s32.totalorder %s22, %s23
    %p37 = scmp.eq.s32.totalorder %s15, 1
    %p38 = por %p36, %p37
    %p40 = scmp.ne.s32.totalorder %s23, %s39
    %p41 = scmp.eq.s32.totalorder %s15, 0
    %p42 = por %p40, %p41
    %s44 = sadd.s32 %s43, 1
    %p47 = scmp.eq.s32.totalorder %s9, 1
    %p48 = scmp.ne.s32.totalorder %s43, %s45
    %p49 = scmp.eq.s32.totalorder %s9, 0
    %p50 = por %p48, %p49
    %p51 = scmp.ne.s32.totalorder %s43, %s45
    %p52 = scmp.eq.s32.totalorder %s14, 1
    %p53 = por %p51, %p52
    %p54 = scmp.ne.s32.totalorder %s45, %s46
    %p55 = scmp.eq.s32.totalorder %s14, 0
    %p56 = por %p54, %p55
    %p57 = scmp.ne.s32.totalorder %s45, %s46
    %p58 = scmp.eq.s32.totalorder %s15, 1
    %p59 = por %p57, %p58
    %p61 = scmp.ne.s32.totalorder %s46, %s60
    %p62 = scmp.eq.s32.totalorder %s15, 0
    %p63 = por %p61, %p62
    %s65 = sadd.s32 %s64, 1
    %p68 = scmp.eq.s32.totalorder %s9, 1
    %p69 = scmp.ne.s32.totalorder %s64, %s66
    %p70 = scmp.eq.s32.totalorder %s9, 0
    %p71 = por %p69, %p70
    %p72 = scmp.ne.s32.totalorder %s64, %s66
    %p73 = scmp.eq.s32.totalorder %s14, 1
    %p74 = por %p72, %p73
    %p75 = scmp.ne.s32.totalorder %s66, %s67
    %p76 = scmp.eq.s32.totalorder %s14, 0
    %p77 = por %p75, %p76
    %p78 = scmp.ne.s32.totalorder %s66, %s67
    %p79 = scmp.eq.s32.totalorder %s15, 1
    %p80 = por %p78, %p79
    %p82 = scmp.ne.s32.totalorder %s67, %s81
    %p83 = scmp.eq.s32.totalorder %s15, 0
    %p84 = por %p82, %p83
    %s85 = ssub.s32 %s9, %s16
    %p86 = scmp.eq.s32.totalorder %s85, 0
    %s88 = sadd.s32 %s87, 1
    %s89 = scalar_select %p86, %s87, %s88
    %p92 = pneg %p86
    %p93 = scmp.eq.s32.totalorder %s9, 1
    %p94 = por %p92, %p93
    %p95 = scmp.ne.s32.totalorder %s87, %s90
    %p96 = scmp.eq.s32.totalorder %s9, 0
    %p97 = por %p95, %p96
    %p98 = scmp.ne.s32.totalorder %s87, %s90
    %p99 = scmp.eq.s32.totalorder %s14, 1
    %p100 = por %p98, %p99
    %p101 = scmp.ne.s32.totalorder %s90, %s91
    %p102 = scmp.eq.s32.totalorder %s14, 0
    %p103 = por %p101, %p102
    %p104 = scmp.ne.s32.totalorder %s90, %s91
    %p105 = scmp.eq.s32.totalorder %s15, 1
    %p106 = por %p104, %p105
    %p108 = scmp.ne.s32.totalorder %s91, %s107
    %p109 = scmp.eq.s32.totalorder %s15, 0
    %p110 = por %p108, %p109
    %p111 = scmp.le.s32.totalorder 1, %s9
    %p112 = scmp.lt.s32.totalorder %s9, 3
    %p113 = pnand %p111, %p112
    %p114 = pneg %p113
    // Predicated region
    $region9: #{down_double_3d_conv.5} parent=5 // pred_check
      _
    $region10: #{down_double_3d_conv.5} parent=5 // pred_check_branch
      %116 = sbr.rel (%p113) target = $region12
    $region11: #{down_double_3d_conv.5} parent=5 // pred_region
      %s117 = ssub.s32 %s9, 1
      // Predicated region
      $region13: #{down_double_3d_conv.5} parent=11 // pred_check
        %p118 = pneg %p56
      $region14: #{down_double_3d_conv.5} parent=11 // pred_check_branch
        %120 = sbr.rel (%p118) target = $region16
      $region15: #{down_double_3d_conv.5} parent=11 // pred_region
        _
      $region16: #{down_double_3d_conv.5} parent=11 // pred_fallthru
        _
      // Predicated region
      $region17: #{down_double_3d_conv.5} parent=11 // pred_check
        %p121 = pneg %p77
      $region18: #{down_double_3d_conv.5} parent=11 // pred_check_branch
        %123 = sbr.rel (%p121) target = $region20
      $region19: #{down_double_3d_conv.5} parent=11 // pred_region
        _
      $region20: #{down_double_3d_conv.5} parent=11 // pred_fallthru
        _
    $region12: #{down_double_3d_conv.5} parent=5 // pred_fallthru
      _
    %p124 = scmp.lt.s32.totalorder %s9, 2
    // Predicated region
    $region21: #{down_double_3d_conv.5} parent=5 // pred_check
      %p125 = pneg %p124
    $region22: #{down_double_3d_conv.5} parent=5 // pred_check_branch
      %127 = sbr.rel (%p125) target = $region24
    $region23: #{down_double_3d_conv.5} parent=5 // pred_region
      // Predicated region
      $region25: #{down_double_3d_conv.5} parent=23 // pred_check
        %p128 = pneg %p29
      $region26: #{down_double_3d_conv.5} parent=23 // pred_check_branch
        %130 = sbr.rel (%p128) target = $region28
      $region27: #{down_double_3d_conv.5} parent=23 // pred_region
        %p131 = scmp.lt.s32.totalorder %s9, 1
        %s132 = scalar_select %p131, %s9, 1
        %s133 = smul.addr %s132, 4
        %s134 = smul.addr %s133, 4
        %s135 = scalar_lea.vmem %s0, %s134
      $region28: #{down_double_3d_conv.5} parent=23 // pred_fallthru
        _
    $region24: #{down_double_3d_conv.5} parent=5 // pred_fallthru
      _
    %p136 = scmp.le.s32.totalorder 1, %s9
    %p137 = scmp.lt.s32.totalorder %s9, 3
    %p138 = pnand %p136, %p137
    %p139 = pneg %p138
    // Predicated region
    $region29: #{down_double_3d_conv.5} parent=5 // pred_check
      _
    $region30: #{down_double_3d_conv.5} parent=5 // pred_check_branch
      %141 = sbr.rel (%p138) target = $region32
    $region31: #{down_double_3d_conv.5} parent=5 // pred_region
      %s142 = ssub.s32 %s9, 1
      %p143 = scmp.lt.s32.totalorder %s14, 1
      %s144 = scalar_select %p143, %s14, 1
      %s145 = smul.addr %s144, 4
      %s146 = smul.addr %s145, 4
      %s147 = scalar_lea.vmem %s0, %s146
      %p148 = pneg %p35
      %p149 = pneg %p32
      %p150 = pneg %p56
      %p151 = pneg %p53
      %p152 = pneg %p77
      %p153 = pneg %p74
      %p154 = pneg %p103
      %p155 = pneg %p100
      %p156 = scmp.lt.s32.totalorder %s14, 1
      %s157 = scalar_select %p156, %s14, 1
      %s158 = smul.addr %s157, 4
      %s159 = smul.addr %s158, 8
      %s160 = scalar_lea.vmem %s3, %s159
      %p161 = scmp.lt.s32.totalorder %s14, 1
      %s162 = scalar_select %p161, %s14, 1
      %s163 = smul.addr %s162, 4
      %s164 = smul.addr %s163, 4
      %s165 = scalar_lea.vmem %s0, %s164
      %p166 = scmp.lt.s32.totalorder %s14, 1
      %s167 = scalar_select %p166, %s14, 1
      %s168 = smul.addr %s167, 4
      %s169 = smul.addr %s168, 8
      %s170 = scalar_lea.vmem %s3, %s169
      %v171 = vld [vmem:[%s165] sm:$0xff]
      %v172 = vld [vmem:[%s165 + $0x8] sm:$0xff]
      %v173 = vunpack.c.l.bf16 %v171
      %v174 = vunpack.c.h.bf16 %v171
      %v175 = vunpack.c.l.bf16 %v172
      %v176 = vunpack.c.h.bf16 %v172
      %v177 = vld [vmem:[%s1] sm:$0xff]
      %179 = vset.pattern.permute.xlu0 0
      %180 = vperm.xlu0 %179, %v177
      %v181 = vpop.permute.xlu0 %180
      %v183 = vmul.f32 %v173, %v181
      %v184 = vmul.f32 %v174, %v181
      %v185 = vmul.f32 %v175, %v181
      %v186 = vmul.f32 %v176, %v181
      %v187 = vld [vmem:[%s2] sm:$0xff]
      %189 = vset.pattern.permute.xlu0 0
      %190 = vperm.xlu0 %189, %v187
      %v191 = vpop.permute.xlu0 %190
      %v193 = vadd.f32 %v183, %v191
      %v194 = vadd.f32 %v184, %v191
      %v195 = vadd.f32 %v185, %v191
      %v196 = vadd.f32 %v186, %v191
      %v197 = vmax.f32 %v193, 0.0
      %v198 = vmax.f32 %v194, 0.0
      %v199 = vmax.f32 %v195, 0.0
      %v200 = vmax.f32 %v196, 0.0
      %201 = vst [vmem:[%s170] sm:$0xff] %v197
      %202 = vst [vmem:[%s170 + $0x8] sm:$0xff] %v198
      %203 = vst [vmem:[%s170 + $0x10] sm:$0xff] %v199
      %204 = vst [vmem:[%s170 + $0x18] sm:$0xff] %v200
      %p205 = scmp.lt.s32.totalorder %s14, 1
      %s206 = scalar_select %p205, %s14, 1
      %s207 = smul.addr %s206, 4
      %s208 = smul.addr %s207, 8
      %s209 = scalar_lea.vmem %s3, %s208
      // Predicated region
      $region33: #{down_double_3d_conv.5} parent=31 // pred_check
        %p210 = pneg %p100
      $region34: #{down_double_3d_conv.5} parent=31 // pred_check_branch
        %212 = sbr.rel (%p210) target = $region36
      $region35: #{down_double_3d_conv.5} parent=31 // pred_region
        _
      $region36: #{down_double_3d_conv.5} parent=31 // pred_fallthru
        _
    $region32: #{down_double_3d_conv.5} parent=5 // pred_fallthru
      _
    %p213 = scmp.le.s32.totalorder 2, %s9
    // Predicated region
    $region37: #{down_double_3d_conv.5} parent=5 // pred_check
      %p214 = pneg %p213
    $region38: #{down_double_3d_conv.5} parent=5 // pred_check_branch
      %216 = sbr.rel (%p214) target = $region40
    $region39: #{down_double_3d_conv.5} parent=5 // pred_region
      %s217 = ssub.s32 %s9, 2
      // Predicated region
      $region41: #{down_double_3d_conv.5} parent=39 // pred_check
        %p218 = pneg %p106
      $region42: #{down_double_3d_conv.5} parent=39 // pred_check_branch
        %220 = sbr.rel (%p218) target = $region44
      $region43: #{down_double_3d_conv.5} parent=39 // pred_region
        %p221 = scmp.lt.s32.totalorder %s15, 1
        %s222 = scalar_select %p221, %s15, 1
        %s223 = smul.addr %s222, 4
        %s224 = smul.addr %s223, 8
        %s225 = scalar_lea.vmem %s3, %s224
      $region44: #{down_double_3d_conv.5} parent=39 // pred_fallthru
        _
    $region40: #{down_double_3d_conv.5} parent=5 // pred_fallthru
      _
  $region6: #{down_double_3d_conv.5} parent=0 // loop_footer
    %s13 = sadd.s32 1, %s9
  $region7: #{down_double_3d_conv.5} parent=0 // loop_footer_branch
    %8 = sbr.rel target = $region3
  $region8: #{down_double_3d_conv.5} parent=0 // loop_exit
    _

// kernel: down_double_3d_conv.4
$region0: #{down_double_3d_conv.4}
  #allocation0 [shape = 'u32[]', space=smem, size = 0x4, offset = 0x4, fixed_abs, tag = 'smem constant byte address 0x4 - core index']
  #allocation1 [shape = 'u32[72,128]{1,0:T(1,128)}', space=vmem, size = 0x9000, scoped, tag = 'internal scratch']
  %s0 = inlined_call_operand.vmem [shape: bf16[2,4,512], index: 0, kind: input, shape index: {}]
  %s1 = inlined_call_operand.vmem [shape: f32[27,1,512], index: 1, kind: input, shape index: {}]
  %s2 = inlined_call_operand.vmem [shape: f32[4,1], index: 2, kind: input, shape index: {}]
  %s3 = inlined_call_operand.vmem [shape: f32[4,1], index: 3, kind: input, shape index: {}]
  %s4 = inlined_call_operand.vmem [shape: bf16[8,128], index: 4, kind: input, shape index: {}]
  %s5 = inlined_call_operand.vmem [shape: bf16[2,8,512], index: 5, kind: output, shape index: {0}]
  %s6 = inlined_call_operand.vmem [shape: f32[2,8,2], index: 6, kind: output, shape index: {1}]
  %7 = xla_tuple %s5, %s6
  %s8 = sld [smem:[#allocation0]]
  $region61: #{down_double_3d_conv.4} parent=0
    _
  %s10 = ssub.s32 1, %s8
  %s11 = scalar_select 0, %s10, %s8
  loop: start=0, step=1, limit=4
  $region2: #{down_double_3d_conv.4} parent=0 // loop_pre_header
    _
  $region3: #{down_double_3d_conv.4} parent=0 // loop_header
    %s13 = sphi 0, %s17
    %p14 = scmp.ge.s32.totalorder %s13, 4
    %s23 = sphi 0, %s25
    %s26 = sphi 0, %s23
    %s27 = sphi 0, %s26
    %s43 = sphi 0, %s27
    %s47 = sphi 0, %s47
    %s49 = sphi 0, %s47
    %s50 = sphi 0, %s49
    %s64 = sphi 0, %s50
    %s68 = sphi 0, %s68
    %s70 = sphi 0, %s68
    %s71 = sphi 0, %s70
    %s85 = sphi 0, %s71
    %s89 = sphi 0, %s89
    %s91 = sphi 0, %s89
    %s92 = sphi 0, %s91
    %s106 = sphi 0, %s92
    %s110 = sphi 0, %s110
    %s112 = sphi 0, %s110
    %s113 = sphi 0, %s112
    %s127 = sphi 0, %s113
    %s133 = sphi 0, %s135
    %s136 = sphi 0, %s133
    %s137 = sphi 0, %s136
    %s153 = sphi 0, %s137
    %s159 = sphi 0, %s161
    %s162 = sphi 0, %s159
    %s163 = sphi 0, %s162
    %s179 = sphi 0, %s163
  $region4: #{down_double_3d_conv.4} parent=0 // loop_header_branch
    %16 = sbr.rel (%p14) target = $region8
  $region5: #{down_double_3d_conv.4} parent=0 // loop_body
    %s18 = ssub.s32 %s13, 1
    %s19 = ssub.s32 %s13, 2
    %s20 = sadd.s32 %s13, 1
    %s21 = ssub.s32 %s13, %s20
    %p22 = scmp.eq.s32.totalorder %s21, 0
    %s24 = sadd.s32 %s23, 1
    %s25 = scalar_select %p22, %s23, %s24
    %p28 = pneg %p22
    %p29 = scmp.eq.s32.totalorder %s13, 1
    %p30 = por %p28, %p29
    %p31 = scmp.ne.s32.totalorder %s23, %s26
    %p32 = scmp.eq.s32.totalorder %s13, 0
    %p33 = por %p31, %p32
    %p34 = scmp.ne.s32.totalorder %s23, %s26
    %p35 = scmp.eq.s32.totalorder %s18, 1
    %p36 = por %p34, %p35
    %p37 = scmp.ne.s32.totalorder %s26, %s27
    %p38 = scmp.eq.s32.totalorder %s18, 0
    %p39 = por %p37, %p38
    %p40 = scmp.ne.s32.totalorder %s26, %s27
    %p41 = scmp.eq.s32.totalorder %s19, 1
    %p42 = por %p40, %p41
    %p44 = scmp.ne.s32.totalorder %s27, %s43
    %p45 = scmp.eq.s32.totalorder %s19, 0
    %p46 = por %p44, %p45
    %s48 = sadd.s32 %s47, 1
    %p51 = scmp.eq.s32.totalorder %s13, 1
    %p52 = scmp.ne.s32.totalorder %s47, %s49
    %p53 = scmp.eq.s32.totalorder %s13, 0
    %p54 = por %p52, %p53
    %p55 = scmp.ne.s32.totalorder %s47, %s49
    %p56 = scmp.eq.s32.totalorder %s18, 1
    %p57 = por %p55, %p56
    %p58 = scmp.ne.s32.totalorder %s49, %s50
    %p59 = scmp.eq.s32.totalorder %s18, 0
    %p60 = por %p58, %p59
    %p61 = scmp.ne.s32.totalorder %s49, %s50
    %p62 = scmp.eq.s32.totalorder %s19, 1
    %p63 = por %p61, %p62
    %p65 = scmp.ne.s32.totalorder %s50, %s64
    %p66 = scmp.eq.s32.totalorder %s19, 0
    %p67 = por %p65, %p66
    %s69 = sadd.s32 %s68, 1
    %p72 = scmp.eq.s32.totalorder %s13, 1
    %p73 = scmp.ne.s32.totalorder %s68, %s70
    %p74 = scmp.eq.s32.totalorder %s13, 0
    %p75 = por %p73, %p74
    %p76 = scmp.ne.s32.totalorder %s68, %s70
    %p77 = scmp.eq.s32.totalorder %s18, 1
    %p78 = por %p76, %p77
    %p79 = scmp.ne.s32.totalorder %s70, %s71
    %p80 = scmp.eq.s32.totalorder %s18, 0
    %p81 = por %p79, %p80
    %p82 = scmp.ne.s32.totalorder %s70, %s71
    %p83 = scmp.eq.s32.totalorder %s19, 1
    %p84 = por %p82, %p83
    %p86 = scmp.ne.s32.totalorder %s71, %s85
    %p87 = scmp.eq.s32.totalorder %s19, 0
    %p88 = por %p86, %p87
    %s90 = sadd.s32 %s89, 1
    %p93 = scmp.eq.s32.totalorder %s13, 1
    %p94 = scmp.ne.s32.totalorder %s89, %s91
    %p95 = scmp.eq.s32.totalorder %s13, 0
    %p96 = por %p94, %p95
    %p97 = scmp.ne.s32.totalorder %s89, %s91
    %p98 = scmp.eq.s32.totalorder %s18, 1
    %p99 = por %p97, %p98
    %p100 = scmp.ne.s32.totalorder %s91, %s92
    %p101 = scmp.eq.s32.totalorder %s18, 0
    %p102 = por %p100, %p101
    %p103 = scmp.ne.s32.totalorder %s91, %s92
    %p104 = scmp.eq.s32.totalorder %s19, 1
    %p105 = por %p103, %p104
    %p107 = scmp.ne.s32.totalorder %s92, %s106
    %p108 = scmp.eq.s32.totalorder %s19, 0
    %p109 = por %p107, %p108
    %s111 = sadd.s32 %s110, 1
    %p114 = scmp.eq.s32.totalorder %s13, 1
    %p115 = scmp.ne.s32.totalorder %s110, %s112
    %p116 = scmp.eq.s32.totalorder %s13, 0
    %p117 = por %p115, %p116
    %p118 = scmp.ne.s32.totalorder %s110, %s112
    %p119 = scmp.eq.s32.totalorder %s18, 1
    %p120 = por %p118, %p119
    %p121 = scmp.ne.s32.totalorder %s112, %s113
    %p122 = scmp.eq.s32.totalorder %s18, 0
    %p123 = por %p121, %p122
    %p124 = scmp.ne.s32.totalorder %s112, %s113
    %p125 = scmp.eq.s32.totalorder %s19, 1
    %p126 = por %p124, %p125
    %p128 = scmp.ne.s32.totalorder %s113, %s127
    %p129 = scmp.eq.s32.totalorder %s19, 0
    %p130 = por %p128, %p129
    %s131 = ssub.s32 %s13, %s20
    %p132 = scmp.eq.s32.totalorder %s131, 0
    %s134 = sadd.s32 %s133, 1
    %s135 = scalar_select %p132, %s133, %s134
    %p138 = pneg %p132
    %p139 = scmp.eq.s32.totalorder %s13, 1
    %p140 = por %p138, %p139
    %p141 = scmp.ne.s32.totalorder %s133, %s136
    %p142 = scmp.eq.s32.totalorder %s13, 0
    %p143 = por %p141, %p142
    %p144 = scmp.ne.s32.totalorder %s133, %s136
    %p145 = scmp.eq.s32.totalorder %s18, 1
    %p146 = por %p144, %p145
    %p147 = scmp.ne.s32.totalorder %s136, %s137
    %p148 = scmp.eq.s32.totalorder %s18, 0
    %p149 = por %p147, %p148
    %p150 = scmp.ne.s32.totalorder %s136, %s137
    %p151 = scmp.eq.s32.totalorder %s19, 1
    %p152 = por %p150, %p151
    %p154 = scmp.ne.s32.totalorder %s137, %s153
    %p155 = scmp.eq.s32.totalorder %s19, 0
    %p156 = por %p154, %p155
    %s157 = ssub.s32 %s13, %s20
    %p158 = scmp.eq.s32.totalorder %s157, 0
    %s160 = sadd.s32 %s159, 1
    %s161 = scalar_select %p158, %s159, %s160
    %p164 = pneg %p158
    %p165 = scmp.eq.s32.totalorder %s13, 1
    %p166 = por %p164, %p165
    %p167 = scmp.ne.s32.totalorder %s159, %s162
    %p168 = scmp.eq.s32.totalorder %s13, 0
    %p169 = por %p167, %p168
    %p170 = scmp.ne.s32.totalorder %s159, %s162
    %p171 = scmp.eq.s32.totalorder %s18, 1
    %p172 = por %p170, %p171
    %p173 = scmp.ne.s32.totalorder %s162, %s163
    %p174 = scmp.eq.s32.totalorder %s18, 0
    %p175 = por %p173, %p174
    %p176 = scmp.ne.s32.totalorder %s162, %s163
    %p177 = scmp.eq.s32.totalorder %s19, 1
    %p178 = por %p176, %p177
    %p180 = scmp.ne.s32.totalorder %s163, %s179
    %p181 = scmp.eq.s32.totalorder %s19, 0
    %p182 = por %p180, %p181
    %p183 = scmp.le.s32.totalorder 1, %s13
    %p184 = scmp.lt.s32.totalorder %s13, 3
    %p185 = pnand %p183, %p184
    %p186 = pneg %p185
    // Predicated region
    $region9: #{down_double_3d_conv.4} parent=5 // pred_check
      _
    $region10: #{down_double_3d_conv.4} parent=5 // pred_check_branch
      %188 = sbr.rel (%p185) target = $region12
    $region11: #{down_double_3d_conv.4} parent=5 // pred_region
      %s189 = ssub.s32 %s13, 1
      // Predicated region
      $region13: #{down_double_3d_conv.4} parent=11 // pred_check
        %p190 = pneg %p60
      $region14: #{down_double_3d_conv.4} parent=11 // pred_check_branch
        %192 = sbr.rel (%p190) target = $region16
      $region15: #{down_double_3d_conv.4} parent=11 // pred_region
        _
      $region16: #{down_double_3d_conv.4} parent=11 // pred_fallthru
        _
      // Predicated region
      $region17: #{down_double_3d_conv.4} parent=11 // pred_check
        %p193 = pneg %p81
      $region18: #{down_double_3d_conv.4} parent=11 // pred_check_branch
        %195 = sbr.rel (%p193) target = $region20
      $region19: #{down_double_3d_conv.4} parent=11 // pred_region
        _
      $region20: #{down_double_3d_conv.4} parent=11 // pred_fallthru
        _
      // Predicated region
      $region21: #{down_double_3d_conv.4} parent=11 // pred_check
        %p196 = pneg %p102
      $region22: #{down_double_3d_conv.4} parent=11 // pred_check_branch
        %198 = sbr.rel (%p196) target = $region24
      $region23: #{down_double_3d_conv.4} parent=11 // pred_region
        _
      $region24: #{down_double_3d_conv.4} parent=11 // pred_fallthru
        _
      // Predicated region
      $region25: #{down_double_3d_conv.4} parent=11 // pred_check
        %p199 = pneg %p123
      $region26: #{down_double_3d_conv.4} parent=11 // pred_check_branch
        %201 = sbr.rel (%p199) target = $region28
      $region27: #{down_double_3d_conv.4} parent=11 // pred_region
        _
      $region28: #{down_double_3d_conv.4} parent=11 // pred_fallthru
        _
    $region12: #{down_double_3d_conv.4} parent=5 // pred_fallthru
      _
    %p202 = scmp.lt.s32.totalorder %s13, 2
    // Predicated region
    $region29: #{down_double_3d_conv.4} parent=5 // pred_check
      %p203 = pneg %p202
    $region30: #{down_double_3d_conv.4} parent=5 // pred_check_branch
      %205 = sbr.rel (%p203) target = $region32
    $region31: #{down_double_3d_conv.4} parent=5 // pred_region
      // Predicated region
      $region33: #{down_double_3d_conv.4} parent=31 // pred_check
        %p206 = pneg %p33
      $region34: #{down_double_3d_conv.4} parent=31 // pred_check_branch
        %208 = sbr.rel (%p206) target = $region36
      $region35: #{down_double_3d_conv.4} parent=31 // pred_region
        %p209 = scmp.lt.s32.totalorder %s13, 1
        %s210 = scalar_select %p209, %s13, 1
        %s211 = smul.addr %s210, 4
        %s212 = smul.addr %s211, 2
        %s213 = scalar_lea.vmem %s0, %s212
      $region36: #{down_double_3d_conv.4} parent=31 // pred_fallthru
        _
    $region32: #{down_double_3d_conv.4} parent=5 // pred_fallthru
      _
    %p214 = scmp.le.s32.totalorder 1, %s13
    %p215 = scmp.lt.s32.totalorder %s13, 3
    %p216 = pnand %p214, %p215
    %p217 = pneg %p216
    // Predicated region
    $region37: #{down_double_3d_conv.4} parent=5 // pred_check
      _
    $region38: #{down_double_3d_conv.4} parent=5 // pred_check_branch
      %219 = sbr.rel (%p216) target = $region40
    $region39: #{down_double_3d_conv.4} parent=5 // pred_region
      %s220 = ssub.s32 %s13, 1
      %p221 = scmp.lt.s32.totalorder %s18, 1
      %s222 = scalar_select %p221, %s18, 1
      %s223 = smul.addr %s222, 4
      %s224 = smul.addr %s223, 2
      %s225 = scalar_lea.vmem %s0, %s224
      %p226 = pneg %p39
      %p227 = pneg %p36
      %p228 = pneg %p60
      %p229 = pneg %p57
      %p230 = pneg %p81
      %p231 = pneg %p78
      %p232 = pneg %p102
      %p233 = pneg %p99
      %p234 = pneg %p123
      %p235 = pneg %p120
      %p236 = pneg %p149
      %p237 = pneg %p146
      %p238 = scmp.lt.s32.totalorder %s18, 1
      %s239 = scalar_select %p238, %s18, 1
      %s240 = smul.addr %s239, 4
      %s241 = smul.addr %s240, 4
      %s242 = scalar_lea.vmem %s5, %s241
      %p243 = pneg %p175
      %p244 = pneg %p172
      %p245 = scmp.lt.s32.totalorder %s18, 1
      %s246 = scalar_select %p245, %s18, 1
      %s247 = smul.addr %s246, 8
      %s248 = scalar_lea.vmem %s6, %s247
      %p249 = scmp.lt.s32.totalorder %s18, 1
      %s250 = scalar_select %p249, %s18, 1
      %s251 = smul.addr %s250, 4
      %s252 = smul.addr %s251, 2
      %s253 = scalar_lea.vmem %s0, %s252
      %p254 = scmp.lt.s32.totalorder %s18, 1
      %s255 = scalar_select %p254, %s18, 1
      %s256 = smul.addr %s255, 4
      %s257 = smul.addr %s256, 4
      %s258 = scalar_lea.vmem %s5, %s257
      %p259 = scmp.lt.s32.totalorder %s18, 1
      %s260 = scalar_select %p259, %s18, 1
      %s261 = smul.addr %s260, 8
      %s262 = scalar_lea.vmem %s6, %s261
      %v264 = vld [vmem:[%s253] sm:$0xff]
      %v265 = vunpack.c.l.bf16 %v264
      %v266 = vunpack.c.h.bf16 %v264
      %v267 = vld [vmem:[%s2] sm:$0xf]
      %269 = vset.pattern.permute.xlu0 0
      %270 = vperm.xlu0 %269, %v267
      %v271 = vpop.permute.xlu0 %270
      %v273 = vunpack.c.l.s4 839922192
      %v274 = vunpack.c.0.s8 %v273
      %v275 = vperm.slane %v271, %v274
      %v277 = vmul.f32 %v265, %v275
      %v278 = vmul.f32 %v266, %v275
      %v279 = vld [vmem:[%s3] sm:$0xf]
      %281 = vset.pattern.permute.xlu0 0
      %282 = vperm.xlu0 %281, %v279
      %v283 = vpop.permute.xlu0 %282
      %v285 = vunpack.c.l.s4 839922192
      %v286 = vunpack.c.0.s8 %v285
      %v287 = vperm.slane %v283, %v286
      %v289 = vadd.f32 %v277, %v287
      %v290 = vadd.f32 %v278, %v287
      %v291 = vmax.f32 %v289, 0.0
      %v292 = vmax.f32 %v290, 0.0
      %v293 = vld [vmem:[%s1] sm:$0xf]
      %v294 = vld [vmem:[%s1 + $0x4] sm:$0xf]
      %v295 = vld [vmem:[%s1 + $0x8] sm:$0xf]
      %v296 = vld [vmem:[%s1 + $0xc] sm:$0xf]
      %v297 = vld [vmem:[%s1 + $0x10] sm:$0xf]
      %v298 = vld [vmem:[%s1 + $0x14] sm:$0xf]
      %v299 = vld [vmem:[%s1 + $0x18] sm:$0xf]
      %v300 = vld [vmem:[%s1 + $0x1c] sm:$0xf]
      %v301 = vld [vmem:[%s1 + $0x20] sm:$0xf]
      %v302 = vld [vmem:[%s1 + $0x24] sm:$0xf]
      %v303 = vld [vmem:[%s1 + $0x28] sm:$0xf]
      %v304 = vld [vmem:[%s1 + $0x2c] sm:$0xf]
      %v305 = vld [vmem:[%s1 + $0x30] sm:$0xf]
      %v306 = vld [vmem:[%s1 + $0x38] sm:$0xf]
      %v307 = vld [vmem:[%s1 + $0x3c] sm:$0xf]
      %v308 = vld [vmem:[%s1 + $0x40] sm:$0xf]
      %v309 = vld [vmem:[%s1 + $0x44] sm:$0xf]
      %v310 = vld [vmem:[%s1 + $0x48] sm:$0xf]
      %v311 = vld [vmem:[%s1 + $0x4c] sm:$0xf]
      %v312 = vld [vmem:[%s1 + $0x50] sm:$0xf]
      %v313 = vld [vmem:[%s1 + $0x54] sm:$0xf]
      %v314 = vld [vmem:[%s1 + $0x58] sm:$0xf]
      %v315 = vld [vmem:[%s1 + $0x5c] sm:$0xf]
      %v316 = vld [vmem:[%s1 + $0x60] sm:$0xf]
      %v317 = vld [vmem:[%s1 + $0x64] sm:$0xf]
      %v318 = vld [vmem:[%s1 + $0x68] sm:$0xf]
      %321 = vst [vmem:[#allocation1] ss:$2 sm:$0xff] %v291
      %s322 = scalar_lea.vmem [#allocation1], 16
      %323 = vst [vmem:[%s322] ss:$2 sm:$0xff] %v292
      %v324 = vld.sshfl [vmem:[#allocation1] sm:$0xff pattern:$0x75316420]
      %v325 = vld.sshfl [vmem:[#allocation1 + $0x8] sm:$0xff pattern:$0x75316420]
      %v326 = vld.sshfl [vmem:[#allocation1 + $0x10] sm:$0xff pattern:$0x75316420]
      %v327 = vld.sshfl [vmem:[#allocation1 + $0x18] sm:$0xff pattern:$0x75316420]
      %332 = vrot.lane.b32.xlu0 %v324, 73
      %v333 = vpop.permute.xlu0 %332
      %334 = vrot.lane.b32.xlu0 %v325, 73
      %v335 = vpop.permute.xlu0 %334
      %336 = vrot.lane.b32.xlu0 %v326, 73
      %v337 = vpop.permute.xlu0 %336
      %338 = vrot.lane.b32.xlu0 %v327, 73
      %v339 = vpop.permute.xlu0 %338
      %v340 = vlaneseq
      %v341 = vand.u32 %v340, 127
      %vm342 = vcmp.lt.s32.totalorder %v341, 73
      %v343 = vsel %vm342, %v337, %v339
      %v344 = vsel %vm342, %v335, %v337
      %v345 = vsel %vm342, %v333, %v335
      %v346 = vsel %vm342, %v339, %v333
      %v348 = vperm.slane %v293, 0
      %v349 = vperm.slane %v293, 1
      %v350 = vperm.slane %v293, 2
      %v351 = vperm.slane %v293, 3
      %v356 = vmul.f32 %v346, %v348
      %v357 = vmul.f32 %v345, %v349
      %v358 = vmul.f32 %v344, %v350
      %v359 = vmul.f32 %v343, %v351
      %v360 = vpack.c.bf16 %v357, %v356
      %v361 = vpack.c.bf16 %v359, %v358
      %362 = vst [vmem:[#allocation1] ss:$2 sm:$0xff] %v291
      %s363 = scalar_lea.vmem [#allocation1], 16
      %364 = vst [vmem:[%s363] ss:$2 sm:$0xff] %v292
      %v365 = vld.sshfl [vmem:[#allocation1] sm:$0xff pattern:$0x75316420]
      %v366 = vld.sshfl [vmem:[#allocation1 + $0x8] sm:$0xff pattern:$0x75316420]
      %v367 = vld.sshfl [vmem:[#allocation1 + $0x10] sm:$0xff pattern:$0x75316420]
      %v368 = vld.sshfl [vmem:[#allocation1 + $0x18] sm:$0xff pattern:$0x75316420]
      %373 = vrot.lane.b32.xlu0 %v365, 72
      %v374 = vpop.permute.xlu0 %373
      %375 = vrot.lane.b32.xlu0 %v366, 72
      %v376 = vpop.permute.xlu0 %375
      %377 = vrot.lane.b32.xlu0 %v367, 72
      %v378 = vpop.permute.xlu0 %377
      %379 = vrot.lane.b32.xlu0 %v368, 72
      %v380 = vpop.permute.xlu0 %379
      %vm381 = vcmp.lt.s32.totalorder %v341, 72
      %v382 = vsel %vm381, %v378, %v380
      %v383 = vsel %vm381, %v376, %v378
      %v384 = vsel %vm381, %v374, %v376
      %v385 = vsel %vm381, %v380, %v374
      %v387 = vperm.slane %v294, 0
      %v388 = vperm.slane %v294, 1
      %v389 = vperm.slane %v294, 2
      %v390 = vperm.slane %v294, 3
      %v395 = vmul.f32 %v385, %v387
      %v396 = vmul.f32 %v384, %v388
      %v397 = vmul.f32 %v383, %v389
      %v398 = vmul.f32 %v382, %v390
      %v399 = vpack.c.bf16 %v396, %v395
      %v400 = vpack.c.bf16 %v398, %v397
      %401 = vst [vmem:[#allocation1] ss:$2 sm:$0xff] %v291
      %s402 = scalar_lea.vmem [#allocation1], 16
      %403 = vst [vmem:[%s402] ss:$2 sm:$0xff] %v292
      %v404 = vld.sshfl [vmem:[#allocation1] sm:$0xff pattern:$0x75316420]
      %v405 = vld.sshfl [vmem:[#allocation1 + $0x8] sm:$0xff pattern:$0x75316420]
      %v406 = vld.sshfl [vmem:[#allocation1 + $0x10] sm:$0xff pattern:$0x75316420]
      %v407 = vld.sshfl [vmem:[#allocation1 + $0x18] sm:$0xff pattern:$0x75316420]
      %412 = vrot.lane.b32.xlu0 %v404, 71
      %v413 = vpop.permute.xlu0 %412
      %414 = vrot.lane.b32.xlu0 %v405, 71
      %v415 = vpop.permute.xlu0 %414
      %416 = vrot.lane.b32.xlu0 %v406, 71
      %v417 = vpop.permute.xlu0 %416
      %418 = vrot.lane.b32.xlu0 %v407, 71
      %v419 = vpop.permute.xlu0 %418
      %vm420 = vcmp.lt.s32.totalorder %v341, 71
      %v421 = vsel %vm420, %v417, %v419
      %v422 = vsel %vm420, %v415, %v417
      %v423 = vsel %vm420, %v413, %v415
      %v424 = vsel %vm420, %v419, %v413
      %v426 = vperm.slane %v295, 0
      %v427 = vperm.slane %v295, 1
      %v428 = vperm.slane %v295, 2
      %v429 = vperm.slane %v295, 3
      %v434 = vmul.f32 %v424, %v426
      %v435 = vmul.f32 %v423, %v427
      %v436 = vmul.f32 %v422, %v428
      %v437 = vmul.f32 %v421, %v429
      %v438 = vpack.c.bf16 %v435, %v434
      %v439 = vpack.c.bf16 %v437, %v436
      %440 = vst [vmem:[#allocation1] ss:$2 sm:$0xff] %v291
      %s441 = scalar_lea.vmem [#allocation1], 16
      %442 = vst [vmem:[%s441] ss:$2 sm:$0xff] %v292
      %v443 = vld.sshfl [vmem:[#allocation1] sm:$0xff pattern:$0x75316420]
      %v444 = vld.sshfl [vmem:[#allocation1 + $0x8] sm:$0xff pattern:$0x75316420]
      %v445 = vld.sshfl [vmem:[#allocation1 + $0x10] sm:$0xff pattern:$0x75316420]
      %v446 = vld.sshfl [vmem:[#allocation1 + $0x18] sm:$0xff pattern:$0x75316420]
      %451 = vrot.lane.b32.xlu0 %v443, 65
      %v452 = vpop.permute.xlu0 %451
      %453 = vrot.lane.b32.xlu0 %v444, 65
      %v454 = vpop.permute.xlu0 %453
      %455 = vrot.lane.b32.xlu0 %v445, 65
      %v456 = vpop.permute.xlu0 %455
      %457 = vrot.lane.b32.xlu0 %v446, 65
      %v458 = vpop.permute.xlu0 %457
      %vm459 = vcmp.lt.s32.totalorder %v341, 65
      %v460 = vsel %vm459, %v456, %v458
      %v461 = vsel %vm459, %v454, %v456
      %v462 = vsel %vm459, %v452, %v454
      %v463 = vsel %vm459, %v458, %v452
      %v465 = vperm.slane %v296, 0
      %v466 = vperm.slane %v296, 1
      %v467 = vperm.slane %v296, 2
      %v468 = vperm.slane %v296, 3
      %v473 = vmul.f32 %v463, %v465
      %v474 = vmul.f32 %v462, %v466
      %v475 = vmul.f32 %v461, %v467
      %v476 = vmul.f32 %v460, %v468
      %v477 = vpack.c.bf16 %v474, %v473
      %v478 = vpack.c.bf16 %v476, %v475
      %479 = vst [vmem:[#allocation1] ss:$2 sm:$0xff] %v291
      %s480 = scalar_lea.vmem [#allocation1], 16
      %481 = vst [vmem:[%s480] ss:$2 sm:$0xff] %v292
      %v482 = vld.sshfl [vmem:[#allocation1] sm:$0xff pattern:$0x75316420]
      %v483 = vld.sshfl [vmem:[#allocation1 + $0x8] sm:$0xff pattern:$0x75316420]
      %v484 = vld.sshfl [vmem:[#allocation1 + $0x10] sm:$0xff pattern:$0x75316420]
      %v485 = vld.sshfl [vmem:[#allocation1 + $0x18] sm:$0xff pattern:$0x75316420]
      %490 = vrot.lane.b32.xlu0 %v482, 64
      %v491 = vpop.permute.xlu0 %490
      %492 = vrot.lane.b32.xlu0 %v483, 64
      %v493 = vpop.permute.xlu0 %492
      %494 = vrot.lane.b32.xlu0 %v484, 64
      %v495 = vpop.permute.xlu0 %494
      %496 = vrot.lane.b32.xlu0 %v485, 64
      %v497 = vpop.permute.xlu0 %496
      %vm498 = vcmp.lt.s32.totalorder %v341, 64
      %v499 = vsel %vm498, %v495, %v497
      %v500 = vsel %vm498, %v493, %v495
      %v501 = vsel %vm498, %v491, %v493
      %v502 = vsel %vm498, %v497, %v491
      %v504 = vperm.slane %v297, 0
      %v505 = vperm.slane %v297, 1
      %v506 = vperm.slane %v297, 2
      %v507 = vperm.slane %v297, 3
      %v512 = vmul.f32 %v502, %v504
      %v513 = vmul.f32 %v501, %v505
      %v514 = vmul.f32 %v500, %v506
      %v515 = vmul.f32 %v499, %v507
      %v516 = vpack.c.bf16 %v513, %v512
      %v517 = vpack.c.bf16 %v515, %v514
      %518 = vst [vmem:[#allocation1] ss:$2 sm:$0xff] %v291
      %s519 = scalar_lea.vmem [#allocation1], 16
      %520 = vst [vmem:[%s519] ss:$2 sm:$0xff] %v292
      %v521 = vld.sshfl [vmem:[#allocation1] sm:$0xff pattern:$0x75316420]
      %v522 = vld.sshfl [vmem:[#allocation1 + $0x8] sm:$0xff pattern:$0x75316420]
      %v523 = vld.sshfl [vmem:[#allocation1 + $0x10] sm:$0xff pattern:$0x75316420]
      %v524 = vld.sshfl [vmem:[#allocation1 + $0x18] sm:$0xff pattern:$0x75316420]
      %529 = vrot.lane.b32.xlu0 %v521, 63
      %v530 = vpop.permute.xlu0 %529
      %531 = vrot.lane.b32.xlu0 %v522, 63
      %v532 = vpop.permute.xlu0 %531
      %533 = vrot.lane.b32.xlu0 %v523, 63
      %v534 = vpop.permute.xlu0 %533
      %535 = vrot.lane.b32.xlu0 %v524, 63
      %v536 = vpop.permute.xlu0 %535
      %vm537 = vcmp.lt.s32.totalorder %v341, 63
      %v538 = vsel %vm537, %v534, %v536
      %v539 = vsel %vm537, %v532, %v534
      %v540 = vsel %vm537, %v530, %v532
      %v541 = vsel %vm537, %v536, %v530
      %v543 = vperm.slane %v298, 0
      %v544 = vperm.slane %v298, 1
      %v545 = vperm.slane %v298, 2
      %v546 = vperm.slane %v298, 3
      %v551 = vmul.f32 %v541, %v543
      %v552 = vmul.f32 %v540, %v544
      %v553 = vmul.f32 %v539, %v545
      %v554 = vmul.f32 %v538, %v546
      %v555 = vpack.c.bf16 %v552, %v551
      %v556 = vpack.c.bf16 %v554, %v553
      %557 = vst [vmem:[#allocation1] ss:$2 sm:$0xff] %v291
      %s558 = scalar_lea.vmem [#allocation1], 16
      %559 = vst [vmem:[%s558] ss:$2 sm:$0xff] %v292
      %v560 = vld.sshfl [vmem:[#allocation1] sm:$0xff pattern:$0x75316420]
      %v561 = vld.sshfl [vmem:[#allocation1 + $0x8] sm:$0xff pattern:$0x75316420]
      %v562 = vld.sshfl [vmem:[#allocation1 + $0x10] sm:$0xff pattern:$0x75316420]
      %v563 = vld.sshfl [vmem:[#allocation1 + $0x18] sm:$0xff pattern:$0x75316420]
      %568 = vrot.lane.b32.xlu0 %v560, 57
      %v569 = vpop.permute.xlu0 %568
      %570 = vrot.lane.b32.xlu0 %v561, 57
      %v571 = vpop.permute.xlu0 %570
      %572 = vrot.lane.b32.xlu0 %v562, 57
      %v573 = vpop.permute.xlu0 %572
      %574 = vrot.lane.b32.xlu0 %v563, 57
      %v575 = vpop.permute.xlu0 %574
      %vm576 = vcmp.lt.s32.totalorder %v341, 57
      %v577 = vsel %vm576, %v573, %v575
      %v578 = vsel %vm576, %v571, %v573
      %v579 = vsel %vm576, %v569, %v571
      %v580 = vsel %vm576, %v575, %v569
      %v582 = vperm.slane %v299, 0
      %v583 = vperm.slane %v299, 1
      %v584 = vperm.slane %v299, 2
      %v585 = vperm.slane %v299, 3
      %v590 = vmul.f32 %v580, %v582
      %v591 = vmul.f32 %v579, %v583
      %v592 = vmul.f32 %v578, %v584
      %v593 = vmul.f32 %v577, %v585
      %v594 = vpack.c.bf16 %v591, %v590
      %v595 = vpack.c.bf16 %v593, %v592
      %596 = vst [vmem:[#allocation1] ss:$2 sm:$0xff] %v291
      %s597 = scalar_lea.vmem [#allocation1], 16
      %598 = vst [vmem:[%s597] ss:$2 sm:$0xff] %v292
      %v599 = vld.sshfl [vmem:[#allocation1] sm:$0xff pattern:$0x75316420]
      %v600 = vld.sshfl [vmem:[#allocation1 + $0x8] sm:$0xff pattern:$0x75316420]
      %v601 = vld.sshfl [vmem:[#allocation1 + $0x10] sm:$0xff pattern:$0x75316420]
      %v602 = vld.sshfl [vmem:[#allocation1 + $0x18] sm:$0xff pattern:$0x75316420]
      %607 = vrot.lane.b32.xlu0 %v599, 56
      %v608 = vpop.permute.xlu0 %607
      %609 = vrot.lane.b32.xlu0 %v600, 56
      %v610 = vpop.permute.xlu0 %609
      %611 = vrot.lane.b32.xlu0 %v601, 56
      %v612 = vpop.permute.xlu0 %611
      %613 = vrot.lane.b32.xlu0 %v602, 56
      %v614 = vpop.permute.xlu0 %613
      %vm615 = vcmp.lt.s32.totalorder %v341, 56
      %v616 = vsel %vm615, %v612, %v614
      %v617 = vsel %vm615, %v610, %v612
      %v618 = vsel %vm615, %v608, %v610
      %v619 = vsel %vm615, %v614, %v608
      %v621 = vperm.slane %v300, 0
      %v622 = vperm.slane %v300, 1
      %v623 = vperm.slane %v300, 2
      %v624 = vperm.slane %v300, 3
      %v629 = vmul.f32 %v619, %v621
      %v630 = vmul.f32 %v618, %v622
      %v631 = vmul.f32 %v617, %v623
      %v632 = vmul.f32 %v616, %v624
      %v633 = vpack.c.bf16 %v630, %v629
      %v634 = vpack.c.bf16 %v632, %v631
      %635 = vst [vmem:[#allocation1] ss:$2 sm:$0xff] %v291
      %s636 = scalar_lea.vmem [#allocation1], 16
      %637 = vst [vmem:[%s636] ss:$2 sm:$0xff] %v292
      %v638 = vld.sshfl [vmem:[#allocation1] sm:$0xff pattern:$0x75316420]
      %v639 = vld.sshfl [vmem:[#allocation1 + $0x8] sm:$0xff pattern:$0x75316420]
      %v640 = vld.sshfl [vmem:[#allocation1 + $0x10] sm:$0xff pattern:$0x75316420]
      %v641 = vld.sshfl [vmem:[#allocation1 + $0x18] sm:$0xff pattern:$0x75316420]
      %646 = vrot.lane.b32.xlu0 %v638, 55
      %v647 = vpop.permute.xlu0 %646
      %648 = vrot.lane.b32.xlu0 %v639, 55
      %v649 = vpop.permute.xlu0 %648
      %650 = vrot.lane.b32.xlu0 %v640, 55
      %v651 = vpop.permute.xlu0 %650
      %652 = vrot.lane.b32.xlu0 %v641, 55
      %v653 = vpop.permute.xlu0 %652
      %vm654 = vcmp.lt.s32.totalorder %v341, 55
      %v655 = vsel %vm654, %v651, %v653
      %v656 = vsel %vm654, %v649, %v651
      %v657 = vsel %vm654, %v647, %v649
      %v658 = vsel %vm654, %v653, %v647
      %v660 = vperm.slane %v301, 0
      %v661 = vperm.slane %v301, 1
      %v662 = vperm.slane %v301, 2
      %v663 = vperm.slane %v301, 3
      %v668 = vmul.f32 %v658, %v660
      %v669 = vmul.f32 %v657, %v661
      %v670 = vmul.f32 %v656, %v662
      %v671 = vmul.f32 %v655, %v663
      %v672 = vpack.c.bf16 %v669, %v668
      %v673 = vpack.c.bf16 %v671, %v670
      %674 = vst [vmem:[#allocation1] ss:$2 sm:$0xff] %v291
      %s675 = scalar_lea.vmem [#allocation1], 16
      %676 = vst [vmem:[%s675] ss:$2 sm:$0xff] %v292
      %v677 = vld.sshfl [vmem:[#allocation1] sm:$0xff pattern:$0x75316420]
      %v678 = vld.sshfl [vmem:[#allocation1 + $0x8] sm:$0xff pattern:$0x75316420]
      %v679 = vld.sshfl [vmem:[#allocation1 + $0x10] sm:$0xff pattern:$0x75316420]
      %v680 = vld.sshfl [vmem:[#allocation1 + $0x18] sm:$0xff pattern:$0x75316420]
      %685 = vrot.lane.b32.xlu0 %v677, 9
      %v686 = vpop.permute.xlu0 %685
      %687 = vrot.lane.b32.xlu0 %v678, 9
      %v688 = vpop.permute.xlu0 %687
      %689 = vrot.lane.b32.xlu0 %v679, 9
      %v690 = vpop.permute.xlu0 %689
      %691 = vrot.lane.b32.xlu0 %v680, 9
      %v692 = vpop.permute.xlu0 %691
      %vm693 = vcmp.lt.s32.totalorder %v341, 9
      %v694 = vsel %vm693, %v690, %v692
      %v695 = vsel %vm693, %v688, %v690
      %v696 = vsel %vm693, %v686, %v688
      %v697 = vsel %vm693, %v692, %v686
      %v699 = vperm.slane %v302, 0
      %v700 = vperm.slane %v302, 1
      %v701 = vperm.slane %v302, 2
      %v702 = vperm.slane %v302, 3
      %v707 = vmul.f32 %v697, %v699
      %v708 = vmul.f32 %v696, %v700
      %v709 = vmul.f32 %v695, %v701
      %v710 = vmul.f32 %v694, %v702
      %v711 = vpack.c.bf16 %v708, %v707
      %v712 = vpack.c.bf16 %v710, %v709
      %713 = vst [vmem:[#allocation1] ss:$2 sm:$0xff] %v291
      %s714 = scalar_lea.vmem [#allocation1], 16
      %715 = vst [vmem:[%s714] ss:$2 sm:$0xff] %v292
      %v716 = vld.sshfl [vmem:[#allocation1] sm:$0xff pattern:$0x75316420]
      %v717 = vld.sshfl [vmem:[#allocation1 + $0x8] sm:$0xff pattern:$0x75316420]
      %v718 = vld.sshfl [vmem:[#allocation1 + $0x10] sm:$0xff pattern:$0x75316420]
      %v719 = vld.sshfl [vmem:[#allocation1 + $0x18] sm:$0xff pattern:$0x75316420]
      %724 = vrot.lane.b32.xlu0 %v716, 8
      %v725 = vpop.permute.xlu0 %724
      %726 = vrot.lane.b32.xlu0 %v717, 8
      %v727 = vpop.permute.xlu0 %726
      %728 = vrot.lane.b32.xlu0 %v718, 8
      %v729 = vpop.permute.xlu0 %728
      %730 = vrot.lane.b32.xlu0 %v719, 8
      %v731 = vpop.permute.xlu0 %730
      %vm732 = vcmp.lt.s32.totalorder %v341, 8
      %v733 = vsel %vm732, %v729, %v731
      %v734 = vsel %vm732, %v727, %v729
      %v735 = vsel %vm732, %v725, %v727
      %v736 = vsel %vm732, %v731, %v725
      %v738 = vperm.slane %v303, 0
      %v739 = vperm.slane %v303, 1
      %v740 = vperm.slane %v303, 2
      %v741 = vperm.slane %v303, 3
      %v746 = vmul.f32 %v736, %v738
      %v747 = vmul.f32 %v735, %v739
      %v748 = vmul.f32 %v734, %v740
      %v749 = vmul.f32 %v733, %v741
      %v750 = vpack.c.bf16 %v747, %v746
      %v751 = vpack.c.bf16 %v749, %v748
      %752 = vst [vmem:[#allocation1] ss:$2 sm:$0xff] %v291
      %s753 = scalar_lea.vmem [#allocation1], 16
      %754 = vst [vmem:[%s753] ss:$2 sm:$0xff] %v292
      %v755 = vld.sshfl [vmem:[#allocation1] sm:$0xff pattern:$0x75316420]
      %v756 = vld.sshfl [vmem:[#allocation1 + $0x8] sm:$0xff pattern:$0x75316420]
      %v757 = vld.sshfl [vmem:[#allocation1 + $0x10] sm:$0xff pattern:$0x75316420]
      %v758 = vld.sshfl [vmem:[#allocation1 + $0x18] sm:$0xff pattern:$0x75316420]
      %763 = vrot.lane.b32.xlu0 %v755, 7
      %v764 = vpop.permute.xlu0 %763
      %765 = vrot.lane.b32.xlu0 %v756, 7
      %v766 = vpop.permute.xlu0 %765
      %767 = vrot.lane.b32.xlu0 %v757, 7
      %v768 = vpop.permute.xlu0 %767
      %769 = vrot.lane.b32.xlu0 %v758, 7
      %v770 = vpop.permute.xlu0 %769
      %vm771 = vcmp.lt.s32.totalorder %v341, 7
      %v772 = vsel %vm771, %v768, %v770
      %v773 = vsel %vm771, %v766, %v768
      %v774 = vsel %vm771, %v764, %v766
      %v775 = vsel %vm771, %v770, %v764
      %v777 = vperm.slane %v304, 0
      %v778 = vperm.slane %v304, 1
      %v779 = vperm.slane %v304, 2
      %v780 = vperm.slane %v304, 3
      %v785 = vmul.f32 %v775, %v777
      %v786 = vmul.f32 %v774, %v778
      %v787 = vmul.f32 %v773, %v779
      %v788 = vmul.f32 %v772, %v780
      %v789 = vpack.c.bf16 %v786, %v785
      %v790 = vpack.c.bf16 %v788, %v787
      %791 = vst [vmem:[#allocation1] ss:$2 sm:$0xff] %v291
      %s792 = scalar_lea.vmem [#allocation1], 16
      %793 = vst [vmem:[%s792] ss:$2 sm:$0xff] %v292
      %v794 = vld.sshfl [vmem:[#allocation1] sm:$0xff pattern:$0x75316420]
      %v795 = vld.sshfl [vmem:[#allocation1 + $0x8] sm:$0xff pattern:$0x75316420]
      %v796 = vld.sshfl [vmem:[#allocation1 + $0x10] sm:$0xff pattern:$0x75316420]
      %v797 = vld.sshfl [vmem:[#allocation1 + $0x18] sm:$0xff pattern:$0x75316420]
      %802 = vrot.lane.b32.xlu0 %v794, 1
      %v803 = vpop.permute.xlu0 %802
      %804 = vrot.lane.b32.xlu0 %v795, 1
      %v805 = vpop.permute.xlu0 %804
      %806 = vrot.lane.b32.xlu0 %v796, 1
      %v807 = vpop.permute.xlu0 %806
      %808 = vrot.lane.b32.xlu0 %v797, 1
      %v809 = vpop.permute.xlu0 %808
      %vm810 = vcmp.lt.s32.totalorder %v341, 1
      %v811 = vsel %vm810, %v807, %v809
      %v812 = vsel %vm810, %v805, %v807
      %v813 = vsel %vm810, %v803, %v805
      %v814 = vsel %vm810, %v809, %v803
      %v816 = vperm.slane %v305, 0
      %v817 = vperm.slane %v305, 1
      %v818 = vperm.slane %v305, 2
      %v819 = vperm.slane %v305, 3
      %v824 = vmul.f32 %v814, %v816
      %v825 = vmul.f32 %v813, %v817
      %v826 = vmul.f32 %v812, %v818
      %v827 = vmul.f32 %v811, %v819
      %v828 = vpack.c.bf16 %v825, %v824
      %v829 = vpack.c.bf16 %v827, %v826
      %830 = vst [vmem:[#allocation1] ss:$2 sm:$0xff] %v291
      %s831 = scalar_lea.vmem [#allocation1], 16
      %832 = vst [vmem:[%s831] ss:$2 sm:$0xff] %v292
      %v833 = vld.sshfl [vmem:[#allocation1] sm:$0xff pattern:$0x75316420]
      %v834 = vld.sshfl [vmem:[#allocation1 + $0x8] sm:$0xff pattern:$0x75316420]
      %v835 = vld.sshfl [vmem:[#allocation1 + $0x10] sm:$0xff pattern:$0x75316420]
      %v836 = vld.sshfl [vmem:[#allocation1 + $0x18] sm:$0xff pattern:$0x75316420]
      %v841 = vpack.c.bf16 %v834, %v833
      %v842 = vpack.c.bf16 %v836, %v835
      %843 = vst [vmem:[#allocation1] ss:$2 sm:$0xff] %v291
      %s844 = scalar_lea.vmem [#allocation1], 16
      %845 = vst [vmem:[%s844] ss:$2 sm:$0xff] %v292
      %v846 = vld.sshfl [vmem:[#allocation1] sm:$0xff pattern:$0x75316420]
      %v847 = vld.sshfl [vmem:[#allocation1 + $0x8] sm:$0xff pattern:$0x75316420]
      %v848 = vld.sshfl [vmem:[#allocation1 + $0x10] sm:$0xff pattern:$0x75316420]
      %v849 = vld.sshfl [vmem:[#allocation1 + $0x18] sm:$0xff pattern:$0x75316420]
      %854 = vrot.lane.b32.xlu0 %v846, 127
      %v855 = vpop.permute.xlu0 %854
      %856 = vrot.lane.b32.xlu0 %v847, 127
      %v857 = vpop.permute.xlu0 %856
      %858 = vrot.lane.b32.xlu0 %v848, 127
      %v859 = vpop.permute.xlu0 %858
      %860 = vrot.lane.b32.xlu0 %v849, 127
      %v861 = vpop.permute.xlu0 %860
      %vm862 = vcmp.lt.s32.totalorder %v341, 127
      %v863 = vsel %vm862, %v859, %v861
      %v864 = vsel %vm862, %v857, %v859
      %v865 = vsel %vm862, %v855, %v857
      %v866 = vsel %vm862, %v861, %v855
      %v868 = vperm.slane %v306, 0
      %v869 = vperm.slane %v306, 1
      %v870 = vperm.slane %v306, 2
      %v871 = vperm.slane %v306, 3
      %v876 = vmul.f32 %v865, %v868
      %v877 = vmul.f32 %v864, %v869
      %v878 = vmul.f32 %v863, %v870
      %v879 = vmul.f32 %v866, %v871
      %v880 = vpack.c.bf16 %v877, %v876
      %v881 = vpack.c.bf16 %v879, %v878
      %882 = vst [vmem:[#allocation1] ss:$2 sm:$0xff] %v291
      %s883 = scalar_lea.vmem [#allocation1], 16
      %884 = vst [vmem:[%s883] ss:$2 sm:$0xff] %v292
      %v885 = vld.sshfl [vmem:[#allocation1] sm:$0xff pattern:$0x75316420]
      %v886 = vld.sshfl [vmem:[#allocation1 + $0x8] sm:$0xff pattern:$0x75316420]
      %v887 = vld.sshfl [vmem:[#allocation1 + $0x10] sm:$0xff pattern:$0x75316420]
      %v888 = vld.sshfl [vmem:[#allocation1 + $0x18] sm:$0xff pattern:$0x75316420]
      %893 = vrot.lane.b32.xlu0 %v885, 121
      %v894 = vpop.permute.xlu0 %893
      %895 = vrot.lane.b32.xlu0 %v886, 121
      %v896 = vpop.permute.xlu0 %895
      %897 = vrot.lane.b32.xlu0 %v887, 121
      %v898 = vpop.permute.xlu0 %897
      %899 = vrot.lane.b32.xlu0 %v888, 121
      %v900 = vpop.permute.xlu0 %899
      %vm901 = vcmp.lt.s32.totalorder %v341, 121
      %v902 = vsel %vm901, %v898, %v900
      %v903 = vsel %vm901, %v896, %v898
      %v904 = vsel %vm901, %v894, %v896
      %v905 = vsel %vm901, %v900, %v894
      %v907 = vperm.slane %v307, 0
      %v908 = vperm.slane %v307, 1
      %v909 = vperm.slane %v307, 2
      %v910 = vperm.slane %v307, 3
      %v915 = vmul.f32 %v904, %v907
      %v916 = vmul.f32 %v903, %v908
      %v917 = vmul.f32 %v902, %v909
      %v918 = vmul.f32 %v905, %v910
      %v919 = vpack.c.bf16 %v916, %v915
      %v920 = vpack.c.bf16 %v918, %v917
      %921 = vst [vmem:[#allocation1] ss:$2 sm:$0xff] %v291
      %s922 = scalar_lea.vmem [#allocation1], 16
      %923 = vst [vmem:[%s922] ss:$2 sm:$0xff] %v292
      %v924 = vld.sshfl [vmem:[#allocation1] sm:$0xff pattern:$0x75316420]
      %v925 = vld.sshfl [vmem:[#allocation1 + $0x8] sm:$0xff pattern:$0x75316420]
      %v926 = vld.sshfl [vmem:[#allocation1 + $0x10] sm:$0xff pattern:$0x75316420]
      %v927 = vld.sshfl [vmem:[#allocation1 + $0x18] sm:$0xff pattern:$0x75316420]
      %932 = vrot.lane.b32.xlu0 %v924, 120
      %v933 = vpop.permute.xlu0 %932
      %934 = vrot.lane.b32.xlu0 %v925, 120
      %v935 = vpop.permute.xlu0 %934
      %936 = vrot.lane.b32.xlu0 %v926, 120
      %v937 = vpop.permute.xlu0 %936
      %938 = vrot.lane.b32.xlu0 %v927, 120
      %v939 = vpop.permute.xlu0 %938
      %vm940 = vcmp.lt.s32.totalorder %v341, 120
      %v941 = vsel %vm940, %v937, %v939
      %v942 = vsel %vm940, %v935, %v937
      %v943 = vsel %vm940, %v933, %v935
      %v944 = vsel %vm940, %v939, %v933
      %v946 = vperm.slane %v308, 0
      %v947 = vperm.slane %v308, 1
      %v948 = vperm.slane %v308, 2
      %v949 = vperm.slane %v308, 3
      %v954 = vmul.f32 %v943, %v946
      %v955 = vmul.f32 %v942, %v947
      %v956 = vmul.f32 %v941, %v948
      %v957 = vmul.f32 %v944, %v949
      %v958 = vpack.c.bf16 %v955, %v954
      %v959 = vpack.c.bf16 %v957, %v956
      %960 = vst [vmem:[#allocation1] ss:$2 sm:$0xff] %v291
      %s961 = scalar_lea.vmem [#allocation1], 16
      %962 = vst [vmem:[%s961] ss:$2 sm:$0xff] %v292
      %v963 = vld.sshfl [vmem:[#allocation1] sm:$0xff pattern:$0x75316420]
      %v964 = vld.sshfl [vmem:[#allocation1 + $0x8] sm:$0xff pattern:$0x75316420]
      %v965 = vld.sshfl [vmem:[#allocation1 + $0x10] sm:$0xff pattern:$0x75316420]
      %v966 = vld.sshfl [vmem:[#allocation1 + $0x18] sm:$0xff pattern:$0x75316420]
      %971 = vrot.lane.b32.xlu0 %v963, 119
      %v972 = vpop.permute.xlu0 %971
      %973 = vrot.lane.b32.xlu0 %v964, 119
      %v974 = vpop.permute.xlu0 %973
      %975 = vrot.lane.b32.xlu0 %v965, 119
      %v976 = vpop.permute.xlu0 %975
      %977 = vrot.lane.b32.xlu0 %v966, 119
      %v978 = vpop.permute.xlu0 %977
      %vm979 = vcmp.lt.s32.totalorder %v341, 119
      %v980 = vsel %vm979, %v976, %v978
      %v981 = vsel %vm979, %v974, %v976
      %v982 = vsel %vm979, %v972, %v974
      %v983 = vsel %vm979, %v978, %v972
      %v985 = vperm.slane %v309, 0
      %v986 = vperm.slane %v309, 1
      %v987 = vperm.slane %v309, 2
      %v988 = vperm.slane %v309, 3
      %v993 = vmul.f32 %v982, %v985
      %v994 = vmul.f32 %v981, %v986
      %v995 = vmul.f32 %v980, %v987
      %v996 = vmul.f32 %v983, %v988
      %v997 = vpack.c.bf16 %v994, %v993
      %v998 = vpack.c.bf16 %v996, %v995
      %999 = vst [vmem:[#allocation1] ss:$2 sm:$0xff] %v291
      %s1000 = scalar_lea.vmem [#allocation1], 16
      %1001 = vst [vmem:[%s1000] ss:$2 sm:$0xff] %v292
      %v1002 = vld.sshfl [vmem:[#allocation1] sm:$0xff pattern:$0x75316420]
      %v1003 = vld.sshfl [vmem:[#allocation1 + $0x8] sm:$0xff pattern:$0x75316420]
      %v1004 = vld.sshfl [vmem:[#allocation1 + $0x10] sm:$0xff pattern:$0x75316420]
      %v1005 = vld.sshfl [vmem:[#allocation1 + $0x18] sm:$0xff pattern:$0x75316420]
      %1010 = vrot.lane.b32.xlu0 %v1002, 73
      %v1011 = vpop.permute.xlu0 %1010
      %1012 = vrot.lane.b32.xlu0 %v1003, 73
      %v1013 = vpop.permute.xlu0 %1012
      %1014 = vrot.lane.b32.xlu0 %v1004, 73
      %v1015 = vpop.permute.xlu0 %1014
      %1016 = vrot.lane.b32.xlu0 %v1005, 73
      %v1017 = vpop.permute.xlu0 %1016
      %v1018 = vsel %vm342, %v1015, %v1017
      %v1019 = vsel %vm342, %v1013, %v1015
      %v1020 = vsel %vm342, %v1011, %v1013
      %v1021 = vsel %vm342, %v1017, %v1011
      %v1023 = vperm.slane %v310, 0
      %v1024 = vperm.slane %v310, 1
      %v1025 = vperm.slane %v310, 2
      %v1026 = vperm.slane %v310, 3
      %v1031 = vmul.f32 %v1020, %v1023
      %v1032 = vmul.f32 %v1019, %v1024
      %v1033 = vmul.f32 %v1018, %v1025
      %v1034 = vmul.f32 %v1021, %v1026
      %v1035 = vpack.c.bf16 %v1032, %v1031
      %v1036 = vpack.c.bf16 %v1034, %v1033
      %1037 = vst [vmem:[#allocation1] ss:$2 sm:$0xff] %v291
      %s1038 = scalar_lea.vmem [#allocation1], 16
      %1039 = vst [vmem:[%s1038] ss:$2 sm:$0xff] %v292
      %v1040 = vld.sshfl [vmem:[#allocation1] sm:$0xff pattern:$0x75316420]
      %v1041 = vld.sshfl [vmem:[#allocation1 + $0x8] sm:$0xff pattern:$0x75316420]
      %v1042 = vld.sshfl [vmem:[#allocation1 + $0x10] sm:$0xff pattern:$0x75316420]
      %v1043 = vld.sshfl [vmem:[#allocation1 + $0x18] sm:$0xff pattern:$0x75316420]
      %1048 = vrot.lane.b32.xlu0 %v1040, 72
      %v1049 = vpop.permute.xlu0 %1048
      %1050 = vrot.lane.b32.xlu0 %v1041, 72
      %v1051 = vpop.permute.xlu0 %1050
      %1052 = vrot.lane.b32.xlu0 %v1042, 72
      %v1053 = vpop.permute.xlu0 %1052
      %1054 = vrot.lane.b32.xlu0 %v1043, 72
      %v1055 = vpop.permute.xlu0 %1054
      %v1056 = vsel %vm381, %v1053, %v1055
      %v1057 = vsel %vm381, %v1051, %v1053
      %v1058 = vsel %vm381, %v1049, %v1051
      %v1059 = vsel %vm381, %v1055, %v1049
      %v1061 = vperm.slane %v311, 0
      %v1062 = vperm.slane %v311, 1
      %v1063 = vperm.slane %v311, 2
      %v1064 = vperm.slane %v311, 3
      %v1069 = vmul.f32 %v1058, %v1061
      %v1070 = vmul.f32 %v1057, %v1062
      %v1071 = vmul.f32 %v1056, %v1063
      %v1072 = vmul.f32 %v1059, %v1064
      %v1073 = vpack.c.bf16 %v1070, %v1069
      %v1074 = vpack.c.bf16 %v1072, %v1071
      %1075 = vst [vmem:[#allocation1] ss:$2 sm:$0xff] %v291
      %s1076 = scalar_lea.vmem [#allocation1], 16
      %1077 = vst [vmem:[%s1076] ss:$2 sm:$0xff] %v292
      %v1078 = vld.sshfl [vmem:[#allocation1] sm:$0xff pattern:$0x75316420]
      %v1079 = vld.sshfl [vmem:[#allocation1 + $0x8] sm:$0xff pattern:$0x75316420]
      %v1080 = vld.sshfl [vmem:[#allocation1 + $0x10] sm:$0xff pattern:$0x75316420]
      %v1081 = vld.sshfl [vmem:[#allocation1 + $0x18] sm:$0xff pattern:$0x75316420]
      %1086 = vrot.lane.b32.xlu0 %v1078, 71
      %v1087 = vpop.permute.xlu0 %1086
      %1088 = vrot.lane.b32.xlu0 %v1079, 71
      %v1089 = vpop.permute.xlu0 %1088
      %1090 = vrot.lane.b32.xlu0 %v1080, 71
      %v1091 = vpop.permute.xlu0 %1090
      %1092 = vrot.lane.b32.xlu0 %v1081, 71
      %v1093 = vpop.permute.xlu0 %1092
      %v1094 = vsel %vm420, %v1091, %v1093
      %v1095 = vsel %vm420, %v1089, %v1091
      %v1096 = vsel %vm420, %v1087, %v1089
      %v1097 = vsel %vm420, %v1093, %v1087
      %v1099 = vperm.slane %v312, 0
      %v1100 = vperm.slane %v312, 1
      %v1101 = vperm.slane %v312, 2
      %v1102 = vperm.slane %v312, 3
      %v1107 = vmul.f32 %v1096, %v1099
      %v1108 = vmul.f32 %v1095, %v1100
      %v1109 = vmul.f32 %v1094, %v1101
      %v1110 = vmul.f32 %v1097, %v1102
      %v1111 = vpack.c.bf16 %v1108, %v1107
      %v1112 = vpack.c.bf16 %v1110, %v1109
      %1113 = vst [vmem:[#allocation1] ss:$2 sm:$0xff] %v291
      %s1114 = scalar_lea.vmem [#allocation1], 16
      %1115 = vst [vmem:[%s1114] ss:$2 sm:$0xff] %v292
      %v1116 = vld.sshfl [vmem:[#allocation1] sm:$0xff pattern:$0x75316420]
      %v1117 = vld.sshfl [vmem:[#allocation1 + $0x8] sm:$0xff pattern:$0x75316420]
      %v1118 = vld.sshfl [vmem:[#allocation1 + $0x10] sm:$0xff pattern:$0x75316420]
      %v1119 = vld.sshfl [vmem:[#allocation1 + $0x18] sm:$0xff pattern:$0x75316420]
      %1124 = vrot.lane.b32.xlu0 %v1116, 65
      %v1125 = vpop.permute.xlu0 %1124
      %1126 = vrot.lane.b32.xlu0 %v1117, 65
      %v1127 = vpop.permute.xlu0 %1126
      %1128 = vrot.lane.b32.xlu0 %v1118, 65
      %v1129 = vpop.permute.xlu0 %1128
      %1130 = vrot.lane.b32.xlu0 %v1119, 65
      %v1131 = vpop.permute.xlu0 %1130
      %v1132 = vsel %vm459, %v1129, %v1131
      %v1133 = vsel %vm459, %v1127, %v1129
      %v1134 = vsel %vm459, %v1125, %v1127
      %v1135 = vsel %vm459, %v1131, %v1125
      %v1137 = vperm.slane %v313, 0
      %v1138 = vperm.slane %v313, 1
      %v1139 = vperm.slane %v313, 2
      %v1140 = vperm.slane %v313, 3
      %v1145 = vmul.f32 %v1134, %v1137
      %v1146 = vmul.f32 %v1133, %v1138
      %v1147 = vmul.f32 %v1132, %v1139
      %v1148 = vmul.f32 %v1135, %v1140
      %v1149 = vpack.c.bf16 %v1146, %v1145
      %v1150 = vpack.c.bf16 %v1148, %v1147
      %1151 = vst [vmem:[#allocation1] ss:$2 sm:$0xff] %v291
      %s1152 = scalar_lea.vmem [#allocation1], 16
      %1153 = vst [vmem:[%s1152] ss:$2 sm:$0xff] %v292
      %v1154 = vld.sshfl [vmem:[#allocation1] sm:$0xff pattern:$0x75316420]
      %v1155 = vld.sshfl [vmem:[#allocation1 + $0x8] sm:$0xff pattern:$0x75316420]
      %v1156 = vld.sshfl [vmem:[#allocation1 + $0x10] sm:$0xff pattern:$0x75316420]
      %v1157 = vld.sshfl [vmem:[#allocation1 + $0x18] sm:$0xff pattern:$0x75316420]
      %1162 = vrot.lane.b32.xlu0 %v1154, 64
      %v1163 = vpop.permute.xlu0 %1162
      %1164 = vrot.lane.b32.xlu0 %v1155, 64
      %v1165 = vpop.permute.xlu0 %1164
      %1166 = vrot.lane.b32.xlu0 %v1156, 64
      %v1167 = vpop.permute.xlu0 %1166
      %1168 = vrot.lane.b32.xlu0 %v1157, 64
      %v1169 = vpop.permute.xlu0 %1168
      %v1170 = vsel %vm498, %v1167, %v1169
      %v1171 = vsel %vm498, %v1165, %v1167
      %v1172 = vsel %vm498, %v1163, %v1165
      %v1173 = vsel %vm498, %v1169, %v1163
      %v1175 = vperm.slane %v314, 0
      %v1176 = vperm.slane %v314, 1
      %v1177 = vperm.slane %v314, 2
      %v1178 = vperm.slane %v314, 3
      %v1183 = vmul.f32 %v1172, %v1175
      %v1184 = vmul.f32 %v1171, %v1176
      %v1185 = vmul.f32 %v1170, %v1177
      %v1186 = vmul.f32 %v1173, %v1178
      %v1187 = vpack.c.bf16 %v1184, %v1183
      %v1188 = vpack.c.bf16 %v1186, %v1185
      %1189 = vst [vmem:[#allocation1] ss:$2 sm:$0xff] %v291
      %s1190 = scalar_lea.vmem [#allocation1], 16
      %1191 = vst [vmem:[%s1190] ss:$2 sm:$0xff] %v292
      %v1192 = vld.sshfl [vmem:[#allocation1] sm:$0xff pattern:$0x75316420]
      %v1193 = vld.sshfl [vmem:[#allocation1 + $0x8] sm:$0xff pattern:$0x75316420]
      %v1194 = vld.sshfl [vmem:[#allocation1 + $0x10] sm:$0xff pattern:$0x75316420]
      %v1195 = vld.sshfl [vmem:[#allocation1 + $0x18] sm:$0xff pattern:$0x75316420]
      %1200 = vrot.lane.b32.xlu0 %v1192, 63
      %v1201 = vpop.permute.xlu0 %1200
      %1202 = vrot.lane.b32.xlu0 %v1193, 63
      %v1203 = vpop.permute.xlu0 %1202
      %1204 = vrot.lane.b32.xlu0 %v1194, 63
      %v1205 = vpop.permute.xlu0 %1204
      %1206 = vrot.lane.b32.xlu0 %v1195, 63
      %v1207 = vpop.permute.xlu0 %1206
      %v1208 = vsel %vm537, %v1205, %v1207
      %v1209 = vsel %vm537, %v1203, %v1205
      %v1210 = vsel %vm537, %v1201, %v1203
      %v1211 = vsel %vm537, %v1207, %v1201
      %v1213 = vperm.slane %v315, 0
      %v1214 = vperm.slane %v315, 1
      %v1215 = vperm.slane %v315, 2
      %v1216 = vperm.slane %v315, 3
      %v1221 = vmul.f32 %v1210, %v1213
      %v1222 = vmul.f32 %v1209, %v1214
      %v1223 = vmul.f32 %v1208, %v1215
      %v1224 = vmul.f32 %v1211, %v1216
      %v1225 = vpack.c.bf16 %v1222, %v1221
      %v1226 = vpack.c.bf16 %v1224, %v1223
      %1227 = vst [vmem:[#allocation1] ss:$2 sm:$0xff] %v291
      %s1228 = scalar_lea.vmem [#allocation1], 16
      %1229 = vst [vmem:[%s1228] ss:$2 sm:$0xff] %v292
      %v1230 = vld.sshfl [vmem:[#allocation1] sm:$0xff pattern:$0x75316420]
      %v1231 = vld.sshfl [vmem:[#allocation1 + $0x8] sm:$0xff pattern:$0x75316420]
      %v1232 = vld.sshfl [vmem:[#allocation1 + $0x10] sm:$0xff pattern:$0x75316420]
      %v1233 = vld.sshfl [vmem:[#allocation1 + $0x18] sm:$0xff pattern:$0x75316420]
      %1238 = vrot.lane.b32.xlu0 %v1230, 57
      %v1239 = vpop.permute.xlu0 %1238
      %1240 = vrot.lane.b32.xlu0 %v1231, 57
      %v1241 = vpop.permute.xlu0 %1240
      %1242 = vrot.lane.b32.xlu0 %v1232, 57
      %v1243 = vpop.permute.xlu0 %1242
      %1244 = vrot.lane.b32.xlu0 %v1233, 57
      %v1245 = vpop.permute.xlu0 %1244
      %v1246 = vsel %vm576, %v1243, %v1245
      %v1247 = vsel %vm576, %v1241, %v1243
      %v1248 = vsel %vm576, %v1239, %v1241
      %v1249 = vsel %vm576, %v1245, %v1239
      %v1251 = vperm.slane %v316, 0
      %v1252 = vperm.slane %v316, 1
      %v1253 = vperm.slane %v316, 2
      %v1254 = vperm.slane %v316, 3
      %v1259 = vmul.f32 %v1248, %v1251
      %v1260 = vmul.f32 %v1247, %v1252
      %v1261 = vmul.f32 %v1246, %v1253
      %v1262 = vmul.f32 %v1249, %v1254
      %v1263 = vpack.c.bf16 %v1260, %v1259
      %v1264 = vpack.c.bf16 %v1262, %v1261
      %1265 = vst [vmem:[#allocation1] ss:$2 sm:$0xff] %v291
      %s1266 = scalar_lea.vmem [#allocation1], 16
      %1267 = vst [vmem:[%s1266] ss:$2 sm:$0xff] %v292
      %v1268 = vld.sshfl [vmem:[#allocation1] sm:$0xff pattern:$0x75316420]
      %v1269 = vld.sshfl [vmem:[#allocation1 + $0x8] sm:$0xff pattern:$0x75316420]
      %v1270 = vld.sshfl [vmem:[#allocation1 + $0x10] sm:$0xff pattern:$0x75316420]
      %v1271 = vld.sshfl [vmem:[#allocation1 + $0x18] sm:$0xff pattern:$0x75316420]
      %1276 = vrot.lane.b32.xlu0 %v1268, 56
      %v1277 = vpop.permute.xlu0 %1276
      %1278 = vrot.lane.b32.xlu0 %v1269, 56
      %v1279 = vpop.permute.xlu0 %1278
      %1280 = vrot.lane.b32.xlu0 %v1270, 56
      %v1281 = vpop.permute.xlu0 %1280
      %1282 = vrot.lane.b32.xlu0 %v1271, 56
      %v1283 = vpop.permute.xlu0 %1282
      %v1284 = vsel %vm615, %v1281, %v1283
      %v1285 = vsel %vm615, %v1279, %v1281
      %v1286 = vsel %vm615, %v1277, %v1279
      %v1287 = vsel %vm615, %v1283, %v1277
      %v1289 = vperm.slane %v317, 0
      %v1290 = vperm.slane %v317, 1
      %v1291 = vperm.slane %v317, 2
      %v1292 = vperm.slane %v317, 3
      %v1297 = vmul.f32 %v1286, %v1289
      %v1298 = vmul.f32 %v1285, %v1290
      %v1299 = vmul.f32 %v1284, %v1291
      %v1300 = vmul.f32 %v1287, %v1292
      %v1301 = vpack.c.bf16 %v1298, %v1297
      %v1302 = vpack.c.bf16 %v1300, %v1299
      %1303 = vst [vmem:[#allocation1] ss:$2 sm:$0xff] %v291
      %s1304 = scalar_lea.vmem [#allocation1], 16
      %1305 = vst [vmem:[%s1304] ss:$2 sm:$0xff] %v292
      %v1306 = vld.sshfl [vmem:[#allocation1] sm:$0xff pattern:$0x75316420]
      %v1307 = vld.sshfl [vmem:[#allocation1 + $0x8] sm:$0xff pattern:$0x75316420]
      %v1308 = vld.sshfl [vmem:[#allocation1 + $0x10] sm:$0xff pattern:$0x75316420]
      %v1309 = vld.sshfl [vmem:[#allocation1 + $0x18] sm:$0xff pattern:$0x75316420]
      %1314 = vrot.lane.b32.xlu0 %v1306, 55
      %v1315 = vpop.permute.xlu0 %1314
      %1316 = vrot.lane.b32.xlu0 %v1307, 55
      %v1317 = vpop.permute.xlu0 %1316
      %1318 = vrot.lane.b32.xlu0 %v1308, 55
      %v1319 = vpop.permute.xlu0 %1318
      %1320 = vrot.lane.b32.xlu0 %v1309, 55
      %v1321 = vpop.permute.xlu0 %1320
      %v1322 = vsel %vm654, %v1319, %v1321
      %v1323 = vsel %vm654, %v1317, %v1319
      %v1324 = vsel %vm654, %v1315, %v1317
      %v1325 = vsel %vm654, %v1321, %v1315
      %v1327 = vperm.slane %v318, 0
      %v1328 = vperm.slane %v318, 1
      %v1329 = vperm.slane %v318, 2
      %v1330 = vperm.slane %v318, 3
      %v1335 = vmul.f32 %v1324, %v1327
      %v1336 = vmul.f32 %v1323, %v1328
      %v1337 = vmul.f32 %v1322, %v1329
      %v1338 = vmul.f32 %v1325, %v1330
      %v1339 = vpack.c.bf16 %v1336, %v1335
      %v1340 = vpack.c.bf16 %v1338, %v1337
      %v1343 = vunpack.c.l.b16 %v360
      %v1344 = vunpack.c.h.b16 %v360
      %v1345 = vunpack.c.l.b16 %v361
      %v1346 = vunpack.c.h.b16 %v361
      %v1347 = vpack.c.b16 %v1343, %v1343
      %v1348 = vpack.c.b16 %v1344, %v1344
      %v1349 = vpack.c.b16 %v1345, %v1345
      %v1350 = vpack.c.b16 %v1346, %v1346
      %v1353 = vunpack.c.l.b16 %v399
      %v1354 = vunpack.c.h.b16 %v399
      %v1355 = vunpack.c.l.b16 %v400
      %v1356 = vunpack.c.h.b16 %v400
      %v1357 = vpack.c.b16 %v1353, %v1353
      %v1358 = vpack.c.b16 %v1354, %v1354
      %v1359 = vpack.c.b16 %v1355, %v1355
      %v1360 = vpack.c.b16 %v1356, %v1356
      %v1361 = vrot.slane %v1357, 6
      %v1362 = vrot.slane %v1358, 6
      %v1363 = vrot.slane %v1359, 6
      %v1364 = vrot.slane %v1360, 6
      %v1367 = vunpack.c.l.b16 %v438
      %v1368 = vunpack.c.h.b16 %v438
      %v1369 = vunpack.c.l.b16 %v439
      %v1370 = vunpack.c.h.b16 %v439
      %v1371 = vpack.c.b16 %v1367, %v1367
      %v1372 = vpack.c.b16 %v1368, %v1368
      %v1373 = vpack.c.b16 %v1369, %v1369
      %v1374 = vpack.c.b16 %v1370, %v1370
      %v1377 = vunpack.c.l.b16 %v477
      %v1378 = vunpack.c.h.b16 %v477
      %v1379 = vunpack.c.l.b16 %v478
      %v1380 = vunpack.c.h.b16 %v478
      %v1381 = vpack.c.b16 %v1377, %v1377
      %v1382 = vpack.c.b16 %v1378, %v1378
      %v1383 = vpack.c.b16 %v1379, %v1379
      %v1384 = vpack.c.b16 %v1380, %v1380
      %v1385 = vrot.slane %v1381, 2
      %v1386 = vrot.slane %v1382, 2
      %v1387 = vrot.slane %v1383, 2
      %v1388 = vrot.slane %v1384, 2
      %v1391 = vunpack.c.l.b16 %v516
      %v1392 = vunpack.c.h.b16 %v516
      %v1393 = vunpack.c.l.b16 %v517
      %v1394 = vunpack.c.h.b16 %v517
      %v1395 = vpack.c.b16 %v1391, %v1391
      %v1396 = vpack.c.b16 %v1392, %v1392
      %v1397 = vpack.c.b16 %v1393, %v1393
      %v1398 = vpack.c.b16 %v1394, %v1394
      %v1401 = vunpack.c.l.b16 %v555
      %v1402 = vunpack.c.h.b16 %v555
      %v1403 = vunpack.c.l.b16 %v556
      %v1404 = vunpack.c.h.b16 %v556
      %v1405 = vpack.c.b16 %v1401, %v1401
      %v1406 = vpack.c.b16 %v1402, %v1402
      %v1407 = vpack.c.b16 %v1403, %v1403
      %v1408 = vpack.c.b16 %v1404, %v1404
      %v1409 = vrot.slane %v1405, 6
      %v1410 = vrot.slane %v1406, 6
      %v1411 = vrot.slane %v1407, 6
      %v1412 = vrot.slane %v1408, 6
      %v1415 = vunpack.c.l.b16 %v594
      %v1416 = vunpack.c.h.b16 %v594
      %v1417 = vunpack.c.l.b16 %v595
      %v1418 = vunpack.c.h.b16 %v595
      %v1419 = vpack.c.b16 %v1415, %v1415
      %v1420 = vpack.c.b16 %v1416, %v1416
      %v1421 = vpack.c.b16 %v1417, %v1417
      %v1422 = vpack.c.b16 %v1418, %v1418
      %v1425 = vunpack.c.l.b16 %v633
      %v1426 = vunpack.c.h.b16 %v633
      %v1427 = vunpack.c.l.b16 %v634
      %v1428 = vunpack.c.h.b16 %v634
      %v1429 = vpack.c.b16 %v1425, %v1425
      %v1430 = vpack.c.b16 %v1426, %v1426
      %v1431 = vpack.c.b16 %v1427, %v1427
      %v1432 = vpack.c.b16 %v1428, %v1428
      %v1433 = vrot.slane %v1429, 2
      %v1434 = vrot.slane %v1430, 2
      %v1435 = vrot.slane %v1431, 2
      %v1436 = vrot.slane %v1432, 2
      %v1439 = vunpack.c.l.b16 %v672
      %v1440 = vunpack.c.h.b16 %v672
      %v1441 = vunpack.c.l.b16 %v673
      %v1442 = vunpack.c.h.b16 %v673
      %v1443 = vpack.c.b16 %v1439, %v1439
      %v1444 = vpack.c.b16 %v1440, %v1440
      %v1445 = vpack.c.b16 %v1441, %v1441
      %v1446 = vpack.c.b16 %v1442, %v1442
      %v1449 = vunpack.c.l.b16 %v711
      %v1450 = vunpack.c.h.b16 %v711
      %v1451 = vunpack.c.l.b16 %v712
      %v1452 = vunpack.c.h.b16 %v712
      %v1453 = vpack.c.b16 %v1449, %v1449
      %v1454 = vpack.c.b16 %v1450, %v1450
      %v1455 = vpack.c.b16 %v1451, %v1451
      %v1456 = vpack.c.b16 %v1452, %v1452
      %v1457 = vrot.slane %v1453, 6
      %v1458 = vrot.slane %v1454, 6
      %v1459 = vrot.slane %v1455, 6
      %v1460 = vrot.slane %v1456, 6
      %v1463 = vunpack.c.l.b16 %v750
      %v1464 = vunpack.c.h.b16 %v750
      %v1465 = vunpack.c.l.b16 %v751
      %v1466 = vunpack.c.h.b16 %v751
      %v1467 = vpack.c.b16 %v1463, %v1463
      %v1468 = vpack.c.b16 %v1464, %v1464
      %v1469 = vpack.c.b16 %v1465, %v1465
      %v1470 = vpack.c.b16 %v1466, %v1466
      %v1473 = vunpack.c.l.b16 %v789
      %v1474 = vunpack.c.h.b16 %v789
      %v1475 = vunpack.c.l.b16 %v790
      %v1476 = vunpack.c.h.b16 %v790
      %v1477 = vpack.c.b16 %v1473, %v1473
      %v1478 = vpack.c.b16 %v1474, %v1474
      %v1479 = vpack.c.b16 %v1475, %v1475
      %v1480 = vpack.c.b16 %v1476, %v1476
      %v1481 = vrot.slane %v1477, 2
      %v1482 = vrot.slane %v1478, 2
      %v1483 = vrot.slane %v1479, 2
      %v1484 = vrot.slane %v1480, 2
      %v1487 = vunpack.c.l.b16 %v828
      %v1488 = vunpack.c.h.b16 %v828
      %v1489 = vunpack.c.l.b16 %v829
      %v1490 = vunpack.c.h.b16 %v829
      %v1491 = vpack.c.b16 %v1487, %v1487
      %v1492 = vpack.c.b16 %v1488, %v1488
      %v1493 = vpack.c.b16 %v1489, %v1489
      %v1494 = vpack.c.b16 %v1490, %v1490
      %v1497 = vunpack.c.l.b16 %v841
      %v1498 = vunpack.c.h.b16 %v841
      %v1499 = vunpack.c.l.b16 %v842
      %v1500 = vunpack.c.h.b16 %v842
      %v1501 = vpack.c.b16 %v1497, %v1497
      %v1502 = vpack.c.b16 %v1498, %v1498
      %v1503 = vpack.c.b16 %v1499, %v1499
      %v1504 = vpack.c.b16 %v1500, %v1500
      %v1505 = vrot.slane %v1501, 6
      %v1506 = vrot.slane %v1502, 6
      %v1507 = vrot.slane %v1503, 6
      %v1508 = vrot.slane %v1504, 6
      %v1511 = vunpack.c.l.b16 %v880
      %v1512 = vunpack.c.h.b16 %v880
      %v1513 = vunpack.c.l.b16 %v881
      %v1514 = vunpack.c.h.b16 %v881
      %v1515 = vpack.c.b16 %v1511, %v1511
      %v1516 = vpack.c.b16 %v1512, %v1512
      %v1517 = vpack.c.b16 %v1513, %v1513
      %v1518 = vpack.c.b16 %v1514, %v1514
      %v1521 = vunpack.c.l.b16 %v919
      %v1522 = vunpack.c.h.b16 %v919
      %v1523 = vunpack.c.l.b16 %v920
      %v1524 = vunpack.c.h.b16 %v920
      %v1525 = vpack.c.b16 %v1521, %v1521
      %v1526 = vpack.c.b16 %v1522, %v1522
      %v1527 = vpack.c.b16 %v1523, %v1523
      %v1528 = vpack.c.b16 %v1524, %v1524
      %v1529 = vrot.slane %v1525, 2
      %v1530 = vrot.slane %v1526, 2
      %v1531 = vrot.slane %v1527, 2
      %v1532 = vrot.slane %v1528, 2
      %vm1533 = vcmask 1041408
      %v1536 = vsel %vm1533, %v1347, %v1361
      %v1539 = vsel %vm1533, %v1348, %v1362
      %v1542 = vsel %vm1533, %v1349, %v1363
      %v1545 = vsel %vm1533, %v1350, %v1364
      %vm1546 = vcmask 1043456
      %v1548 = vsel %vm1546, %v1536, %v1371
      %v1550 = vsel %vm1546, %v1539, %v1372
      %v1552 = vsel %vm1546, %v1542, %v1373
      %v1554 = vsel %vm1546, %v1545, %v1374
      %vm1555 = vcmask 1045504
      %v1557 = vsel %vm1555, %v1548, %v1385
      %v1560 = vsel %vm1555, %v1550, %v1386
      %v1563 = vsel %vm1555, %v1552, %v1387
      %v1566 = vsel %vm1555, %v1554, %v1388
      %v1570 = vsel %vm1533, %v1395, %v1409
      %v1573 = vsel %vm1533, %v1396, %v1410
      %v1576 = vsel %vm1533, %v1397, %v1411
      %v1579 = vsel %vm1533, %v1398, %v1412
      %v1581 = vsel %vm1546, %v1570, %v1419
      %v1583 = vsel %vm1546, %v1573, %v1420
      %v1585 = vsel %vm1546, %v1576, %v1421
      %v1587 = vsel %vm1546, %v1579, %v1422
      %v1589 = vsel %vm1555, %v1581, %v1433
      %v1592 = vsel %vm1555, %v1583, %v1434
      %v1595 = vsel %vm1555, %v1585, %v1435
      %v1598 = vsel %vm1555, %v1587, %v1436
      %v1602 = vsel %vm1533, %v1443, %v1457
      %v1605 = vsel %vm1533, %v1444, %v1458
      %v1608 = vsel %vm1533, %v1445, %v1459
      %v1611 = vsel %vm1533, %v1446, %v1460
      %v1613 = vsel %vm1546, %v1602, %v1467
      %v1615 = vsel %vm1546, %v1605, %v1468
      %v1617 = vsel %vm1546, %v1608, %v1469
      %v1619 = vsel %vm1546, %v1611, %v1470
      %v1621 = vsel %vm1555, %v1613, %v1481
      %v1624 = vsel %vm1555, %v1615, %v1482
      %v1627 = vsel %vm1555, %v1617, %v1483
      %v1630 = vsel %vm1555, %v1619, %v1484
      %v1634 = vsel %vm1533, %v1491, %v1505
      %v1637 = vsel %vm1533, %v1492, %v1506
      %v1640 = vsel %vm1533, %v1493, %v1507
      %v1643 = vsel %vm1533, %v1494, %v1508
      %v1645 = vsel %vm1546, %v1634, %v1515
      %v1647 = vsel %vm1546, %v1637, %v1516
      %v1649 = vsel %vm1546, %v1640, %v1517
      %v1651 = vsel %vm1546, %v1643, %v1518
      %v1653 = vsel %vm1555, %v1645, %v1529
      %v1656 = vsel %vm1555, %v1647, %v1530
      %v1659 = vsel %vm1555, %v1649, %v1531
      %v1662 = vsel %vm1555, %v1651, %v1532
      %v1666 = vunpack.c.l.b16 %v958
      %v1667 = vunpack.c.h.b16 %v958
      %v1668 = vunpack.c.l.b16 %v959
      %v1669 = vunpack.c.h.b16 %v959
      %v1670 = vpack.c.b16 %v1666, %v1666
      %v1671 = vpack.c.b16 %v1667, %v1667
      %v1672 = vpack.c.b16 %v1668, %v1668
      %v1673 = vpack.c.b16 %v1669, %v1669
      %v1676 = vunpack.c.l.b16 %v997
      %v1677 = vunpack.c.h.b16 %v997
      %v1678 = vunpack.c.l.b16 %v998
      %v1679 = vunpack.c.h.b16 %v998
      %v1680 = vpack.c.b16 %v1676, %v1676
      %v1681 = vpack.c.b16 %v1677, %v1677
      %v1682 = vpack.c.b16 %v1678, %v1678
      %v1683 = vpack.c.b16 %v1679, %v1679
      %v1684 = vrot.slane %v1680, 6
      %v1685 = vrot.slane %v1681, 6
      %v1686 = vrot.slane %v1682, 6
      %v1687 = vrot.slane %v1683, 6
      %v1690 = vunpack.c.l.b16 %v1035
      %v1691 = vunpack.c.h.b16 %v1035
      %v1692 = vunpack.c.l.b16 %v1036
      %v1693 = vunpack.c.h.b16 %v1036
      %v1694 = vpack.c.b16 %v1690, %v1690
      %v1695 = vpack.c.b16 %v1691, %v1691
      %v1696 = vpack.c.b16 %v1692, %v1692
      %v1697 = vpack.c.b16 %v1693, %v1693
      %v1700 = vunpack.c.l.b16 %v1073
      %v1701 = vunpack.c.h.b16 %v1073
      %v1702 = vunpack.c.l.b16 %v1074
      %v1703 = vunpack.c.h.b16 %v1074
      %v1704 = vpack.c.b16 %v1700, %v1700
      %v1705 = vpack.c.b16 %v1701, %v1701
      %v1706 = vpack.c.b16 %v1702, %v1702
      %v1707 = vpack.c.b16 %v1703, %v1703
      %v1708 = vrot.slane %v1704, 2
      %v1709 = vrot.slane %v1705, 2
      %v1710 = vrot.slane %v1706, 2
      %v1711 = vrot.slane %v1707, 2
      %v1714 = vunpack.c.l.b16 %v1111
      %v1715 = vunpack.c.h.b16 %v1111
      %v1716 = vunpack.c.l.b16 %v1112
      %v1717 = vunpack.c.h.b16 %v1112
      %v1718 = vpack.c.b16 %v1714, %v1714
      %v1719 = vpack.c.b16 %v1715, %v1715
      %v1720 = vpack.c.b16 %v1716, %v1716
      %v1721 = vpack.c.b16 %v1717, %v1717
      %v1724 = vunpack.c.l.b16 %v1149
      %v1725 = vunpack.c.h.b16 %v1149
      %v1726 = vunpack.c.l.b16 %v1150
      %v1727 = vunpack.c.h.b16 %v1150
      %v1728 = vpack.c.b16 %v1724, %v1724
      %v1729 = vpack.c.b16 %v1725, %v1725
      %v1730 = vpack.c.b16 %v1726, %v1726
      %v1731 = vpack.c.b16 %v1727, %v1727
      %v1732 = vrot.slane %v1728, 6
      %v1733 = vrot.slane %v1729, 6
      %v1734 = vrot.slane %v1730, 6
      %v1735 = vrot.slane %v1731, 6
      %v1738 = vunpack.c.l.b16 %v1187
      %v1739 = vunpack.c.h.b16 %v1187
      %v1740 = vunpack.c.l.b16 %v1188
      %v1741 = vunpack.c.h.b16 %v1188
      %v1742 = vpack.c.b16 %v1738, %v1738
      %v1743 = vpack.c.b16 %v1739, %v1739
      %v1744 = vpack.c.b16 %v1740, %v1740
      %v1745 = vpack.c.b16 %v1741, %v1741
      %v1748 = vunpack.c.l.b16 %v1225
      %v1749 = vunpack.c.h.b16 %v1225
      %v1750 = vunpack.c.l.b16 %v1226
      %v1751 = vunpack.c.h.b16 %v1226
      %v1752 = vpack.c.b16 %v1748, %v1748
      %v1753 = vpack.c.b16 %v1749, %v1749
      %v1754 = vpack.c.b16 %v1750, %v1750
      %v1755 = vpack.c.b16 %v1751, %v1751
      %v1756 = vrot.slane %v1752, 2
      %v1757 = vrot.slane %v1753, 2
      %v1758 = vrot.slane %v1754, 2
      %v1759 = vrot.slane %v1755, 2
      %v1762 = vunpack.c.l.b16 %v1263
      %v1763 = vunpack.c.h.b16 %v1263
      %v1764 = vunpack.c.l.b16 %v1264
      %v1765 = vunpack.c.h.b16 %v1264
      %v1766 = vpack.c.b16 %v1762, %v1762
      %v1767 = vpack.c.b16 %v1763, %v1763
      %v1768 = vpack.c.b16 %v1764, %v1764
      %v1769 = vpack.c.b16 %v1765, %v1765
      %v1772 = vunpack.c.l.b16 %v1301
      %v1773 = vunpack.c.h.b16 %v1301
      %v1774 = vunpack.c.l.b16 %v1302
      %v1775 = vunpack.c.h.b16 %v1302
      %v1776 = vpack.c.b16 %v1772, %v1772
      %v1777 = vpack.c.b16 %v1773, %v1773
      %v1778 = vpack.c.b16 %v1774, %v1774
      %v1779 = vpack.c.b16 %v1775, %v1775
      %v1780 = vrot.slane %v1776, 6
      %v1781 = vrot.slane %v1777, 6
      %v1782 = vrot.slane %v1778, 6
      %v1783 = vrot.slane %v1779, 6
      %v1786 = vunpack.c.l.b16 %v1339
      %v1787 = vunpack.c.h.b16 %v1339
      %v1788 = vunpack.c.l.b16 %v1340
      %v1789 = vunpack.c.h.b16 %v1340
      %v1790 = vpack.c.b16 %v1786, %v1786
      %v1791 = vpack.c.b16 %v1787, %v1787
      %v1792 = vpack.c.b16 %v1788, %v1788
      %v1793 = vpack.c.b16 %v1789, %v1789
      %v1796 = vsel %vm1533, %v1670, %v1684
      %v1799 = vsel %vm1533, %v1671, %v1685
      %v1802 = vsel %vm1533, %v1672, %v1686
      %v1805 = vsel %vm1533, %v1673, %v1687
      %v1807 = vsel %vm1546, %v1796, %v1694
      %v1809 = vsel %vm1546, %v1799, %v1695
      %v1811 = vsel %vm1546, %v1802, %v1696
      %v1813 = vsel %vm1546, %v1805, %v1697
      %v1815 = vsel %vm1555, %v1807, %v1708
      %v1818 = vsel %vm1555, %v1809, %v1709
      %v1821 = vsel %vm1555, %v1811, %v1710
      %v1824 = vsel %vm1555, %v1813, %v1711
      %v1828 = vsel %vm1533, %v1718, %v1732
      %v1831 = vsel %vm1533, %v1719, %v1733
      %v1834 = vsel %vm1533, %v1720, %v1734
      %v1837 = vsel %vm1533, %v1721, %v1735
      %v1839 = vsel %vm1546, %v1828, %v1742
      %v1841 = vsel %vm1546, %v1831, %v1743
      %v1843 = vsel %vm1546, %v1834, %v1744
      %v1845 = vsel %vm1546, %v1837, %v1745
      %v1847 = vsel %vm1555, %v1839, %v1756
      %v1850 = vsel %vm1555, %v1841, %v1757
      %v1853 = vsel %vm1555, %v1843, %v1758
      %v1856 = vsel %vm1555, %v1845, %v1759
      %v1860 = vsel %vm1533, %v1766, %v1780
      %v1863 = vsel %vm1533, %v1767, %v1781
      %v1866 = vsel %vm1533, %v1768, %v1782
      %v1869 = vsel %vm1533, %v1769, %v1783
      %v1871 = vsel %vm1546, %v1860, %v1790
      %v1873 = vsel %vm1546, %v1863, %v1791
      %v1875 = vsel %vm1546, %v1866, %v1792
      %v1877 = vsel %vm1546, %v1869, %v1793
      %v1879 = vsel %vm1555, %v1871, 0
      %v1881 = vsel %vm1555, %v1873, 0
      %v1883 = vsel %vm1555, %v1875, 0
      %v1885 = vsel %vm1555, %v1877, 0
      %v1887 = vld [vmem:[%s4] sm:$0xf]
      %1888 = vmatpush.bf16.msra.mxu0 0
      %1889 = vmatpush.bf16.msra.mxu0 %v1879
      %1890 = vmatpush.bf16.msra.mxu0 %v1847
      %1891 = vmatpush.bf16.msra.mxu0 %v1815
      %1892 = vmatpush.bf16.msra.mxu0 %v1653
      %1893 = vmatpush.bf16.msra.mxu0 %v1621
      %1894 = vmatpush.bf16.msra.mxu0 %v1589
      %1895 = vmatpush.bf16.msra.mxu0 %v1557
      %1896 = vmatmul.bf16.gmra.mxu0 %v1887
      %v1897 = vpop.f32.mrf.mxu0
      %v1898 = vadd.f32 0.0, %v1897
      %v1899 = vpop.f32.mrf.mxu0
      %1900 = vdwg.mxu0
      %1901 = vmatpush.bf16.msra.mxu0 0
      %1902 = vmatpush.bf16.msra.mxu0 %v1881
      %1903 = vmatpush.bf16.msra.mxu0 %v1850
      %1904 = vmatpush.bf16.msra.mxu0 %v1818
      %1905 = vmatpush.bf16.msra.mxu0 %v1656
      %1906 = vmatpush.bf16.msra.mxu0 %v1624
      %1907 = vmatpush.bf16.msra.mxu0 %v1592
      %1908 = vmatpush.bf16.msra.mxu0 %v1560
      %1909 = vmatmul.bf16.gmra.mxu0 %v1887
      %v1910 = vpop.f32.mrf.mxu0
      %v1911 = vadd.f32 0.0, %v1910
      %v1912 = vpop.f32.mrf.mxu0
      %1913 = vdwg.mxu0
      %1914 = vmatpush.bf16.msra.mxu0 0
      %1915 = vmatpush.bf16.msra.mxu0 %v1883
      %1916 = vmatpush.bf16.msra.mxu0 %v1853
      %1917 = vmatpush.bf16.msra.mxu0 %v1821
      %1918 = vmatpush.bf16.msra.mxu0 %v1659
      %1919 = vmatpush.bf16.msra.mxu0 %v1627
      %1920 = vmatpush.bf16.msra.mxu0 %v1595
      %1921 = vmatpush.bf16.msra.mxu0 %v1563
      %1922 = vmatmul.bf16.gmra.mxu0 %v1887
      %v1923 = vpop.f32.mrf.mxu0
      %v1924 = vadd.f32 0.0, %v1923
      %v1925 = vpop.f32.mrf.mxu0
      %1926 = vdwg.mxu0
      %1927 = vmatpush.bf16.msra.mxu0 0
      %1928 = vmatpush.bf16.msra.mxu0 %v1885
      %1929 = vmatpush.bf16.msra.mxu0 %v1856
      %1930 = vmatpush.bf16.msra.mxu0 %v1824
      %1931 = vmatpush.bf16.msra.mxu0 %v1662
      %1932 = vmatpush.bf16.msra.mxu0 %v1630
      %1933 = vmatpush.bf16.msra.mxu0 %v1598
      %1934 = vmatpush.bf16.msra.mxu0 %v1566
      %1935 = vmatmul.bf16.gmra.mxu0 %v1887
      %v1936 = vpop.f32.mrf.mxu0
      %v1937 = vadd.f32 0.0, %v1936
      %v1938 = vpop.f32.mrf.mxu0
      %1939 = vdwg.mxu0
      %v1940 = vadd.f32 %v1898, %v1911
      %v1941 = vadd.f32 %v1940, %v1924
      %v1942 = vadd.f32 %v1941, %v1937
      %1943 = vadd.xlane.f32.xlu0 %v1942
      %v1944 = vpop.xlane.xlu0 %1943
      %v1945 = vmul.f32 %v1898, %v1898
      %v1946 = vmul.f32 %v1911, %v1911
      %v1947 = vmul.f32 %v1924, %v1924
      %v1948 = vmul.f32 %v1937, %v1937
      %v1949 = vadd.f32 %v1945, %v1946
      %v1950 = vadd.f32 %v1949, %v1947
      %v1951 = vadd.f32 %v1950, %v1948
      %1952 = vadd.xlane.f32.xlu0 %v1951
      %v1953 = vpop.xlane.xlu0 %1952
      %vm1954 = vcmask 7168
      %v1955 = vsel %vm1954, %v1944, %v1953
      %vm1956 = vcmask 15360
      %1957 = vst.msk [vmem:[%s262] sm:$0xff] %vm1956, %v1955
      %v1958 = vpack.c.bf16 %v1911, %v1898
      %v1959 = vpack.c.bf16 %v1937, %v1924
      %1960 = vst [vmem:[%s258] sm:$0xff] %v1958
      %1961 = vst [vmem:[%s258 + $0x8] sm:$0xff] %v1959
      %p1962 = scmp.lt.s32.totalorder %s18, 1
      %s1963 = scalar_select %p1962, %s18, 1
      %s1964 = smul.addr %s1963, 4
      %s1965 = smul.addr %s1964, 4
      %s1966 = scalar_lea.vmem %s5, %s1965
      %p1967 = scmp.lt.s32.totalorder %s18, 1
      %s1968 = scalar_select %p1967, %s18, 1
      %s1969 = smul.addr %s1968, 8
      %s1970 = scalar_lea.vmem %s6, %s1969
      // Predicated region
      $region41: #{down_double_3d_conv.4} parent=39 // pred_check
        %p1971 = pneg %p146
      $region42: #{down_double_3d_conv.4} parent=39 // pred_check_branch
        %1973 = sbr.rel (%p1971) target = $region44
      $region43: #{down_double_3d_conv.4} parent=39 // pred_region
        _
      $region44: #{down_double_3d_conv.4} parent=39 // pred_fallthru
        _
      // Predicated region
      $region45: #{down_double_3d_conv.4} parent=39 // pred_check
        %p1974 = pneg %p172
      $region46: #{down_double_3d_conv.4} parent=39 // pred_check_branch
        %1976 = sbr.rel (%p1974) target = $region48
      $region47: #{down_double_3d_conv.4} parent=39 // pred_region
        _
      $region48: #{down_double_3d_conv.4} parent=39 // pred_fallthru
        _
    $region40: #{down_double_3d_conv.4} parent=5 // pred_fallthru
      _
    %p1977 = scmp.le.s32.totalorder 2, %s13
    // Predicated region
    $region49: #{down_double_3d_conv.4} parent=5 // pred_check
      %p1978 = pneg %p1977
    $region50: #{down_double_3d_conv.4} parent=5 // pred_check_branch
      %1980 = sbr.rel (%p1978) target = $region52
    $region51: #{down_double_3d_conv.4} parent=5 // pred_region
      %s1981 = ssub.s32 %s13, 2
      // Predicated region
      $region53: #{down_double_3d_conv.4} parent=51 // pred_check
        %p1982 = pneg %p152
      $region54: #{down_double_3d_conv.4} parent=51 // pred_check_branch
        %1984 = sbr.rel (%p1982) target = $region56
      $region55: #{down_double_3d_conv.4} parent=51 // pred_region
        %p1985 = scmp.lt.s32.totalorder %s19, 1
        %s1986 = scalar_select %p1985, %s19, 1
        %s1987 = smul.addr %s1986, 4
        %s1988 = smul.addr %s1987, 4
        %s1989 = scalar_lea.vmem %s5, %s1988
      $region56: #{down_double_3d_conv.4} parent=51 // pred_fallthru
        _
      // Predicated region
      $region57: #{down_double_3d_conv.4} parent=51 // pred_check
        %p1990 = pneg %p178
      $region58: #{down_double_3d_conv.4} parent=51 // pred_check_branch
        %1992 = sbr.rel (%p1990) target = $region60
      $region59: #{down_double_3d_conv.4} parent=51 // pred_region
        %p1993 = scmp.lt.s32.totalorder %s19, 1
        %s1994 = scalar_select %p1993, %s19, 1
        %s1995 = smul.addr %s1994, 8
        %s1996 = scalar_lea.vmem %s6, %s1995
      $region60: #{down_double_3d_conv.4} parent=51 // pred_fallthru
        _
    $region52: #{down_double_3d_conv.4} parent=5 // pred_fallthru
      _
  $region6: #{down_double_3d_conv.4} parent=0 // loop_footer
    %s17 = sadd.s32 1, %s13
  $region7: #{down_double_3d_conv.4} parent=0 // loop_footer_branch
    %12 = sbr.rel target = $region3
  $region8: #{down_double_3d_conv.4} parent=0 // loop_exit
    _

// kernel: down_double_3d_conv.3
$region0: #{down_double_3d_conv.3}
  #allocation0 [shape = 'u32[]', space=smem, size = 0x4, offset = 0x4, fixed_abs, tag = 'smem constant byte address 0x4 - core index']
  #allocation1 [shape = 'u32[72,128]{1,0:T(1,128)}', space=vmem, size = 0x9000, scoped, tag = 'internal scratch']
  %s0 = inlined_call_operand.vmem [shape: f32[2,4,512], index: 0, kind: input, shape index: {}]
  %s1 = inlined_call_operand.vmem [shape: f32[27,1,512], index: 1, kind: input, shape index: {}]
  %s2 = inlined_call_operand.vmem [shape: bf16[4,128], index: 2, kind: input, shape index: {}]
  %s3 = inlined_call_operand.vmem [shape: bf16[2,4,512], index: 3, kind: output, shape index: {0}]
  %s4 = inlined_call_operand.vmem [shape: f32[2,4,2], index: 4, kind: output, shape index: {1}]
  %5 = xla_tuple %s3, %s4
  %s6 = sld [smem:[#allocation0]]
  $region53: #{down_double_3d_conv.3} parent=0
    _
  %s8 = ssub.s32 1, %s6
  %s9 = scalar_select 0, %s8, %s6
  loop: start=0, step=1, limit=4
  $region2: #{down_double_3d_conv.3} parent=0 // loop_pre_header
    _
  $region3: #{down_double_3d_conv.3} parent=0 // loop_header
    %s11 = sphi 0, %s15
    %p12 = scmp.ge.s32.totalorder %s11, 4
    %s21 = sphi 0, %s23
    %s24 = sphi 0, %s21
    %s25 = sphi 0, %s24
    %s41 = sphi 0, %s25
    %s45 = sphi 0, %s45
    %s47 = sphi 0, %s45
    %s48 = sphi 0, %s47
    %s62 = sphi 0, %s48
    %s66 = sphi 0, %s66
    %s68 = sphi 0, %s66
    %s69 = sphi 0, %s68
    %s83 = sphi 0, %s69
    %s89 = sphi 0, %s91
    %s92 = sphi 0, %s89
    %s93 = sphi 0, %s92
    %s109 = sphi 0, %s93
    %s115 = sphi 0, %s117
    %s118 = sphi 0, %s115
    %s119 = sphi 0, %s118
    %s135 = sphi 0, %s119
  $region4: #{down_double_3d_conv.3} parent=0 // loop_header_branch
    %14 = sbr.rel (%p12) target = $region8
  $region5: #{down_double_3d_conv.3} parent=0 // loop_body
    %s16 = ssub.s32 %s11, 1
    %s17 = ssub.s32 %s11, 2
    %s18 = sadd.s32 %s11, 1
    %s19 = ssub.s32 %s11, %s18
    %p20 = scmp.eq.s32.totalorder %s19, 0
    %s22 = sadd.s32 %s21, 1
    %s23 = scalar_select %p20, %s21, %s22
    %p26 = pneg %p20
    %p27 = scmp.eq.s32.totalorder %s11, 1
    %p28 = por %p26, %p27
    %p29 = scmp.ne.s32.totalorder %s21, %s24
    %p30 = scmp.eq.s32.totalorder %s11, 0
    %p31 = por %p29, %p30
    %p32 = scmp.ne.s32.totalorder %s21, %s24
    %p33 = scmp.eq.s32.totalorder %s16, 1
    %p34 = por %p32, %p33
    %p35 = scmp.ne.s32.totalorder %s24, %s25
    %p36 = scmp.eq.s32.totalorder %s16, 0
    %p37 = por %p35, %p36
    %p38 = scmp.ne.s32.totalorder %s24, %s25
    %p39 = scmp.eq.s32.totalorder %s17, 1
    %p40 = por %p38, %p39
    %p42 = scmp.ne.s32.totalorder %s25, %s41
    %p43 = scmp.eq.s32.totalorder %s17, 0
    %p44 = por %p42, %p43
    %s46 = sadd.s32 %s45, 1
    %p49 = scmp.eq.s32.totalorder %s11, 1
    %p50 = scmp.ne.s32.totalorder %s45, %s47
    %p51 = scmp.eq.s32.totalorder %s11, 0
    %p52 = por %p50, %p51
    %p53 = scmp.ne.s32.totalorder %s45, %s47
    %p54 = scmp.eq.s32.totalorder %s16, 1
    %p55 = por %p53, %p54
    %p56 = scmp.ne.s32.totalorder %s47, %s48
    %p57 = scmp.eq.s32.totalorder %s16, 0
    %p58 = por %p56, %p57
    %p59 = scmp.ne.s32.totalorder %s47, %s48
    %p60 = scmp.eq.s32.totalorder %s17, 1
    %p61 = por %p59, %p60
    %p63 = scmp.ne.s32.totalorder %s48, %s62
    %p64 = scmp.eq.s32.totalorder %s17, 0
    %p65 = por %p63, %p64
    %s67 = sadd.s32 %s66, 1
    %p70 = scmp.eq.s32.totalorder %s11, 1
    %p71 = scmp.ne.s32.totalorder %s66, %s68
    %p72 = scmp.eq.s32.totalorder %s11, 0
    %p73 = por %p71, %p72
    %p74 = scmp.ne.s32.totalorder %s66, %s68
    %p75 = scmp.eq.s32.totalorder %s16, 1
    %p76 = por %p74, %p75
    %p77 = scmp.ne.s32.totalorder %s68, %s69
    %p78 = scmp.eq.s32.totalorder %s16, 0
    %p79 = por %p77, %p78
    %p80 = scmp.ne.s32.totalorder %s68, %s69
    %p81 = scmp.eq.s32.totalorder %s17, 1
    %p82 = por %p80, %p81
    %p84 = scmp.ne.s32.totalorder %s69, %s83
    %p85 = scmp.eq.s32.totalorder %s17, 0
    %p86 = por %p84, %p85
    %s87 = ssub.s32 %s11, %s18
    %p88 = scmp.eq.s32.totalorder %s87, 0
    %s90 = sadd.s32 %s89, 1
    %s91 = scalar_select %p88, %s89, %s90
    %p94 = pneg %p88
    %p95 = scmp.eq.s32.totalorder %s11, 1
    %p96 = por %p94, %p95
    %p97 = scmp.ne.s32.totalorder %s89, %s92
    %p98 = scmp.eq.s32.totalorder %s11, 0
    %p99 = por %p97, %p98
    %p100 = scmp.ne.s32.totalorder %s89, %s92
    %p101 = scmp.eq.s32.totalorder %s16, 1
    %p102 = por %p100, %p101
    %p103 = scmp.ne.s32.totalorder %s92, %s93
    %p104 = scmp.eq.s32.totalorder %s16, 0
    %p105 = por %p103, %p104
    %p106 = scmp.ne.s32.totalorder %s92, %s93
    %p107 = scmp.eq.s32.totalorder %s17, 1
    %p108 = por %p106, %p107
    %p110 = scmp.ne.s32.totalorder %s93, %s109
    %p111 = scmp.eq.s32.totalorder %s17, 0
    %p112 = por %p110, %p111
    %s113 = ssub.s32 %s11, %s18
    %p114 = scmp.eq.s32.totalorder %s113, 0
    %s116 = sadd.s32 %s115, 1
    %s117 = scalar_select %p114, %s115, %s116
    %p120 = pneg %p114
    %p121 = scmp.eq.s32.totalorder %s11, 1
    %p122 = por %p120, %p121
    %p123 = scmp.ne.s32.totalorder %s115, %s118
    %p124 = scmp.eq.s32.totalorder %s11, 0
    %p125 = por %p123, %p124
    %p126 = scmp.ne.s32.totalorder %s115, %s118
    %p127 = scmp.eq.s32.totalorder %s16, 1
    %p128 = por %p126, %p127
    %p129 = scmp.ne.s32.totalorder %s118, %s119
    %p130 = scmp.eq.s32.totalorder %s16, 0
    %p131 = por %p129, %p130
    %p132 = scmp.ne.s32.totalorder %s118, %s119
    %p133 = scmp.eq.s32.totalorder %s17, 1
    %p134 = por %p132, %p133
    %p136 = scmp.ne.s32.totalorder %s119, %s135
    %p137 = scmp.eq.s32.totalorder %s17, 0
    %p138 = por %p136, %p137
    %p139 = scmp.le.s32.totalorder 1, %s11
    %p140 = scmp.lt.s32.totalorder %s11, 3
    %p141 = pnand %p139, %p140
    %p142 = pneg %p141
    // Predicated region
    $region9: #{down_double_3d_conv.3} parent=5 // pred_check
      _
    $region10: #{down_double_3d_conv.3} parent=5 // pred_check_branch
      %144 = sbr.rel (%p141) target = $region12
    $region11: #{down_double_3d_conv.3} parent=5 // pred_region
      %s145 = ssub.s32 %s11, 1
      // Predicated region
      $region13: #{down_double_3d_conv.3} parent=11 // pred_check
        %p146 = pneg %p58
      $region14: #{down_double_3d_conv.3} parent=11 // pred_check_branch
        %148 = sbr.rel (%p146) target = $region16
      $region15: #{down_double_3d_conv.3} parent=11 // pred_region
        _
      $region16: #{down_double_3d_conv.3} parent=11 // pred_fallthru
        _
      // Predicated region
      $region17: #{down_double_3d_conv.3} parent=11 // pred_check
        %p149 = pneg %p79
      $region18: #{down_double_3d_conv.3} parent=11 // pred_check_branch
        %151 = sbr.rel (%p149) target = $region20
      $region19: #{down_double_3d_conv.3} parent=11 // pred_region
        _
      $region20: #{down_double_3d_conv.3} parent=11 // pred_fallthru
        _
    $region12: #{down_double_3d_conv.3} parent=5 // pred_fallthru
      _
    %p152 = scmp.lt.s32.totalorder %s11, 2
    // Predicated region
    $region21: #{down_double_3d_conv.3} parent=5 // pred_check
      %p153 = pneg %p152
    $region22: #{down_double_3d_conv.3} parent=5 // pred_check_branch
      %155 = sbr.rel (%p153) target = $region24
    $region23: #{down_double_3d_conv.3} parent=5 // pred_region
      // Predicated region
      $region25: #{down_double_3d_conv.3} parent=23 // pred_check
        %p156 = pneg %p31
      $region26: #{down_double_3d_conv.3} parent=23 // pred_check_branch
        %158 = sbr.rel (%p156) target = $region28
      $region27: #{down_double_3d_conv.3} parent=23 // pred_region
        %p159 = scmp.lt.s32.totalorder %s11, 1
        %s160 = scalar_select %p159, %s11, 1
        %s161 = smul.addr %s160, 4
        %s162 = smul.addr %s161, 4
        %s163 = scalar_lea.vmem %s0, %s162
      $region28: #{down_double_3d_conv.3} parent=23 // pred_fallthru
        _
    $region24: #{down_double_3d_conv.3} parent=5 // pred_fallthru
      _
    %p164 = scmp.le.s32.totalorder 1, %s11
    %p165 = scmp.lt.s32.totalorder %s11, 3
    %p166 = pnand %p164, %p165
    %p167 = pneg %p166
    // Predicated region
    $region29: #{down_double_3d_conv.3} parent=5 // pred_check
      _
    $region30: #{down_double_3d_conv.3} parent=5 // pred_check_branch
      %169 = sbr.rel (%p166) target = $region32
    $region31: #{down_double_3d_conv.3} parent=5 // pred_region
      %s170 = ssub.s32 %s11, 1
      %p171 = scmp.lt.s32.totalorder %s16, 1
      %s172 = scalar_select %p171, %s16, 1
      %s173 = smul.addr %s172, 4
      %s174 = smul.addr %s173, 4
      %s175 = scalar_lea.vmem %s0, %s174
      %p176 = pneg %p37
      %p177 = pneg %p34
      %p178 = pneg %p58
      %p179 = pneg %p55
      %p180 = pneg %p79
      %p181 = pneg %p76
      %p182 = pneg %p105
      %p183 = pneg %p102
      %p184 = scmp.lt.s32.totalorder %s16, 1
      %s185 = scalar_select %p184, %s16, 1
      %s186 = smul.addr %s185, 4
      %s187 = smul.addr %s186, 2
      %s188 = scalar_lea.vmem %s3, %s187
      %p189 = pneg %p131
      %p190 = pneg %p128
      %p191 = scmp.lt.s32.totalorder %s16, 1
      %s192 = scalar_select %p191, %s16, 1
      %s193 = smul.addr %s192, 4
      %s194 = scalar_lea.vmem %s4, %s193
      %p195 = scmp.lt.s32.totalorder %s16, 1
      %s196 = scalar_select %p195, %s16, 1
      %s197 = smul.addr %s196, 4
      %s198 = smul.addr %s197, 4
      %s199 = scalar_lea.vmem %s0, %s198
      %p200 = scmp.lt.s32.totalorder %s16, 1
      %s201 = scalar_select %p200, %s16, 1
      %s202 = smul.addr %s201, 4
      %s203 = smul.addr %s202, 2
      %s204 = scalar_lea.vmem %s3, %s203
      %p205 = scmp.lt.s32.totalorder %s16, 1
      %s206 = scalar_select %p205, %s16, 1
      %s207 = smul.addr %s206, 4
      %s208 = scalar_lea.vmem %s4, %s207
      %v210 = vld [vmem:[%s199] sm:$0xff]
      %v211 = vld [vmem:[%s199 + $0x8] sm:$0xff]
      %v212 = vld [vmem:[%s1] sm:$0xf]
      %v213 = vld [vmem:[%s1 + $0x4] sm:$0xf]
      %v214 = vld [vmem:[%s1 + $0x8] sm:$0xf]
      %v215 = vld [vmem:[%s1 + $0xc] sm:$0xf]
      %v216 = vld [vmem:[%s1 + $0x10] sm:$0xf]
      %v217 = vld [vmem:[%s1 + $0x14] sm:$0xf]
      %v218 = vld [vmem:[%s1 + $0x18] sm:$0xf]
      %v219 = vld [vmem:[%s1 + $0x1c] sm:$0xf]
      %v220 = vld [vmem:[%s1 + $0x20] sm:$0xf]
      %v221 = vld [vmem:[%s1 + $0x24] sm:$0xf]
      %v222 = vld [vmem:[%s1 + $0x28] sm:$0xf]
      %v223 = vld [vmem:[%s1 + $0x2c] sm:$0xf]
      %v224 = vld [vmem:[%s1 + $0x30] sm:$0xf]
      %v225 = vld [vmem:[%s1 + $0x38] sm:$0xf]
      %v226 = vld [vmem:[%s1 + $0x3c] sm:$0xf]
      %v227 = vld [vmem:[%s1 + $0x40] sm:$0xf]
      %v228 = vld [vmem:[%s1 + $0x44] sm:$0xf]
      %v229 = vld [vmem:[%s1 + $0x48] sm:$0xf]
      %v230 = vld [vmem:[%s1 + $0x4c] sm:$0xf]
      %v231 = vld [vmem:[%s1 + $0x50] sm:$0xf]
      %v232 = vld [vmem:[%s1 + $0x54] sm:$0xf]
      %v233 = vld [vmem:[%s1 + $0x58] sm:$0xf]
      %v234 = vld [vmem:[%s1 + $0x5c] sm:$0xf]
      %v235 = vld [vmem:[%s1 + $0x60] sm:$0xf]
      %v236 = vld [vmem:[%s1 + $0x64] sm:$0xf]
      %v237 = vld [vmem:[%s1 + $0x68] sm:$0xf]
      %240 = vst [vmem:[#allocation1] ss:$2 sm:$0xff] %v210
      %s241 = scalar_lea.vmem [#allocation1], 16
      %242 = vst [vmem:[%s241] ss:$2 sm:$0xff] %v211
      %v243 = vld.sshfl [vmem:[#allocation1] sm:$0xff pattern:$0x75316420]
      %v244 = vld.sshfl [vmem:[#allocation1 + $0x8] sm:$0xff pattern:$0x75316420]
      %v245 = vld.sshfl [vmem:[#allocation1 + $0x10] sm:$0xff pattern:$0x75316420]
      %v246 = vld.sshfl [vmem:[#allocation1 + $0x18] sm:$0xff pattern:$0x75316420]
      %251 = vrot.lane.b32.xlu0 %v243, 73
      %v252 = vpop.permute.xlu0 %251
      %253 = vrot.lane.b32.xlu0 %v244, 73
      %v254 = vpop.permute.xlu0 %253
      %255 = vrot.lane.b32.xlu0 %v245, 73
      %v256 = vpop.permute.xlu0 %255
      %257 = vrot.lane.b32.xlu0 %v246, 73
      %v258 = vpop.permute.xlu0 %257
      %v259 = vlaneseq
      %v260 = vand.u32 %v259, 127
      %vm261 = vcmp.lt.s32.totalorder %v260, 73
      %v262 = vsel %vm261, %v256, %v258
      %v263 = vsel %vm261, %v254, %v256
      %v264 = vsel %vm261, %v252, %v254
      %v265 = vsel %vm261, %v258, %v252
      %v267 = vperm.slane %v212, 0
      %v268 = vperm.slane %v212, 1
      %v269 = vperm.slane %v212, 2
      %v270 = vperm.slane %v212, 3
      %v275 = vmul.f32 %v265, %v267
      %v276 = vmul.f32 %v264, %v268
      %v277 = vmul.f32 %v263, %v269
      %v278 = vmul.f32 %v262, %v270
      %v279 = vpack.c.bf16 %v276, %v275
      %v280 = vpack.c.bf16 %v278, %v277
      %281 = vst [vmem:[#allocation1] ss:$2 sm:$0xff] %v210
      %s282 = scalar_lea.vmem [#allocation1], 16
      %283 = vst [vmem:[%s282] ss:$2 sm:$0xff] %v211
      %v284 = vld.sshfl [vmem:[#allocation1] sm:$0xff pattern:$0x75316420]
      %v285 = vld.sshfl [vmem:[#allocation1 + $0x8] sm:$0xff pattern:$0x75316420]
      %v286 = vld.sshfl [vmem:[#allocation1 + $0x10] sm:$0xff pattern:$0x75316420]
      %v287 = vld.sshfl [vmem:[#allocation1 + $0x18] sm:$0xff pattern:$0x75316420]
      %292 = vrot.lane.b32.xlu0 %v284, 72
      %v293 = vpop.permute.xlu0 %292
      %294 = vrot.lane.b32.xlu0 %v285, 72
      %v295 = vpop.permute.xlu0 %294
      %296 = vrot.lane.b32.xlu0 %v286, 72
      %v297 = vpop.permute.xlu0 %296
      %298 = vrot.lane.b32.xlu0 %v287, 72
      %v299 = vpop.permute.xlu0 %298
      %vm300 = vcmp.lt.s32.totalorder %v260, 72
      %v301 = vsel %vm300, %v297, %v299
      %v302 = vsel %vm300, %v295, %v297
      %v303 = vsel %vm300, %v293, %v295
      %v304 = vsel %vm300, %v299, %v293
      %v306 = vperm.slane %v213, 0
      %v307 = vperm.slane %v213, 1
      %v308 = vperm.slane %v213, 2
      %v309 = vperm.slane %v213, 3
      %v314 = vmul.f32 %v304, %v306
      %v315 = vmul.f32 %v303, %v307
      %v316 = vmul.f32 %v302, %v308
      %v317 = vmul.f32 %v301, %v309
      %v318 = vpack.c.bf16 %v315, %v314
      %v319 = vpack.c.bf16 %v317, %v316
      %320 = vst [vmem:[#allocation1] ss:$2 sm:$0xff] %v210
      %s321 = scalar_lea.vmem [#allocation1], 16
      %322 = vst [vmem:[%s321] ss:$2 sm:$0xff] %v211
      %v323 = vld.sshfl [vmem:[#allocation1] sm:$0xff pattern:$0x75316420]
      %v324 = vld.sshfl [vmem:[#allocation1 + $0x8] sm:$0xff pattern:$0x75316420]
      %v325 = vld.sshfl [vmem:[#allocation1 + $0x10] sm:$0xff pattern:$0x75316420]
      %v326 = vld.sshfl [vmem:[#allocation1 + $0x18] sm:$0xff pattern:$0x75316420]
      %331 = vrot.lane.b32.xlu0 %v323, 71
      %v332 = vpop.permute.xlu0 %331
      %333 = vrot.lane.b32.xlu0 %v324, 71
      %v334 = vpop.permute.xlu0 %333
      %335 = vrot.lane.b32.xlu0 %v325, 71
      %v336 = vpop.permute.xlu0 %335
      %337 = vrot.lane.b32.xlu0 %v326, 71
      %v338 = vpop.permute.xlu0 %337
      %vm339 = vcmp.lt.s32.totalorder %v260, 71
      %v340 = vsel %vm339, %v336, %v338
      %v341 = vsel %vm339, %v334, %v336
      %v342 = vsel %vm339, %v332, %v334
      %v343 = vsel %vm339, %v338, %v332
      %v345 = vperm.slane %v214, 0
      %v346 = vperm.slane %v214, 1
      %v347 = vperm.slane %v214, 2
      %v348 = vperm.slane %v214, 3
      %v353 = vmul.f32 %v343, %v345
      %v354 = vmul.f32 %v342, %v346
      %v355 = vmul.f32 %v341, %v347
      %v356 = vmul.f32 %v340, %v348
      %v357 = vpack.c.bf16 %v354, %v353
      %v358 = vpack.c.bf16 %v356, %v355
      %359 = vst [vmem:[#allocation1] ss:$2 sm:$0xff] %v210
      %s360 = scalar_lea.vmem [#allocation1], 16
      %361 = vst [vmem:[%s360] ss:$2 sm:$0xff] %v211
      %v362 = vld.sshfl [vmem:[#allocation1] sm:$0xff pattern:$0x75316420]
      %v363 = vld.sshfl [vmem:[#allocation1 + $0x8] sm:$0xff pattern:$0x75316420]
      %v364 = vld.sshfl [vmem:[#allocation1 + $0x10] sm:$0xff pattern:$0x75316420]
      %v365 = vld.sshfl [vmem:[#allocation1 + $0x18] sm:$0xff pattern:$0x75316420]
      %370 = vrot.lane.b32.xlu0 %v362, 65
      %v371 = vpop.permute.xlu0 %370
      %372 = vrot.lane.b32.xlu0 %v363, 65
      %v373 = vpop.permute.xlu0 %372
      %374 = vrot.lane.b32.xlu0 %v364, 65
      %v375 = vpop.permute.xlu0 %374
      %376 = vrot.lane.b32.xlu0 %v365, 65
      %v377 = vpop.permute.xlu0 %376
      %vm378 = vcmp.lt.s32.totalorder %v260, 65
      %v379 = vsel %vm378, %v375, %v377
      %v380 = vsel %vm378, %v373, %v375
      %v381 = vsel %vm378, %v371, %v373
      %v382 = vsel %vm378, %v377, %v371
      %v384 = vperm.slane %v215, 0
      %v385 = vperm.slane %v215, 1
      %v386 = vperm.slane %v215, 2
      %v387 = vperm.slane %v215, 3
      %v392 = vmul.f32 %v382, %v384
      %v393 = vmul.f32 %v381, %v385
      %v394 = vmul.f32 %v380, %v386
      %v395 = vmul.f32 %v379, %v387
      %v396 = vpack.c.bf16 %v393, %v392
      %v397 = vpack.c.bf16 %v395, %v394
      %398 = vst [vmem:[#allocation1] ss:$2 sm:$0xff] %v210
      %s399 = scalar_lea.vmem [#allocation1], 16
      %400 = vst [vmem:[%s399] ss:$2 sm:$0xff] %v211
      %v401 = vld.sshfl [vmem:[#allocation1] sm:$0xff pattern:$0x75316420]
      %v402 = vld.sshfl [vmem:[#allocation1 + $0x8] sm:$0xff pattern:$0x75316420]
      %v403 = vld.sshfl [vmem:[#allocation1 + $0x10] sm:$0xff pattern:$0x75316420]
      %v404 = vld.sshfl [vmem:[#allocation1 + $0x18] sm:$0xff pattern:$0x75316420]
      %409 = vrot.lane.b32.xlu0 %v401, 64
      %v410 = vpop.permute.xlu0 %409
      %411 = vrot.lane.b32.xlu0 %v402, 64
      %v412 = vpop.permute.xlu0 %411
      %413 = vrot.lane.b32.xlu0 %v403, 64
      %v414 = vpop.permute.xlu0 %413
      %415 = vrot.lane.b32.xlu0 %v404, 64
      %v416 = vpop.permute.xlu0 %415
      %vm417 = vcmp.lt.s32.totalorder %v260, 64
      %v418 = vsel %vm417, %v414, %v416
      %v419 = vsel %vm417, %v412, %v414
      %v420 = vsel %vm417, %v410, %v412
      %v421 = vsel %vm417, %v416, %v410
      %v423 = vperm.slane %v216, 0
      %v424 = vperm.slane %v216, 1
      %v425 = vperm.slane %v216, 2
      %v426 = vperm.slane %v216, 3
      %v431 = vmul.f32 %v421, %v423
      %v432 = vmul.f32 %v420, %v424
      %v433 = vmul.f32 %v419, %v425
      %v434 = vmul.f32 %v418, %v426
      %v435 = vpack.c.bf16 %v432, %v431
      %v436 = vpack.c.bf16 %v434, %v433
      %437 = vst [vmem:[#allocation1] ss:$2 sm:$0xff] %v210
      %s438 = scalar_lea.vmem [#allocation1], 16
      %439 = vst [vmem:[%s438] ss:$2 sm:$0xff] %v211
      %v440 = vld.sshfl [vmem:[#allocation1] sm:$0xff pattern:$0x75316420]
      %v441 = vld.sshfl [vmem:[#allocation1 + $0x8] sm:$0xff pattern:$0x75316420]
      %v442 = vld.sshfl [vmem:[#allocation1 + $0x10] sm:$0xff pattern:$0x75316420]
      %v443 = vld.sshfl [vmem:[#allocation1 + $0x18] sm:$0xff pattern:$0x75316420]
      %448 = vrot.lane.b32.xlu0 %v440, 63
      %v449 = vpop.permute.xlu0 %448
      %450 = vrot.lane.b32.xlu0 %v441, 63
      %v451 = vpop.permute.xlu0 %450
      %452 = vrot.lane.b32.xlu0 %v442, 63
      %v453 = vpop.permute.xlu0 %452
      %454 = vrot.lane.b32.xlu0 %v443, 63
      %v455 = vpop.permute.xlu0 %454
      %vm456 = vcmp.lt.s32.totalorder %v260, 63
      %v457 = vsel %vm456, %v453, %v455
      %v458 = vsel %vm456, %v451, %v453
      %v459 = vsel %vm456, %v449, %v451
      %v460 = vsel %vm456, %v455, %v449
      %v462 = vperm.slane %v217, 0
      %v463 = vperm.slane %v217, 1
      %v464 = vperm.slane %v217, 2
      %v465 = vperm.slane %v217, 3
      %v470 = vmul.f32 %v460, %v462
      %v471 = vmul.f32 %v459, %v463
      %v472 = vmul.f32 %v458, %v464
      %v473 = vmul.f32 %v457, %v465
      %v474 = vpack.c.bf16 %v471, %v470
      %v475 = vpack.c.bf16 %v473, %v472
      %476 = vst [vmem:[#allocation1] ss:$2 sm:$0xff] %v210
      %s477 = scalar_lea.vmem [#allocation1], 16
      %478 = vst [vmem:[%s477] ss:$2 sm:$0xff] %v211
      %v479 = vld.sshfl [vmem:[#allocation1] sm:$0xff pattern:$0x75316420]
      %v480 = vld.sshfl [vmem:[#allocation1 + $0x8] sm:$0xff pattern:$0x75316420]
      %v481 = vld.sshfl [vmem:[#allocation1 + $0x10] sm:$0xff pattern:$0x75316420]
      %v482 = vld.sshfl [vmem:[#allocation1 + $0x18] sm:$0xff pattern:$0x75316420]
      %487 = vrot.lane.b32.xlu0 %v479, 57
      %v488 = vpop.permute.xlu0 %487
      %489 = vrot.lane.b32.xlu0 %v480, 57
      %v490 = vpop.permute.xlu0 %489
      %491 = vrot.lane.b32.xlu0 %v481, 57
      %v492 = vpop.permute.xlu0 %491
      %493 = vrot.lane.b32.xlu0 %v482, 57
      %v494 = vpop.permute.xlu0 %493
      %vm495 = vcmp.lt.s32.totalorder %v260, 57
      %v496 = vsel %vm495, %v492, %v494
      %v497 = vsel %vm495, %v490, %v492
      %v498 = vsel %vm495, %v488, %v490
      %v499 = vsel %vm495, %v494, %v488
      %v501 = vperm.slane %v218, 0
      %v502 = vperm.slane %v218, 1
      %v503 = vperm.slane %v218, 2
      %v504 = vperm.slane %v218, 3
      %v509 = vmul.f32 %v499, %v501
      %v510 = vmul.f32 %v498, %v502
      %v511 = vmul.f32 %v497, %v503
      %v512 = vmul.f32 %v496, %v504
      %v513 = vpack.c.bf16 %v510, %v509
      %v514 = vpack.c.bf16 %v512, %v511
      %515 = vst [vmem:[#allocation1] ss:$2 sm:$0xff] %v210
      %s516 = scalar_lea.vmem [#allocation1], 16
      %517 = vst [vmem:[%s516] ss:$2 sm:$0xff] %v211
      %v518 = vld.sshfl [vmem:[#allocation1] sm:$0xff pattern:$0x75316420]
      %v519 = vld.sshfl [vmem:[#allocation1 + $0x8] sm:$0xff pattern:$0x75316420]
      %v520 = vld.sshfl [vmem:[#allocation1 + $0x10] sm:$0xff pattern:$0x75316420]
      %v521 = vld.sshfl [vmem:[#allocation1 + $0x18] sm:$0xff pattern:$0x75316420]
      %526 = vrot.lane.b32.xlu0 %v518, 56
      %v527 = vpop.permute.xlu0 %526
      %528 = vrot.lane.b32.xlu0 %v519, 56
      %v529 = vpop.permute.xlu0 %528
      %530 = vrot.lane.b32.xlu0 %v520, 56
      %v531 = vpop.permute.xlu0 %530
      %532 = vrot.lane.b32.xlu0 %v521, 56
      %v533 = vpop.permute.xlu0 %532
      %vm534 = vcmp.lt.s32.totalorder %v260, 56
      %v535 = vsel %vm534, %v531, %v533
      %v536 = vsel %vm534, %v529, %v531
      %v537 = vsel %vm534, %v527, %v529
      %v538 = vsel %vm534, %v533, %v527
      %v540 = vperm.slane %v219, 0
      %v541 = vperm.slane %v219, 1
      %v542 = vperm.slane %v219, 2
      %v543 = vperm.slane %v219, 3
      %v548 = vmul.f32 %v538, %v540
      %v549 = vmul.f32 %v537, %v541
      %v550 = vmul.f32 %v536, %v542
      %v551 = vmul.f32 %v535, %v543
      %v552 = vpack.c.bf16 %v549, %v548
      %v553 = vpack.c.bf16 %v551, %v550
      %554 = vst [vmem:[#allocation1] ss:$2 sm:$0xff] %v210
      %s555 = scalar_lea.vmem [#allocation1], 16
      %556 = vst [vmem:[%s555] ss:$2 sm:$0xff] %v211
      %v557 = vld.sshfl [vmem:[#allocation1] sm:$0xff pattern:$0x75316420]
      %v558 = vld.sshfl [vmem:[#allocation1 + $0x8] sm:$0xff pattern:$0x75316420]
      %v559 = vld.sshfl [vmem:[#allocation1 + $0x10] sm:$0xff pattern:$0x75316420]
      %v560 = vld.sshfl [vmem:[#allocation1 + $0x18] sm:$0xff pattern:$0x75316420]
      %565 = vrot.lane.b32.xlu0 %v557, 55
      %v566 = vpop.permute.xlu0 %565
      %567 = vrot.lane.b32.xlu0 %v558, 55
      %v568 = vpop.permute.xlu0 %567
      %569 = vrot.lane.b32.xlu0 %v559, 55
      %v570 = vpop.permute.xlu0 %569
      %571 = vrot.lane.b32.xlu0 %v560, 55
      %v572 = vpop.permute.xlu0 %571
      %vm573 = vcmp.lt.s32.totalorder %v260, 55
      %v574 = vsel %vm573, %v570, %v572
      %v575 = vsel %vm573, %v568, %v570
      %v576 = vsel %vm573, %v566, %v568
      %v577 = vsel %vm573, %v572, %v566
      %v579 = vperm.slane %v220, 0
      %v580 = vperm.slane %v220, 1
      %v581 = vperm.slane %v220, 2
      %v582 = vperm.slane %v220, 3
      %v587 = vmul.f32 %v577, %v579
      %v588 = vmul.f32 %v576, %v580
      %v589 = vmul.f32 %v575, %v581
      %v590 = vmul.f32 %v574, %v582
      %v591 = vpack.c.bf16 %v588, %v587
      %v592 = vpack.c.bf16 %v590, %v589
      %593 = vst [vmem:[#allocation1] ss:$2 sm:$0xff] %v210
      %s594 = scalar_lea.vmem [#allocation1], 16
      %595 = vst [vmem:[%s594] ss:$2 sm:$0xff] %v211
      %v596 = vld.sshfl [vmem:[#allocation1] sm:$0xff pattern:$0x75316420]
      %v597 = vld.sshfl [vmem:[#allocation1 + $0x8] sm:$0xff pattern:$0x75316420]
      %v598 = vld.sshfl [vmem:[#allocation1 + $0x10] sm:$0xff pattern:$0x75316420]
      %v599 = vld.sshfl [vmem:[#allocation1 + $0x18] sm:$0xff pattern:$0x75316420]
      %604 = vrot.lane.b32.xlu0 %v596, 9
      %v605 = vpop.permute.xlu0 %604
      %606 = vrot.lane.b32.xlu0 %v597, 9
      %v607 = vpop.permute.xlu0 %606
      %608 = vrot.lane.b32.xlu0 %v598, 9
      %v609 = vpop.permute.xlu0 %608
      %610 = vrot.lane.b32.xlu0 %v599, 9
      %v611 = vpop.permute.xlu0 %610
      %vm612 = vcmp.lt.s32.totalorder %v260, 9
      %v613 = vsel %vm612, %v609, %v611
      %v614 = vsel %vm612, %v607, %v609
      %v615 = vsel %vm612, %v605, %v607
      %v616 = vsel %vm612, %v611, %v605
      %v618 = vperm.slane %v221, 0
      %v619 = vperm.slane %v221, 1
      %v620 = vperm.slane %v221, 2
      %v621 = vperm.slane %v221, 3
      %v626 = vmul.f32 %v616, %v618
      %v627 = vmul.f32 %v615, %v619
      %v628 = vmul.f32 %v614, %v620
      %v629 = vmul.f32 %v613, %v621
      %v630 = vpack.c.bf16 %v627, %v626
      %v631 = vpack.c.bf16 %v629, %v628
      %632 = vst [vmem:[#allocation1] ss:$2 sm:$0xff] %v210
      %s633 = scalar_lea.vmem [#allocation1], 16
      %634 = vst [vmem:[%s633] ss:$2 sm:$0xff] %v211
      %v635 = vld.sshfl [vmem:[#allocation1] sm:$0xff pattern:$0x75316420]
      %v636 = vld.sshfl [vmem:[#allocation1 + $0x8] sm:$0xff pattern:$0x75316420]
      %v637 = vld.sshfl [vmem:[#allocation1 + $0x10] sm:$0xff pattern:$0x75316420]
      %v638 = vld.sshfl [vmem:[#allocation1 + $0x18] sm:$0xff pattern:$0x75316420]
      %643 = vrot.lane.b32.xlu0 %v635, 8
      %v644 = vpop.permute.xlu0 %643
      %645 = vrot.lane.b32.xlu0 %v636, 8
      %v646 = vpop.permute.xlu0 %645
      %647 = vrot.lane.b32.xlu0 %v637, 8
      %v648 = vpop.permute.xlu0 %647
      %649 = vrot.lane.b32.xlu0 %v638, 8
      %v650 = vpop.permute.xlu0 %649
      %vm651 = vcmp.lt.s32.totalorder %v260, 8
      %v652 = vsel %vm651, %v648, %v650
      %v653 = vsel %vm651, %v646, %v648
      %v654 = vsel %vm651, %v644, %v646
      %v655 = vsel %vm651, %v650, %v644
      %v657 = vperm.slane %v222, 0
      %v658 = vperm.slane %v222, 1
      %v659 = vperm.slane %v222, 2
      %v660 = vperm.slane %v222, 3
      %v665 = vmul.f32 %v655, %v657
      %v666 = vmul.f32 %v654, %v658
      %v667 = vmul.f32 %v653, %v659
      %v668 = vmul.f32 %v652, %v660
      %v669 = vpack.c.bf16 %v666, %v665
      %v670 = vpack.c.bf16 %v668, %v667
      %671 = vst [vmem:[#allocation1] ss:$2 sm:$0xff] %v210
      %s672 = scalar_lea.vmem [#allocation1], 16
      %673 = vst [vmem:[%s672] ss:$2 sm:$0xff] %v211
      %v674 = vld.sshfl [vmem:[#allocation1] sm:$0xff pattern:$0x75316420]
      %v675 = vld.sshfl [vmem:[#allocation1 + $0x8] sm:$0xff pattern:$0x75316420]
      %v676 = vld.sshfl [vmem:[#allocation1 + $0x10] sm:$0xff pattern:$0x75316420]
      %v677 = vld.sshfl [vmem:[#allocation1 + $0x18] sm:$0xff pattern:$0x75316420]
      %682 = vrot.lane.b32.xlu0 %v674, 7
      %v683 = vpop.permute.xlu0 %682
      %684 = vrot.lane.b32.xlu0 %v675, 7
      %v685 = vpop.permute.xlu0 %684
      %686 = vrot.lane.b32.xlu0 %v676, 7
      %v687 = vpop.permute.xlu0 %686
      %688 = vrot.lane.b32.xlu0 %v677, 7
      %v689 = vpop.permute.xlu0 %688
      %vm690 = vcmp.lt.s32.totalorder %v260, 7
      %v691 = vsel %vm690, %v687, %v689
      %v692 = vsel %vm690, %v685, %v687
      %v693 = vsel %vm690, %v683, %v685
      %v694 = vsel %vm690, %v689, %v683
      %v696 = vperm.slane %v223, 0
      %v697 = vperm.slane %v223, 1
      %v698 = vperm.slane %v223, 2
      %v699 = vperm.slane %v223, 3
      %v704 = vmul.f32 %v694, %v696
      %v705 = vmul.f32 %v693, %v697
      %v706 = vmul.f32 %v692, %v698
      %v707 = vmul.f32 %v691, %v699
      %v708 = vpack.c.bf16 %v705, %v704
      %v709 = vpack.c.bf16 %v707, %v706
      %710 = vst [vmem:[#allocation1] ss:$2 sm:$0xff] %v210
      %s711 = scalar_lea.vmem [#allocation1], 16
      %712 = vst [vmem:[%s711] ss:$2 sm:$0xff] %v211
      %v713 = vld.sshfl [vmem:[#allocation1] sm:$0xff pattern:$0x75316420]
      %v714 = vld.sshfl [vmem:[#allocation1 + $0x8] sm:$0xff pattern:$0x75316420]
      %v715 = vld.sshfl [vmem:[#allocation1 + $0x10] sm:$0xff pattern:$0x75316420]
      %v716 = vld.sshfl [vmem:[#allocation1 + $0x18] sm:$0xff pattern:$0x75316420]
      %721 = vrot.lane.b32.xlu0 %v713, 1
      %v722 = vpop.permute.xlu0 %721
      %723 = vrot.lane.b32.xlu0 %v714, 1
      %v724 = vpop.permute.xlu0 %723
      %725 = vrot.lane.b32.xlu0 %v715, 1
      %v726 = vpop.permute.xlu0 %725
      %727 = vrot.lane.b32.xlu0 %v716, 1
      %v728 = vpop.permute.xlu0 %727
      %vm729 = vcmp.lt.s32.totalorder %v260, 1
      %v730 = vsel %vm729, %v726, %v728
      %v731 = vsel %vm729, %v724, %v726
      %v732 = vsel %vm729, %v722, %v724
      %v733 = vsel %vm729, %v728, %v722
      %v735 = vperm.slane %v224, 0
      %v736 = vperm.slane %v224, 1
      %v737 = vperm.slane %v224, 2
      %v738 = vperm.slane %v224, 3
      %v743 = vmul.f32 %v733, %v735
      %v744 = vmul.f32 %v732, %v736
      %v745 = vmul.f32 %v731, %v737
      %v746 = vmul.f32 %v730, %v738
      %v747 = vpack.c.bf16 %v744, %v743
      %v748 = vpack.c.bf16 %v746, %v745
      %749 = vst [vmem:[#allocation1] ss:$2 sm:$0xff] %v210
      %s750 = scalar_lea.vmem [#allocation1], 16
      %751 = vst [vmem:[%s750] ss:$2 sm:$0xff] %v211
      %v752 = vld.sshfl [vmem:[#allocation1] sm:$0xff pattern:$0x75316420]
      %v753 = vld.sshfl [vmem:[#allocation1 + $0x8] sm:$0xff pattern:$0x75316420]
      %v754 = vld.sshfl [vmem:[#allocation1 + $0x10] sm:$0xff pattern:$0x75316420]
      %v755 = vld.sshfl [vmem:[#allocation1 + $0x18] sm:$0xff pattern:$0x75316420]
      %v760 = vpack.c.bf16 %v753, %v752
      %v761 = vpack.c.bf16 %v755, %v754
      %762 = vst [vmem:[#allocation1] ss:$2 sm:$0xff] %v210
      %s763 = scalar_lea.vmem [#allocation1], 16
      %764 = vst [vmem:[%s763] ss:$2 sm:$0xff] %v211
      %v765 = vld.sshfl [vmem:[#allocation1] sm:$0xff pattern:$0x75316420]
      %v766 = vld.sshfl [vmem:[#allocation1 + $0x8] sm:$0xff pattern:$0x75316420]
      %v767 = vld.sshfl [vmem:[#allocation1 + $0x10] sm:$0xff pattern:$0x75316420]
      %v768 = vld.sshfl [vmem:[#allocation1 + $0x18] sm:$0xff pattern:$0x75316420]
      %773 = vrot.lane.b32.xlu0 %v765, 127
      %v774 = vpop.permute.xlu0 %773
      %775 = vrot.lane.b32.xlu0 %v766, 127
      %v776 = vpop.permute.xlu0 %775
      %777 = vrot.lane.b32.xlu0 %v767, 127
      %v778 = vpop.permute.xlu0 %777
      %779 = vrot.lane.b32.xlu0 %v768, 127
      %v780 = vpop.permute.xlu0 %779
      %vm781 = vcmp.lt.s32.totalorder %v260, 127
      %v782 = vsel %vm781, %v778, %v780
      %v783 = vsel %vm781, %v776, %v778
      %v784 = vsel %vm781, %v774, %v776
      %v785 = vsel %vm781, %v780, %v774
      %v787 = vperm.slane %v225, 0
      %v788 = vperm.slane %v225, 1
      %v789 = vperm.slane %v225, 2
      %v790 = vperm.slane %v225, 3
      %v795 = vmul.f32 %v784, %v787
      %v796 = vmul.f32 %v783, %v788
      %v797 = vmul.f32 %v782, %v789
      %v798 = vmul.f32 %v785, %v790
      %v799 = vpack.c.bf16 %v796, %v795
      %v800 = vpack.c.bf16 %v798, %v797
      %801 = vst [vmem:[#allocation1] ss:$2 sm:$0xff] %v210
      %s802 = scalar_lea.vmem [#allocation1], 16
      %803 = vst [vmem:[%s802] ss:$2 sm:$0xff] %v211
      %v804 = vld.sshfl [vmem:[#allocation1] sm:$0xff pattern:$0x75316420]
      %v805 = vld.sshfl [vmem:[#allocation1 + $0x8] sm:$0xff pattern:$0x75316420]
      %v806 = vld.sshfl [vmem:[#allocation1 + $0x10] sm:$0xff pattern:$0x75316420]
      %v807 = vld.sshfl [vmem:[#allocation1 + $0x18] sm:$0xff pattern:$0x75316420]
      %812 = vrot.lane.b32.xlu0 %v804, 121
      %v813 = vpop.permute.xlu0 %812
      %814 = vrot.lane.b32.xlu0 %v805, 121
      %v815 = vpop.permute.xlu0 %814
      %816 = vrot.lane.b32.xlu0 %v806, 121
      %v817 = vpop.permute.xlu0 %816
      %818 = vrot.lane.b32.xlu0 %v807, 121
      %v819 = vpop.permute.xlu0 %818
      %vm820 = vcmp.lt.s32.totalorder %v260, 121
      %v821 = vsel %vm820, %v817, %v819
      %v822 = vsel %vm820, %v815, %v817
      %v823 = vsel %vm820, %v813, %v815
      %v824 = vsel %vm820, %v819, %v813
      %v826 = vperm.slane %v226, 0
      %v827 = vperm.slane %v226, 1
      %v828 = vperm.slane %v226, 2
      %v829 = vperm.slane %v226, 3
      %v834 = vmul.f32 %v823, %v826
      %v835 = vmul.f32 %v822, %v827
      %v836 = vmul.f32 %v821, %v828
      %v837 = vmul.f32 %v824, %v829
      %v838 = vpack.c.bf16 %v835, %v834
      %v839 = vpack.c.bf16 %v837, %v836
      %840 = vst [vmem:[#allocation1] ss:$2 sm:$0xff] %v210
      %s841 = scalar_lea.vmem [#allocation1], 16
      %842 = vst [vmem:[%s841] ss:$2 sm:$0xff] %v211
      %v843 = vld.sshfl [vmem:[#allocation1] sm:$0xff pattern:$0x75316420]
      %v844 = vld.sshfl [vmem:[#allocation1 + $0x8] sm:$0xff pattern:$0x75316420]
      %v845 = vld.sshfl [vmem:[#allocation1 + $0x10] sm:$0xff pattern:$0x75316420]
      %v846 = vld.sshfl [vmem:[#allocation1 + $0x18] sm:$0xff pattern:$0x75316420]
      %851 = vrot.lane.b32.xlu0 %v843, 120
      %v852 = vpop.permute.xlu0 %851
      %853 = vrot.lane.b32.xlu0 %v844, 120
      %v854 = vpop.permute.xlu0 %853
      %855 = vrot.lane.b32.xlu0 %v845, 120
      %v856 = vpop.permute.xlu0 %855
      %857 = vrot.lane.b32.xlu0 %v846, 120
      %v858 = vpop.permute.xlu0 %857
      %vm859 = vcmp.lt.s32.totalorder %v260, 120
      %v860 = vsel %vm859, %v856, %v858
      %v861 = vsel %vm859, %v854, %v856
      %v862 = vsel %vm859, %v852, %v854
      %v863 = vsel %vm859, %v858, %v852
      %v865 = vperm.slane %v227, 0
      %v866 = vperm.slane %v227, 1
      %v867 = vperm.slane %v227, 2
      %v868 = vperm.slane %v227, 3
      %v873 = vmul.f32 %v862, %v865
      %v874 = vmul.f32 %v861, %v866
      %v875 = vmul.f32 %v860, %v867
      %v876 = vmul.f32 %v863, %v868
      %v877 = vpack.c.bf16 %v874, %v873
      %v878 = vpack.c.bf16 %v876, %v875
      %879 = vst [vmem:[#allocation1] ss:$2 sm:$0xff] %v210
      %s880 = scalar_lea.vmem [#allocation1], 16
      %881 = vst [vmem:[%s880] ss:$2 sm:$0xff] %v211
      %v882 = vld.sshfl [vmem:[#allocation1] sm:$0xff pattern:$0x75316420]
      %v883 = vld.sshfl [vmem:[#allocation1 + $0x8] sm:$0xff pattern:$0x75316420]
      %v884 = vld.sshfl [vmem:[#allocation1 + $0x10] sm:$0xff pattern:$0x75316420]
      %v885 = vld.sshfl [vmem:[#allocation1 + $0x18] sm:$0xff pattern:$0x75316420]
      %890 = vrot.lane.b32.xlu0 %v882, 119
      %v891 = vpop.permute.xlu0 %890
      %892 = vrot.lane.b32.xlu0 %v883, 119
      %v893 = vpop.permute.xlu0 %892
      %894 = vrot.lane.b32.xlu0 %v884, 119
      %v895 = vpop.permute.xlu0 %894
      %896 = vrot.lane.b32.xlu0 %v885, 119
      %v897 = vpop.permute.xlu0 %896
      %vm898 = vcmp.lt.s32.totalorder %v260, 119
      %v899 = vsel %vm898, %v895, %v897
      %v900 = vsel %vm898, %v893, %v895
      %v901 = vsel %vm898, %v891, %v893
      %v902 = vsel %vm898, %v897, %v891
      %v904 = vperm.slane %v228, 0
      %v905 = vperm.slane %v228, 1
      %v906 = vperm.slane %v228, 2
      %v907 = vperm.slane %v228, 3
      %v912 = vmul.f32 %v901, %v904
      %v913 = vmul.f32 %v900, %v905
      %v914 = vmul.f32 %v899, %v906
      %v915 = vmul.f32 %v902, %v907
      %v916 = vpack.c.bf16 %v913, %v912
      %v917 = vpack.c.bf16 %v915, %v914
      %918 = vst [vmem:[#allocation1] ss:$2 sm:$0xff] %v210
      %s919 = scalar_lea.vmem [#allocation1], 16
      %920 = vst [vmem:[%s919] ss:$2 sm:$0xff] %v211
      %v921 = vld.sshfl [vmem:[#allocation1] sm:$0xff pattern:$0x75316420]
      %v922 = vld.sshfl [vmem:[#allocation1 + $0x8] sm:$0xff pattern:$0x75316420]
      %v923 = vld.sshfl [vmem:[#allocation1 + $0x10] sm:$0xff pattern:$0x75316420]
      %v924 = vld.sshfl [vmem:[#allocation1 + $0x18] sm:$0xff pattern:$0x75316420]
      %929 = vrot.lane.b32.xlu0 %v921, 73
      %v930 = vpop.permute.xlu0 %929
      %931 = vrot.lane.b32.xlu0 %v922, 73
      %v932 = vpop.permute.xlu0 %931
      %933 = vrot.lane.b32.xlu0 %v923, 73
      %v934 = vpop.permute.xlu0 %933
      %935 = vrot.lane.b32.xlu0 %v924, 73
      %v936 = vpop.permute.xlu0 %935
      %v937 = vsel %vm261, %v934, %v936
      %v938 = vsel %vm261, %v932, %v934
      %v939 = vsel %vm261, %v930, %v932
      %v940 = vsel %vm261, %v936, %v930
      %v942 = vperm.slane %v229, 0
      %v943 = vperm.slane %v229, 1
      %v944 = vperm.slane %v229, 2
      %v945 = vperm.slane %v229, 3
      %v950 = vmul.f32 %v939, %v942
      %v951 = vmul.f32 %v938, %v943
      %v952 = vmul.f32 %v937, %v944
      %v953 = vmul.f32 %v940, %v945
      %v954 = vpack.c.bf16 %v951, %v950
      %v955 = vpack.c.bf16 %v953, %v952
      %956 = vst [vmem:[#allocation1] ss:$2 sm:$0xff] %v210
      %s957 = scalar_lea.vmem [#allocation1], 16
      %958 = vst [vmem:[%s957] ss:$2 sm:$0xff] %v211
      %v959 = vld.sshfl [vmem:[#allocation1] sm:$0xff pattern:$0x75316420]
      %v960 = vld.sshfl [vmem:[#allocation1 + $0x8] sm:$0xff pattern:$0x75316420]
      %v961 = vld.sshfl [vmem:[#allocation1 + $0x10] sm:$0xff pattern:$0x75316420]
      %v962 = vld.sshfl [vmem:[#allocation1 + $0x18] sm:$0xff pattern:$0x75316420]
      %967 = vrot.lane.b32.xlu0 %v959, 72
      %v968 = vpop.permute.xlu0 %967
      %969 = vrot.lane.b32.xlu0 %v960, 72
      %v970 = vpop.permute.xlu0 %969
      %971 = vrot.lane.b32.xlu0 %v961, 72
      %v972 = vpop.permute.xlu0 %971
      %973 = vrot.lane.b32.xlu0 %v962, 72
      %v974 = vpop.permute.xlu0 %973
      %v975 = vsel %vm300, %v972, %v974
      %v976 = vsel %vm300, %v970, %v972
      %v977 = vsel %vm300, %v968, %v970
      %v978 = vsel %vm300, %v974, %v968
      %v980 = vperm.slane %v230, 0
      %v981 = vperm.slane %v230, 1
      %v982 = vperm.slane %v230, 2
      %v983 = vperm.slane %v230, 3
      %v988 = vmul.f32 %v977, %v980
      %v989 = vmul.f32 %v976, %v981
      %v990 = vmul.f32 %v975, %v982
      %v991 = vmul.f32 %v978, %v983
      %v992 = vpack.c.bf16 %v989, %v988
      %v993 = vpack.c.bf16 %v991, %v990
      %994 = vst [vmem:[#allocation1] ss:$2 sm:$0xff] %v210
      %s995 = scalar_lea.vmem [#allocation1], 16
      %996 = vst [vmem:[%s995] ss:$2 sm:$0xff] %v211
      %v997 = vld.sshfl [vmem:[#allocation1] sm:$0xff pattern:$0x75316420]
      %v998 = vld.sshfl [vmem:[#allocation1 + $0x8] sm:$0xff pattern:$0x75316420]
      %v999 = vld.sshfl [vmem:[#allocation1 + $0x10] sm:$0xff pattern:$0x75316420]
      %v1000 = vld.sshfl [vmem:[#allocation1 + $0x18] sm:$0xff pattern:$0x75316420]
      %1005 = vrot.lane.b32.xlu0 %v997, 71
      %v1006 = vpop.permute.xlu0 %1005
      %1007 = vrot.lane.b32.xlu0 %v998, 71
      %v1008 = vpop.permute.xlu0 %1007
      %1009 = vrot.lane.b32.xlu0 %v999, 71
      %v1010 = vpop.permute.xlu0 %1009
      %1011 = vrot.lane.b32.xlu0 %v1000, 71
      %v1012 = vpop.permute.xlu0 %1011
      %v1013 = vsel %vm339, %v1010, %v1012
      %v1014 = vsel %vm339, %v1008, %v1010
      %v1015 = vsel %vm339, %v1006, %v1008
      %v1016 = vsel %vm339, %v1012, %v1006
      %v1018 = vperm.slane %v231, 0
      %v1019 = vperm.slane %v231, 1
      %v1020 = vperm.slane %v231, 2
      %v1021 = vperm.slane %v231, 3
      %v1026 = vmul.f32 %v1015, %v1018
      %v1027 = vmul.f32 %v1014, %v1019
      %v1028 = vmul.f32 %v1013, %v1020
      %v1029 = vmul.f32 %v1016, %v1021
      %v1030 = vpack.c.bf16 %v1027, %v1026
      %v1031 = vpack.c.bf16 %v1029, %v1028
      %1032 = vst [vmem:[#allocation1] ss:$2 sm:$0xff] %v210
      %s1033 = scalar_lea.vmem [#allocation1], 16
      %1034 = vst [vmem:[%s1033] ss:$2 sm:$0xff] %v211
      %v1035 = vld.sshfl [vmem:[#allocation1] sm:$0xff pattern:$0x75316420]
      %v1036 = vld.sshfl [vmem:[#allocation1 + $0x8] sm:$0xff pattern:$0x75316420]
      %v1037 = vld.sshfl [vmem:[#allocation1 + $0x10] sm:$0xff pattern:$0x75316420]
      %v1038 = vld.sshfl [vmem:[#allocation1 + $0x18] sm:$0xff pattern:$0x75316420]
      %1043 = vrot.lane.b32.xlu0 %v1035, 65
      %v1044 = vpop.permute.xlu0 %1043
      %1045 = vrot.lane.b32.xlu0 %v1036, 65
      %v1046 = vpop.permute.xlu0 %1045
      %1047 = vrot.lane.b32.xlu0 %v1037, 65
      %v1048 = vpop.permute.xlu0 %1047
      %1049 = vrot.lane.b32.xlu0 %v1038, 65
      %v1050 = vpop.permute.xlu0 %1049
      %v1051 = vsel %vm378, %v1048, %v1050
      %v1052 = vsel %vm378, %v1046, %v1048
      %v1053 = vsel %vm378, %v1044, %v1046
      %v1054 = vsel %vm378, %v1050, %v1044
      %v1056 = vperm.slane %v232, 0
      %v1057 = vperm.slane %v232, 1
      %v1058 = vperm.slane %v232, 2
      %v1059 = vperm.slane %v232, 3
      %v1064 = vmul.f32 %v1053, %v1056
      %v1065 = vmul.f32 %v1052, %v1057
      %v1066 = vmul.f32 %v1051, %v1058
      %v1067 = vmul.f32 %v1054, %v1059
      %v1068 = vpack.c.bf16 %v1065, %v1064
      %v1069 = vpack.c.bf16 %v1067, %v1066
      %1070 = vst [vmem:[#allocation1] ss:$2 sm:$0xff] %v210
      %s1071 = scalar_lea.vmem [#allocation1], 16
      %1072 = vst [vmem:[%s1071] ss:$2 sm:$0xff] %v211
      %v1073 = vld.sshfl [vmem:[#allocation1] sm:$0xff pattern:$0x75316420]
      %v1074 = vld.sshfl [vmem:[#allocation1 + $0x8] sm:$0xff pattern:$0x75316420]
      %v1075 = vld.sshfl [vmem:[#allocation1 + $0x10] sm:$0xff pattern:$0x75316420]
      %v1076 = vld.sshfl [vmem:[#allocation1 + $0x18] sm:$0xff pattern:$0x75316420]
      %1081 = vrot.lane.b32.xlu0 %v1073, 64
      %v1082 = vpop.permute.xlu0 %1081
      %1083 = vrot.lane.b32.xlu0 %v1074, 64
      %v1084 = vpop.permute.xlu0 %1083
      %1085 = vrot.lane.b32.xlu0 %v1075, 64
      %v1086 = vpop.permute.xlu0 %1085
      %1087 = vrot.lane.b32.xlu0 %v1076, 64
      %v1088 = vpop.permute.xlu0 %1087
      %v1089 = vsel %vm417, %v1086, %v1088
      %v1090 = vsel %vm417, %v1084, %v1086
      %v1091 = vsel %vm417, %v1082, %v1084
      %v1092 = vsel %vm417, %v1088, %v1082
      %v1094 = vperm.slane %v233, 0
      %v1095 = vperm.slane %v233, 1
      %v1096 = vperm.slane %v233, 2
      %v1097 = vperm.slane %v233, 3
      %v1102 = vmul.f32 %v1091, %v1094
      %v1103 = vmul.f32 %v1090, %v1095
      %v1104 = vmul.f32 %v1089, %v1096
      %v1105 = vmul.f32 %v1092, %v1097
      %v1106 = vpack.c.bf16 %v1103, %v1102
      %v1107 = vpack.c.bf16 %v1105, %v1104
      %1108 = vst [vmem:[#allocation1] ss:$2 sm:$0xff] %v210
      %s1109 = scalar_lea.vmem [#allocation1], 16
      %1110 = vst [vmem:[%s1109] ss:$2 sm:$0xff] %v211
      %v1111 = vld.sshfl [vmem:[#allocation1] sm:$0xff pattern:$0x75316420]
      %v1112 = vld.sshfl [vmem:[#allocation1 + $0x8] sm:$0xff pattern:$0x75316420]
      %v1113 = vld.sshfl [vmem:[#allocation1 + $0x10] sm:$0xff pattern:$0x75316420]
      %v1114 = vld.sshfl [vmem:[#allocation1 + $0x18] sm:$0xff pattern:$0x75316420]
      %1119 = vrot.lane.b32.xlu0 %v1111, 63
      %v1120 = vpop.permute.xlu0 %1119
      %1121 = vrot.lane.b32.xlu0 %v1112, 63
      %v1122 = vpop.permute.xlu0 %1121
      %1123 = vrot.lane.b32.xlu0 %v1113, 63
      %v1124 = vpop.permute.xlu0 %1123
      %1125 = vrot.lane.b32.xlu0 %v1114, 63
      %v1126 = vpop.permute.xlu0 %1125
      %v1127 = vsel %vm456, %v1124, %v1126
      %v1128 = vsel %vm456, %v1122, %v1124
      %v1129 = vsel %vm456, %v1120, %v1122
      %v1130 = vsel %vm456, %v1126, %v1120
      %v1132 = vperm.slane %v234, 0
      %v1133 = vperm.slane %v234, 1
      %v1134 = vperm.slane %v234, 2
      %v1135 = vperm.slane %v234, 3
      %v1140 = vmul.f32 %v1129, %v1132
      %v1141 = vmul.f32 %v1128, %v1133
      %v1142 = vmul.f32 %v1127, %v1134
      %v1143 = vmul.f32 %v1130, %v1135
      %v1144 = vpack.c.bf16 %v1141, %v1140
      %v1145 = vpack.c.bf16 %v1143, %v1142
      %1146 = vst [vmem:[#allocation1] ss:$2 sm:$0xff] %v210
      %s1147 = scalar_lea.vmem [#allocation1], 16
      %1148 = vst [vmem:[%s1147] ss:$2 sm:$0xff] %v211
      %v1149 = vld.sshfl [vmem:[#allocation1] sm:$0xff pattern:$0x75316420]
      %v1150 = vld.sshfl [vmem:[#allocation1 + $0x8] sm:$0xff pattern:$0x75316420]
      %v1151 = vld.sshfl [vmem:[#allocation1 + $0x10] sm:$0xff pattern:$0x75316420]
      %v1152 = vld.sshfl [vmem:[#allocation1 + $0x18] sm:$0xff pattern:$0x75316420]
      %1157 = vrot.lane.b32.xlu0 %v1149, 57
      %v1158 = vpop.permute.xlu0 %1157
      %1159 = vrot.lane.b32.xlu0 %v1150, 57
      %v1160 = vpop.permute.xlu0 %1159
      %1161 = vrot.lane.b32.xlu0 %v1151, 57
      %v1162 = vpop.permute.xlu0 %1161
      %1163 = vrot.lane.b32.xlu0 %v1152, 57
      %v1164 = vpop.permute.xlu0 %1163
      %v1165 = vsel %vm495, %v1162, %v1164
      %v1166 = vsel %vm495, %v1160, %v1162
      %v1167 = vsel %vm495, %v1158, %v1160
      %v1168 = vsel %vm495, %v1164, %v1158
      %v1170 = vperm.slane %v235, 0
      %v1171 = vperm.slane %v235, 1
      %v1172 = vperm.slane %v235, 2
      %v1173 = vperm.slane %v235, 3
      %v1178 = vmul.f32 %v1167, %v1170
      %v1179 = vmul.f32 %v1166, %v1171
      %v1180 = vmul.f32 %v1165, %v1172
      %v1181 = vmul.f32 %v1168, %v1173
      %v1182 = vpack.c.bf16 %v1179, %v1178
      %v1183 = vpack.c.bf16 %v1181, %v1180
      %1184 = vst [vmem:[#allocation1] ss:$2 sm:$0xff] %v210
      %s1185 = scalar_lea.vmem [#allocation1], 16
      %1186 = vst [vmem:[%s1185] ss:$2 sm:$0xff] %v211
      %v1187 = vld.sshfl [vmem:[#allocation1] sm:$0xff pattern:$0x75316420]
      %v1188 = vld.sshfl [vmem:[#allocation1 + $0x8] sm:$0xff pattern:$0x75316420]
      %v1189 = vld.sshfl [vmem:[#allocation1 + $0x10] sm:$0xff pattern:$0x75316420]
      %v1190 = vld.sshfl [vmem:[#allocation1 + $0x18] sm:$0xff pattern:$0x75316420]
      %1195 = vrot.lane.b32.xlu0 %v1187, 56
      %v1196 = vpop.permute.xlu0 %1195
      %1197 = vrot.lane.b32.xlu0 %v1188, 56
      %v1198 = vpop.permute.xlu0 %1197
      %1199 = vrot.lane.b32.xlu0 %v1189, 56
      %v1200 = vpop.permute.xlu0 %1199
      %1201 = vrot.lane.b32.xlu0 %v1190, 56
      %v1202 = vpop.permute.xlu0 %1201
      %v1203 = vsel %vm534, %v1200, %v1202
      %v1204 = vsel %vm534, %v1198, %v1200
      %v1205 = vsel %vm534, %v1196, %v1198
      %v1206 = vsel %vm534, %v1202, %v1196
      %v1208 = vperm.slane %v236, 0
      %v1209 = vperm.slane %v236, 1
      %v1210 = vperm.slane %v236, 2
      %v1211 = vperm.slane %v236, 3
      %v1216 = vmul.f32 %v1205, %v1208
      %v1217 = vmul.f32 %v1204, %v1209
      %v1218 = vmul.f32 %v1203, %v1210
      %v1219 = vmul.f32 %v1206, %v1211
      %v1220 = vpack.c.bf16 %v1217, %v1216
      %v1221 = vpack.c.bf16 %v1219, %v1218
      %1222 = vst [vmem:[#allocation1] ss:$2 sm:$0xff] %v210
      %s1223 = scalar_lea.vmem [#allocation1], 16
      %1224 = vst [vmem:[%s1223] ss:$2 sm:$0xff] %v211
      %v1225 = vld.sshfl [vmem:[#allocation1] sm:$0xff pattern:$0x75316420]
      %v1226 = vld.sshfl [vmem:[#allocation1 + $0x8] sm:$0xff pattern:$0x75316420]
      %v1227 = vld.sshfl [vmem:[#allocation1 + $0x10] sm:$0xff pattern:$0x75316420]
      %v1228 = vld.sshfl [vmem:[#allocation1 + $0x18] sm:$0xff pattern:$0x75316420]
      %1233 = vrot.lane.b32.xlu0 %v1225, 55
      %v1234 = vpop.permute.xlu0 %1233
      %1235 = vrot.lane.b32.xlu0 %v1226, 55
      %v1236 = vpop.permute.xlu0 %1235
      %1237 = vrot.lane.b32.xlu0 %v1227, 55
      %v1238 = vpop.permute.xlu0 %1237
      %1239 = vrot.lane.b32.xlu0 %v1228, 55
      %v1240 = vpop.permute.xlu0 %1239
      %v1241 = vsel %vm573, %v1238, %v1240
      %v1242 = vsel %vm573, %v1236, %v1238
      %v1243 = vsel %vm573, %v1234, %v1236
      %v1244 = vsel %vm573, %v1240, %v1234
      %v1246 = vperm.slane %v237, 0
      %v1247 = vperm.slane %v237, 1
      %v1248 = vperm.slane %v237, 2
      %v1249 = vperm.slane %v237, 3
      %v1254 = vmul.f32 %v1243, %v1246
      %v1255 = vmul.f32 %v1242, %v1247
      %v1256 = vmul.f32 %v1241, %v1248
      %v1257 = vmul.f32 %v1244, %v1249
      %v1258 = vpack.c.bf16 %v1255, %v1254
      %v1259 = vpack.c.bf16 %v1257, %v1256
      %v1262 = vunpack.c.l.b16 %v279
      %v1263 = vunpack.c.h.b16 %v279
      %v1264 = vunpack.c.l.b16 %v280
      %v1265 = vunpack.c.h.b16 %v280
      %v1266 = vpack.c.b16 %v1262, %v1262
      %v1267 = vpack.c.b16 %v1263, %v1263
      %v1268 = vpack.c.b16 %v1264, %v1264
      %v1269 = vpack.c.b16 %v1265, %v1265
      %v1272 = vunpack.c.l.b16 %v318
      %v1273 = vunpack.c.h.b16 %v318
      %v1274 = vunpack.c.l.b16 %v319
      %v1275 = vunpack.c.h.b16 %v319
      %v1276 = vpack.c.b16 %v1272, %v1272
      %v1277 = vpack.c.b16 %v1273, %v1273
      %v1278 = vpack.c.b16 %v1274, %v1274
      %v1279 = vpack.c.b16 %v1275, %v1275
      %v1280 = vrot.slane %v1276, 6
      %v1281 = vrot.slane %v1277, 6
      %v1282 = vrot.slane %v1278, 6
      %v1283 = vrot.slane %v1279, 6
      %v1286 = vunpack.c.l.b16 %v357
      %v1287 = vunpack.c.h.b16 %v357
      %v1288 = vunpack.c.l.b16 %v358
      %v1289 = vunpack.c.h.b16 %v358
      %v1290 = vpack.c.b16 %v1286, %v1286
      %v1291 = vpack.c.b16 %v1287, %v1287
      %v1292 = vpack.c.b16 %v1288, %v1288
      %v1293 = vpack.c.b16 %v1289, %v1289
      %v1296 = vunpack.c.l.b16 %v396
      %v1297 = vunpack.c.h.b16 %v396
      %v1298 = vunpack.c.l.b16 %v397
      %v1299 = vunpack.c.h.b16 %v397
      %v1300 = vpack.c.b16 %v1296, %v1296
      %v1301 = vpack.c.b16 %v1297, %v1297
      %v1302 = vpack.c.b16 %v1298, %v1298
      %v1303 = vpack.c.b16 %v1299, %v1299
      %v1304 = vrot.slane %v1300, 2
      %v1305 = vrot.slane %v1301, 2
      %v1306 = vrot.slane %v1302, 2
      %v1307 = vrot.slane %v1303, 2
      %v1310 = vunpack.c.l.b16 %v435
      %v1311 = vunpack.c.h.b16 %v435
      %v1312 = vunpack.c.l.b16 %v436
      %v1313 = vunpack.c.h.b16 %v436
      %v1314 = vpack.c.b16 %v1310, %v1310
      %v1315 = vpack.c.b16 %v1311, %v1311
      %v1316 = vpack.c.b16 %v1312, %v1312
      %v1317 = vpack.c.b16 %v1313, %v1313
      %v1320 = vunpack.c.l.b16 %v474
      %v1321 = vunpack.c.h.b16 %v474
      %v1322 = vunpack.c.l.b16 %v475
      %v1323 = vunpack.c.h.b16 %v475
      %v1324 = vpack.c.b16 %v1320, %v1320
      %v1325 = vpack.c.b16 %v1321, %v1321
      %v1326 = vpack.c.b16 %v1322, %v1322
      %v1327 = vpack.c.b16 %v1323, %v1323
      %v1328 = vrot.slane %v1324, 6
      %v1329 = vrot.slane %v1325, 6
      %v1330 = vrot.slane %v1326, 6
      %v1331 = vrot.slane %v1327, 6
      %v1334 = vunpack.c.l.b16 %v513
      %v1335 = vunpack.c.h.b16 %v513
      %v1336 = vunpack.c.l.b16 %v514
      %v1337 = vunpack.c.h.b16 %v514
      %v1338 = vpack.c.b16 %v1334, %v1334
      %v1339 = vpack.c.b16 %v1335, %v1335
      %v1340 = vpack.c.b16 %v1336, %v1336
      %v1341 = vpack.c.b16 %v1337, %v1337
      %v1344 = vunpack.c.l.b16 %v552
      %v1345 = vunpack.c.h.b16 %v552
      %v1346 = vunpack.c.l.b16 %v553
      %v1347 = vunpack.c.h.b16 %v553
      %v1348 = vpack.c.b16 %v1344, %v1344
      %v1349 = vpack.c.b16 %v1345, %v1345
      %v1350 = vpack.c.b16 %v1346, %v1346
      %v1351 = vpack.c.b16 %v1347, %v1347
      %v1352 = vrot.slane %v1348, 2
      %v1353 = vrot.slane %v1349, 2
      %v1354 = vrot.slane %v1350, 2
      %v1355 = vrot.slane %v1351, 2
      %v1358 = vunpack.c.l.b16 %v591
      %v1359 = vunpack.c.h.b16 %v591
      %v1360 = vunpack.c.l.b16 %v592
      %v1361 = vunpack.c.h.b16 %v592
      %v1362 = vpack.c.b16 %v1358, %v1358
      %v1363 = vpack.c.b16 %v1359, %v1359
      %v1364 = vpack.c.b16 %v1360, %v1360
      %v1365 = vpack.c.b16 %v1361, %v1361
      %v1368 = vunpack.c.l.b16 %v630
      %v1369 = vunpack.c.h.b16 %v630
      %v1370 = vunpack.c.l.b16 %v631
      %v1371 = vunpack.c.h.b16 %v631
      %v1372 = vpack.c.b16 %v1368, %v1368
      %v1373 = vpack.c.b16 %v1369, %v1369
      %v1374 = vpack.c.b16 %v1370, %v1370
      %v1375 = vpack.c.b16 %v1371, %v1371
      %v1376 = vrot.slane %v1372, 6
      %v1377 = vrot.slane %v1373, 6
      %v1378 = vrot.slane %v1374, 6
      %v1379 = vrot.slane %v1375, 6
      %v1382 = vunpack.c.l.b16 %v669
      %v1383 = vunpack.c.h.b16 %v669
      %v1384 = vunpack.c.l.b16 %v670
      %v1385 = vunpack.c.h.b16 %v670
      %v1386 = vpack.c.b16 %v1382, %v1382
      %v1387 = vpack.c.b16 %v1383, %v1383
      %v1388 = vpack.c.b16 %v1384, %v1384
      %v1389 = vpack.c.b16 %v1385, %v1385
      %v1392 = vunpack.c.l.b16 %v708
      %v1393 = vunpack.c.h.b16 %v708
      %v1394 = vunpack.c.l.b16 %v709
      %v1395 = vunpack.c.h.b16 %v709
      %v1396 = vpack.c.b16 %v1392, %v1392
      %v1397 = vpack.c.b16 %v1393, %v1393
      %v1398 = vpack.c.b16 %v1394, %v1394
      %v1399 = vpack.c.b16 %v1395, %v1395
      %v1400 = vrot.slane %v1396, 2
      %v1401 = vrot.slane %v1397, 2
      %v1402 = vrot.slane %v1398, 2
      %v1403 = vrot.slane %v1399, 2
      %v1406 = vunpack.c.l.b16 %v747
      %v1407 = vunpack.c.h.b16 %v747
      %v1408 = vunpack.c.l.b16 %v748
      %v1409 = vunpack.c.h.b16 %v748
      %v1410 = vpack.c.b16 %v1406, %v1406
      %v1411 = vpack.c.b16 %v1407, %v1407
      %v1412 = vpack.c.b16 %v1408, %v1408
      %v1413 = vpack.c.b16 %v1409, %v1409
      %v1416 = vunpack.c.l.b16 %v760
      %v1417 = vunpack.c.h.b16 %v760
      %v1418 = vunpack.c.l.b16 %v761
      %v1419 = vunpack.c.h.b16 %v761
      %v1420 = vpack.c.b16 %v1416, %v1416
      %v1421 = vpack.c.b16 %v1417, %v1417
      %v1422 = vpack.c.b16 %v1418, %v1418
      %v1423 = vpack.c.b16 %v1419, %v1419
      %v1424 = vrot.slane %v1420, 6
      %v1425 = vrot.slane %v1421, 6
      %v1426 = vrot.slane %v1422, 6
      %v1427 = vrot.slane %v1423, 6
      %v1430 = vunpack.c.l.b16 %v799
      %v1431 = vunpack.c.h.b16 %v799
      %v1432 = vunpack.c.l.b16 %v800
      %v1433 = vunpack.c.h.b16 %v800
      %v1434 = vpack.c.b16 %v1430, %v1430
      %v1435 = vpack.c.b16 %v1431, %v1431
      %v1436 = vpack.c.b16 %v1432, %v1432
      %v1437 = vpack.c.b16 %v1433, %v1433
      %v1440 = vunpack.c.l.b16 %v838
      %v1441 = vunpack.c.h.b16 %v838
      %v1442 = vunpack.c.l.b16 %v839
      %v1443 = vunpack.c.h.b16 %v839
      %v1444 = vpack.c.b16 %v1440, %v1440
      %v1445 = vpack.c.b16 %v1441, %v1441
      %v1446 = vpack.c.b16 %v1442, %v1442
      %v1447 = vpack.c.b16 %v1443, %v1443
      %v1448 = vrot.slane %v1444, 2
      %v1449 = vrot.slane %v1445, 2
      %v1450 = vrot.slane %v1446, 2
      %v1451 = vrot.slane %v1447, 2
      %vm1452 = vcmask 1041408
      %v1455 = vsel %vm1452, %v1266, %v1280
      %v1458 = vsel %vm1452, %v1267, %v1281
      %v1461 = vsel %vm1452, %v1268, %v1282
      %v1464 = vsel %vm1452, %v1269, %v1283
      %vm1465 = vcmask 1043456
      %v1467 = vsel %vm1465, %v1455, %v1290
      %v1469 = vsel %vm1465, %v1458, %v1291
      %v1471 = vsel %vm1465, %v1461, %v1292
      %v1473 = vsel %vm1465, %v1464, %v1293
      %vm1474 = vcmask 1045504
      %v1476 = vsel %vm1474, %v1467, %v1304
      %v1479 = vsel %vm1474, %v1469, %v1305
      %v1482 = vsel %vm1474, %v1471, %v1306
      %v1485 = vsel %vm1474, %v1473, %v1307
      %v1489 = vsel %vm1452, %v1314, %v1328
      %v1492 = vsel %vm1452, %v1315, %v1329
      %v1495 = vsel %vm1452, %v1316, %v1330
      %v1498 = vsel %vm1452, %v1317, %v1331
      %v1500 = vsel %vm1465, %v1489, %v1338
      %v1502 = vsel %vm1465, %v1492, %v1339
      %v1504 = vsel %vm1465, %v1495, %v1340
      %v1506 = vsel %vm1465, %v1498, %v1341
      %v1508 = vsel %vm1474, %v1500, %v1352
      %v1511 = vsel %vm1474, %v1502, %v1353
      %v1514 = vsel %vm1474, %v1504, %v1354
      %v1517 = vsel %vm1474, %v1506, %v1355
      %v1521 = vsel %vm1452, %v1362, %v1376
      %v1524 = vsel %vm1452, %v1363, %v1377
      %v1527 = vsel %vm1452, %v1364, %v1378
      %v1530 = vsel %vm1452, %v1365, %v1379
      %v1532 = vsel %vm1465, %v1521, %v1386
      %v1534 = vsel %vm1465, %v1524, %v1387
      %v1536 = vsel %vm1465, %v1527, %v1388
      %v1538 = vsel %vm1465, %v1530, %v1389
      %v1540 = vsel %vm1474, %v1532, %v1400
      %v1543 = vsel %vm1474, %v1534, %v1401
      %v1546 = vsel %vm1474, %v1536, %v1402
      %v1549 = vsel %vm1474, %v1538, %v1403
      %v1553 = vsel %vm1452, %v1410, %v1424
      %v1556 = vsel %vm1452, %v1411, %v1425
      %v1559 = vsel %vm1452, %v1412, %v1426
      %v1562 = vsel %vm1452, %v1413, %v1427
      %v1564 = vsel %vm1465, %v1553, %v1434
      %v1566 = vsel %vm1465, %v1556, %v1435
      %v1568 = vsel %vm1465, %v1559, %v1436
      %v1570 = vsel %vm1465, %v1562, %v1437
      %v1572 = vsel %vm1474, %v1564, %v1448
      %v1575 = vsel %vm1474, %v1566, %v1449
      %v1578 = vsel %vm1474, %v1568, %v1450
      %v1581 = vsel %vm1474, %v1570, %v1451
      %v1585 = vunpack.c.l.b16 %v877
      %v1586 = vunpack.c.h.b16 %v877
      %v1587 = vunpack.c.l.b16 %v878
      %v1588 = vunpack.c.h.b16 %v878
      %v1589 = vpack.c.b16 %v1585, %v1585
      %v1590 = vpack.c.b16 %v1586, %v1586
      %v1591 = vpack.c.b16 %v1587, %v1587
      %v1592 = vpack.c.b16 %v1588, %v1588
      %v1595 = vunpack.c.l.b16 %v916
      %v1596 = vunpack.c.h.b16 %v916
      %v1597 = vunpack.c.l.b16 %v917
      %v1598 = vunpack.c.h.b16 %v917
      %v1599 = vpack.c.b16 %v1595, %v1595
      %v1600 = vpack.c.b16 %v1596, %v1596
      %v1601 = vpack.c.b16 %v1597, %v1597
      %v1602 = vpack.c.b16 %v1598, %v1598
      %v1603 = vrot.slane %v1599, 6
      %v1604 = vrot.slane %v1600, 6
      %v1605 = vrot.slane %v1601, 6
      %v1606 = vrot.slane %v1602, 6
      %v1609 = vunpack.c.l.b16 %v954
      %v1610 = vunpack.c.h.b16 %v954
      %v1611 = vunpack.c.l.b16 %v955
      %v1612 = vunpack.c.h.b16 %v955
      %v1613 = vpack.c.b16 %v1609, %v1609
      %v1614 = vpack.c.b16 %v1610, %v1610
      %v1615 = vpack.c.b16 %v1611, %v1611
      %v1616 = vpack.c.b16 %v1612, %v1612
      %v1619 = vunpack.c.l.b16 %v992
      %v1620 = vunpack.c.h.b16 %v992
      %v1621 = vunpack.c.l.b16 %v993
      %v1622 = vunpack.c.h.b16 %v993
      %v1623 = vpack.c.b16 %v1619, %v1619
      %v1624 = vpack.c.b16 %v1620, %v1620
      %v1625 = vpack.c.b16 %v1621, %v1621
      %v1626 = vpack.c.b16 %v1622, %v1622
      %v1627 = vrot.slane %v1623, 2
      %v1628 = vrot.slane %v1624, 2
      %v1629 = vrot.slane %v1625, 2
      %v1630 = vrot.slane %v1626, 2
      %v1633 = vunpack.c.l.b16 %v1030
      %v1634 = vunpack.c.h.b16 %v1030
      %v1635 = vunpack.c.l.b16 %v1031
      %v1636 = vunpack.c.h.b16 %v1031
      %v1637 = vpack.c.b16 %v1633, %v1633
      %v1638 = vpack.c.b16 %v1634, %v1634
      %v1639 = vpack.c.b16 %v1635, %v1635
      %v1640 = vpack.c.b16 %v1636, %v1636
      %v1643 = vunpack.c.l.b16 %v1068
      %v1644 = vunpack.c.h.b16 %v1068
      %v1645 = vunpack.c.l.b16 %v1069
      %v1646 = vunpack.c.h.b16 %v1069
      %v1647 = vpack.c.b16 %v1643, %v1643
      %v1648 = vpack.c.b16 %v1644, %v1644
      %v1649 = vpack.c.b16 %v1645, %v1645
      %v1650 = vpack.c.b16 %v1646, %v1646
      %v1651 = vrot.slane %v1647, 6
      %v1652 = vrot.slane %v1648, 6
      %v1653 = vrot.slane %v1649, 6
      %v1654 = vrot.slane %v1650, 6
      %v1657 = vunpack.c.l.b16 %v1106
      %v1658 = vunpack.c.h.b16 %v1106
      %v1659 = vunpack.c.l.b16 %v1107
      %v1660 = vunpack.c.h.b16 %v1107
      %v1661 = vpack.c.b16 %v1657, %v1657
      %v1662 = vpack.c.b16 %v1658, %v1658
      %v1663 = vpack.c.b16 %v1659, %v1659
      %v1664 = vpack.c.b16 %v1660, %v1660
      %v1667 = vunpack.c.l.b16 %v1144
      %v1668 = vunpack.c.h.b16 %v1144
      %v1669 = vunpack.c.l.b16 %v1145
      %v1670 = vunpack.c.h.b16 %v1145
      %v1671 = vpack.c.b16 %v1667, %v1667
      %v1672 = vpack.c.b16 %v1668, %v1668
      %v1673 = vpack.c.b16 %v1669, %v1669
      %v1674 = vpack.c.b16 %v1670, %v1670
      %v1675 = vrot.slane %v1671, 2
      %v1676 = vrot.slane %v1672, 2
      %v1677 = vrot.slane %v1673, 2
      %v1678 = vrot.slane %v1674, 2
      %v1681 = vunpack.c.l.b16 %v1182
      %v1682 = vunpack.c.h.b16 %v1182
      %v1683 = vunpack.c.l.b16 %v1183
      %v1684 = vunpack.c.h.b16 %v1183
      %v1685 = vpack.c.b16 %v1681, %v1681
      %v1686 = vpack.c.b16 %v1682, %v1682
      %v1687 = vpack.c.b16 %v1683, %v1683
      %v1688 = vpack.c.b16 %v1684, %v1684
      %v1691 = vunpack.c.l.b16 %v1220
      %v1692 = vunpack.c.h.b16 %v1220
      %v1693 = vunpack.c.l.b16 %v1221
      %v1694 = vunpack.c.h.b16 %v1221
      %v1695 = vpack.c.b16 %v1691, %v1691
      %v1696 = vpack.c.b16 %v1692, %v1692
      %v1697 = vpack.c.b16 %v1693, %v1693
      %v1698 = vpack.c.b16 %v1694, %v1694
      %v1699 = vrot.slane %v1695, 6
      %v1700 = vrot.slane %v1696, 6
      %v1701 = vrot.slane %v1697, 6
      %v1702 = vrot.slane %v1698, 6
      %v1705 = vunpack.c.l.b16 %v1258
      %v1706 = vunpack.c.h.b16 %v1258
      %v1707 = vunpack.c.l.b16 %v1259
      %v1708 = vunpack.c.h.b16 %v1259
      %v1709 = vpack.c.b16 %v1705, %v1705
      %v1710 = vpack.c.b16 %v1706, %v1706
      %v1711 = vpack.c.b16 %v1707, %v1707
      %v1712 = vpack.c.b16 %v1708, %v1708
      %v1715 = vsel %vm1452, %v1589, %v1603
      %v1718 = vsel %vm1452, %v1590, %v1604
      %v1721 = vsel %vm1452, %v1591, %v1605
      %v1724 = vsel %vm1452, %v1592, %v1606
      %v1726 = vsel %vm1465, %v1715, %v1613
      %v1728 = vsel %vm1465, %v1718, %v1614
      %v1730 = vsel %vm1465, %v1721, %v1615
      %v1732 = vsel %vm1465, %v1724, %v1616
      %v1734 = vsel %vm1474, %v1726, %v1627
      %v1737 = vsel %vm1474, %v1728, %v1628
      %v1740 = vsel %vm1474, %v1730, %v1629
      %v1743 = vsel %vm1474, %v1732, %v1630
      %v1747 = vsel %vm1452, %v1637, %v1651
      %v1750 = vsel %vm1452, %v1638, %v1652
      %v1753 = vsel %vm1452, %v1639, %v1653
      %v1756 = vsel %vm1452, %v1640, %v1654
      %v1758 = vsel %vm1465, %v1747, %v1661
      %v1760 = vsel %vm1465, %v1750, %v1662
      %v1762 = vsel %vm1465, %v1753, %v1663
      %v1764 = vsel %vm1465, %v1756, %v1664
      %v1766 = vsel %vm1474, %v1758, %v1675
      %v1769 = vsel %vm1474, %v1760, %v1676
      %v1772 = vsel %vm1474, %v1762, %v1677
      %v1775 = vsel %vm1474, %v1764, %v1678
      %v1779 = vsel %vm1452, %v1685, %v1699
      %v1782 = vsel %vm1452, %v1686, %v1700
      %v1785 = vsel %vm1452, %v1687, %v1701
      %v1788 = vsel %vm1452, %v1688, %v1702
      %v1790 = vsel %vm1465, %v1779, %v1709
      %v1792 = vsel %vm1465, %v1782, %v1710
      %v1794 = vsel %vm1465, %v1785, %v1711
      %v1796 = vsel %vm1465, %v1788, %v1712
      %v1798 = vsel %vm1474, %v1790, 0
      %v1800 = vsel %vm1474, %v1792, 0
      %v1802 = vsel %vm1474, %v1794, 0
      %v1804 = vsel %vm1474, %v1796, 0
      %v1806 = vld [vmem:[%s2] sm:$0x3]
      %1807 = vmatpush.bf16.msra.mxu0 0
      %1808 = vmatpush.bf16.msra.mxu0 %v1798
      %1809 = vmatpush.bf16.msra.mxu0 %v1766
      %1810 = vmatpush.bf16.msra.mxu0 %v1734
      %1811 = vmatpush.bf16.msra.mxu0 %v1572
      %1812 = vmatpush.bf16.msra.mxu0 %v1540
      %1813 = vmatpush.bf16.msra.mxu0 %v1508
      %1814 = vmatpush.bf16.msra.mxu0 %v1476
      %1815 = vmatmul.bf16.gmra.mxu0 %v1806
      %v1816 = vpop.f32.mrf.mxu0
      %v1817 = vadd.f32 0.0, %v1816
      %v1818 = vpop.f32.mrf.mxu0
      %1819 = vdwg.mxu0
      %1820 = vmatpush.bf16.msra.mxu0 0
      %1821 = vmatpush.bf16.msra.mxu0 %v1800
      %1822 = vmatpush.bf16.msra.mxu0 %v1769
      %1823 = vmatpush.bf16.msra.mxu0 %v1737
      %1824 = vmatpush.bf16.msra.mxu0 %v1575
      %1825 = vmatpush.bf16.msra.mxu0 %v1543
      %1826 = vmatpush.bf16.msra.mxu0 %v1511
      %1827 = vmatpush.bf16.msra.mxu0 %v1479
      %1828 = vmatmul.bf16.gmra.mxu0 %v1806
      %v1829 = vpop.f32.mrf.mxu0
      %v1830 = vadd.f32 0.0, %v1829
      %v1831 = vpop.f32.mrf.mxu0
      %1832 = vdwg.mxu0
      %1833 = vmatpush.bf16.msra.mxu0 0
      %1834 = vmatpush.bf16.msra.mxu0 %v1802
      %1835 = vmatpush.bf16.msra.mxu0 %v1772
      %1836 = vmatpush.bf16.msra.mxu0 %v1740
      %1837 = vmatpush.bf16.msra.mxu0 %v1578
      %1838 = vmatpush.bf16.msra.mxu0 %v1546
      %1839 = vmatpush.bf16.msra.mxu0 %v1514
      %1840 = vmatpush.bf16.msra.mxu0 %v1482
      %1841 = vmatmul.bf16.gmra.mxu0 %v1806
      %v1842 = vpop.f32.mrf.mxu0
      %v1843 = vadd.f32 0.0, %v1842
      %v1844 = vpop.f32.mrf.mxu0
      %1845 = vdwg.mxu0
      %1846 = vmatpush.bf16.msra.mxu0 0
      %1847 = vmatpush.bf16.msra.mxu0 %v1804
      %1848 = vmatpush.bf16.msra.mxu0 %v1775
      %1849 = vmatpush.bf16.msra.mxu0 %v1743
      %1850 = vmatpush.bf16.msra.mxu0 %v1581
      %1851 = vmatpush.bf16.msra.mxu0 %v1549
      %1852 = vmatpush.bf16.msra.mxu0 %v1517
      %1853 = vmatpush.bf16.msra.mxu0 %v1485
      %1854 = vmatmul.bf16.gmra.mxu0 %v1806
      %v1855 = vpop.f32.mrf.mxu0
      %v1856 = vadd.f32 0.0, %v1855
      %v1857 = vpop.f32.mrf.mxu0
      %1858 = vdwg.mxu0
      %v1859 = vsel %vm1465, %v1817, 0.0
      %v1860 = vsel %vm1465, %v1830, 0.0
      %v1861 = vadd.f32 %v1859, %v1860
      %v1862 = vsel %vm1465, %v1843, 0.0
      %v1863 = vadd.f32 %v1861, %v1862
      %v1864 = vsel %vm1465, %v1856, 0.0
      %v1865 = vadd.f32 %v1863, %v1864
      %1866 = vadd.xlane.f32.xlu0 %v1865
      %v1867 = vpop.xlane.xlu0 %1866
      %v1868 = vmul.f32 %v1817, %v1817
      %v1869 = vmul.f32 %v1830, %v1830
      %v1870 = vmul.f32 %v1843, %v1843
      %v1871 = vmul.f32 %v1856, %v1856
      %v1872 = vsel %vm1465, %v1868, 0.0
      %v1873 = vsel %vm1465, %v1869, 0.0
      %v1874 = vadd.f32 %v1872, %v1873
      %v1875 = vsel %vm1465, %v1870, 0.0
      %v1876 = vadd.f32 %v1874, %v1875
      %v1877 = vsel %vm1465, %v1871, 0.0
      %v1878 = vadd.f32 %v1876, %v1877
      %1879 = vadd.xlane.f32.xlu0 %v1878
      %v1880 = vpop.xlane.xlu0 %1879
      %vm1881 = vcmask 7168
      %v1882 = vsel %vm1881, %v1867, %v1880
      %vm1883 = vcmask 11264
      %1884 = vst.msk [vmem:[%s208] sm:$0xf] %vm1883, %v1882
      %v1885 = vpack.c.bf16 %v1830, %v1817
      %v1886 = vpack.c.bf16 %v1856, %v1843
      %v1889 = vrot.slane %v1885, 2
      %v1890 = vrot.slane %v1886, 4
      %v1891 = vrot.slane %v1886, 6
      %v1894 = vsel %vm1452, %v1885, %v1889
      %vm1895 = vcmask 1045508
      %v1898 = vsel %vm1895, %v1890, %v1891
      %v1899 = vsel %vm1465, %v1894, %v1898
      %1901 = vst [vmem:[%s204] sm:$0xff] %v1899
      %p1902 = scmp.lt.s32.totalorder %s16, 1
      %s1903 = scalar_select %p1902, %s16, 1
      %s1904 = smul.addr %s1903, 4
      %s1905 = smul.addr %s1904, 2
      %s1906 = scalar_lea.vmem %s3, %s1905
      %p1907 = scmp.lt.s32.totalorder %s16, 1
      %s1908 = scalar_select %p1907, %s16, 1
      %s1909 = smul.addr %s1908, 4
      %s1910 = scalar_lea.vmem %s4, %s1909
      // Predicated region
      $region33: #{down_double_3d_conv.3} parent=31 // pred_check
        %p1911 = pneg %p102
      $region34: #{down_double_3d_conv.3} parent=31 // pred_check_branch
        %1913 = sbr.rel (%p1911) target = $region36
      $region35: #{down_double_3d_conv.3} parent=31 // pred_region
        _
      $region36: #{down_double_3d_conv.3} parent=31 // pred_fallthru
        _
      // Predicated region
      $region37: #{down_double_3d_conv.3} parent=31 // pred_check
        %p1914 = pneg %p128
      $region38: #{down_double_3d_conv.3} parent=31 // pred_check_branch
        %1916 = sbr.rel (%p1914) target = $region40
      $region39: #{down_double_3d_conv.3} parent=31 // pred_region
        _
      $region40: #{down_double_3d_conv.3} parent=31 // pred_fallthru
        _
    $region32: #{down_double_3d_conv.3} parent=5 // pred_fallthru
      _
    %p1917 = scmp.le.s32.totalorder 2, %s11
    // Predicated region
    $region41: #{down_double_3d_conv.3} parent=5 // pred_check
      %p1918 = pneg %p1917
    $region42: #{down_double_3d_conv.3} parent=5 // pred_check_branch
      %1920 = sbr.rel (%p1918) target = $region44
    $region43: #{down_double_3d_conv.3} parent=5 // pred_region
      %s1921 = ssub.s32 %s11, 2
      // Predicated region
      $region45: #{down_double_3d_conv.3} parent=43 // pred_check
        %p1922 = pneg %p108
      $region46: #{down_double_3d_conv.3} parent=43 // pred_check_branch
        %1924 = sbr.rel (%p1922) target = $region48
      $region47: #{down_double_3d_conv.3} parent=43 // pred_region
        %p1925 = scmp.lt.s32.totalorder %s17, 1
        %s1926 = scalar_select %p1925, %s17, 1
        %s1927 = smul.addr %s1926, 4
        %s1928 = smul.addr %s1927, 2
        %s1929 = scalar_lea.vmem %s3, %s1928
      $region48: #{down_double_3d_conv.3} parent=43 // pred_fallthru
        _
      // Predicated region
      $region49: #{down_double_3d_conv.3} parent=43 // pred_check
        %p1930 = pneg %p134
      $region50: #{down_double_3d_conv.3} parent=43 // pred_check_branch
        %1932 = sbr.rel (%p1930) target = $region52
      $region51: #{down_double_3d_conv.3} parent=43 // pred_region
        %p1933 = scmp.lt.s32.totalorder %s17, 1
        %s1934 = scalar_select %p1933, %s17, 1
        %s1935 = smul.addr %s1934, 4
        %s1936 = scalar_lea.vmem %s4, %s1935
      $region52: #{down_double_3d_conv.3} parent=43 // pred_fallthru
        _
    $region44: #{down_double_3d_conv.3} parent=5 // pred_fallthru
      _
  $region6: #{down_double_3d_conv.3} parent=0 // loop_footer
    %s15 = sadd.s32 1, %s11
  $region7: #{down_double_3d_conv.3} parent=0 // loop_footer_branch
    %10 = sbr.rel target = $region3
  $region8: #{down_double_3d_conv.3} parent=0 // loop_exit
    _

</llo_original>
